<compile_context>
chip_gen: v5e
topology: v5e:2x2
jax: 0.10.0
libtpu: 0.0.40
codegen_flags: <defaults>
</compile_context>

<pallas_src>
import functools
import math

import jax
import jax.numpy as jnp
from jax.experimental import pallas as pl
from jax.experimental.pallas import tpu as pltpu


# ------------------------------------------------------------------
# helpers
# ------------------------------------------------------------------
def _full_spec(shape):
    nd = len(shape)
    return pl.BlockSpec(shape, lambda i, _nd=nd: (0,) * _nd)


def _to_tm(x):
    """(B, L, F) batch-major -> (L*B, F) time-major rows (row = l*B + b)."""
    B, L, F = x.shape
    return jnp.transpose(x, (1, 0, 2)).reshape(L * B, F)


def _from_tm(x, batch):
    """(L*B, F) time-major rows -> (B, L, F)."""
    LB, F = x.shape
    L = LB // batch
    return jnp.transpose(x.reshape(L, batch, F), (1, 0, 2))


def _layer_norm(x, g, b):
    mu = jnp.mean(x, axis=-1, keepdims=True)
    var = jnp.mean(jnp.square(x - mu), axis=-1, keepdims=True)
    return (x - mu) * jax.lax.rsqrt(var + 1e-5) * g + b


def _gelu(x):
    # tanh-approximate GELU (Mosaic-safe; torch F.gelu default is exact erf).
    return jax.nn.gelu(x, approximate=True)


# ------------------------------------------------------------------
# Kernel 1: encoder affine -> x2z S5Block stack -> post_mean|post_std heads.
# All arrays are time-major (seq*B, feature).
# ------------------------------------------------------------------
def _posterior_kernel(xin_ref, step_ref, enc_W_ref, enc_b_ref,
                      an_g_ref, an_b_ref, lam_re_ref, lam_im_ref, logstep_ref,
                      B_ri_ref, C_ri_ref, Dp_ref, fn_g_ref, fn_b_ref,
                      Wenc_ref, Wdec_ref, post_W_ref, post_b_ref,
                      heads_ref, *, num_layers, seq, batch):
    xin = xin_ref[...]                                        # (N, Din_pad)
    step = step_ref[...]                                      # (N, 1)

    # --- encoder stand-in: tanh affine over [mini_batch, dt] ---
    # TODO(synk): encoder is an injected constructor with no source; tanh-affine stand-in.
    x = jnp.tanh(jnp.dot(xin, enc_W_ref[...],
                         preferred_element_type=jnp.float32) + enc_b_ref[...])
    D = x.shape[-1]
    P = lam_re_ref.shape[-1]

    for j in range(num_layers):
        # --- attn_norm ---
        fx = _layer_norm(x, an_g_ref[j], an_b_ref[j])
        res1 = fx

        # --- S5: diagonal complex SSM, ZOH discretization, per-step step_scale ---
        bu = jnp.dot(fx, B_ri_ref[j], preferred_element_type=jnp.float32)  # (N, 2P)
        bu_re = bu[:, :P]
        bu_im = bu[:, P:]

        dt = step * jnp.exp(logstep_ref[j])                   # (N, P)
        lam_re = lam_re_ref[j]                                # (1, P)
        lam_im = lam_im_ref[j]
        mag = jnp.exp(lam_re * dt)
        ang = lam_im * dt
        dA_re = mag * jnp.cos(ang)
        dA_im = mag * jnp.sin(ang)
        denom = lam_re * lam_re + lam_im * lam_im
        inv_re = lam_re / denom
        inv_im = -lam_im / denom
        num_re = dA_re - 1.0
        num_im = dA_im
        fac_re = num_re * inv_re - num_im * inv_im
        fac_im = num_re * inv_im + num_im * inv_re
        bubar_re = fac_re * bu_re - fac_im * bu_im             # (N, P)
        bubar_im = fac_re * bu_im + fac_im * bu_re

        # --- unrolled time scan, carry is (batch, P) complex state in vregs ---
        xr = jnp.zeros((batch, P), jnp.float32)
        xi = jnp.zeros((batch, P), jnp.float32)
        parts = []
        for l in range(seq):
            lo, hi = l * batch, (l + 1) * batch
            ar = dA_re[lo:hi]
            ai = dA_im[lo:hi]
            nr = ar * xr - ai * xi + bubar_re[lo:hi]
            ni = ar * xi + ai * xr + bubar_im[lo:hi]
            parts.append(jnp.concatenate([nr, ni], axis=-1))   # (batch, 2P)
            xr, xi = nr, ni
        xs_ri = jnp.concatenate(parts, axis=0)                 # (N, 2P)

        y = 2.0 * jnp.dot(xs_ri, C_ri_ref[j], preferred_element_type=jnp.float32)
        y = y + Dp_ref[j] * fx

        # --- gelu + residual ---
        x1 = _gelu(y) + res1

        # --- ff_norm -> ff_enc -> GEGLU -> ff_dec + residual ---
        fx2 = _layer_norm(x1, fn_g_ref[j], fn_b_ref[j])
        ag = jnp.dot(fx2, Wenc_ref[j], preferred_element_type=jnp.float32)  # (N, 2D)
        h = ag[:, :D] * _gelu(ag[:, D:])
        x = jnp.dot(h, Wdec_ref[j], preferred_element_type=jnp.float32) + fx2

    # --- fused post_mean | post_std heads ---
    heads_ref[...] = (jnp.dot(x, post_W_ref[...],
                              preferred_element_type=jnp.float32) + post_b_ref[...])


def _posterior_call(xin_tm, step_tm, p, *, seq, batch):
    N = xin_tm.shape[0]
    NL = p["an_g"].shape[0]
    head_w = p["post_W"].shape[1]
    inputs = (xin_tm, step_tm, p["enc_W"], p["enc_b"],
              p["an_g"], p["an_b"], p["lam_re"], p["lam_im"], p["logstep"],
              p["B_ri"], p["C_ri"], p["Dp"], p["fn_g"], p["fn_b"],
              p["Wenc"], p["Wdec"], p["post_W"], p["post_b"])
    return pl.pallas_call(
        functools.partial(_posterior_kernel, num_layers=NL, seq=seq, batch=batch),
        out_shape=jax.ShapeDtypeStruct((N, head_w), jnp.float32),
        grid=(1,),
        in_specs=[_full_spec(a.shape) for a in inputs],
        out_specs=_full_spec((N, head_w)),
        compiler_params=pltpu.CompilerParams(dimension_semantics=("arbitrary",)),
    )(*inputs)


# ------------------------------------------------------------------
# Kernel 2: decoder SSM stand-in + prior_mean|prior_std heads.
# TODO(synk): decoder is an injected constructor with no source; deterministic
#             real-diagonal-SSM stand-in with the required signature
#             (latent_z, control, intervals) -> (pred, z_obs, z_generate).
# ------------------------------------------------------------------
def _decoder_kernel(lz_ref, ctrl_ref, dt_ref,
                    W_obs_ref, b_obs_ref, a_log_ref, W_c_ref,
                    W_out_ref, b_out_ref, prior_W_ref, prior_b_ref,
                    pred_ref, zobs_ref, zgen_ref, prior_ref,
                    *, seq, total_seq, batch):
    # project posterior latent into the pc-ssm space
    z_obs = jnp.tanh(jnp.dot(lz_ref[...], W_obs_ref[...],
                             preferred_element_type=jnp.float32) + b_obs_ref[...])
    zobs_ref[...] = z_obs
    h = z_obs[(seq - 1) * batch: seq * batch]                 # (batch, P2) last step

    dt = dt_ref[...]                                          # (T*B, 1)
    a = jnp.exp(a_log_ref[...])                               # (1, P2)
    dec = jnp.exp(-a * dt)                                    # (T*B, P2)
    u = dt * jnp.dot(ctrl_ref[...], W_c_ref[...],
                     preferred_element_type=jnp.float32)      # (T*B, P2)

    parts = []
    for t in range(total_seq):                                # unrolled scan in vregs
        lo, hi = t * batch, (t + 1) * batch
        h = dec[lo:hi] * h + u[lo:hi]
        parts.append(h)
    zgen = jnp.concatenate(parts, axis=0)                     # (T*B, P2)
    zgen_ref[...] = zgen

    pred_ref[...] = jnp.tanh(jnp.dot(zgen, W_out_ref[...],
                                     preferred_element_type=jnp.float32) + b_out_ref[...])
    prior_ref[...] = (jnp.dot(zgen, prior_W_ref[...],
                              preferred_element_type=jnp.float32) + prior_b_ref[...])


def _decoder_call(lz_tm, ctrl_tm, dt_tm, p, *, seq, total_seq, batch):
    Nz = lz_tm.shape[0]
    Nt = ctrl_tm.shape[0]
    P2 = p["W_obs"].shape[1]
    out_dim = p["W_out"].shape[1]
    prior_w = p["prior_W"].shape[1]
    inputs = (lz_tm, ctrl_tm, dt_tm, p["W_obs"], p["b_obs"], p["a_log"],
              p["W_c"], p["W_out"], p["b_out"], p["prior_W"], p["prior_b"])
    out_shapes = (jax.ShapeDtypeStruct((Nt, out_dim), jnp.float32),
                  jax.ShapeDtypeStruct((Nz, P2), jnp.float32),
                  jax.ShapeDtypeStruct((Nt, P2), jnp.float32),
                  jax.ShapeDtypeStruct((Nt, prior_w), jnp.float32))
    return pl.pallas_call(
        functools.partial(_decoder_kernel, seq=seq, total_seq=total_seq, batch=batch),
        out_shape=out_shapes,
        grid=(1,),
        in_specs=[_full_spec(a.shape) for a in inputs],
        out_specs=tuple(_full_spec(s.shape) for s in out_shapes),
        compiler_params=pltpu.CompilerParams(dimension_semantics=("arbitrary",)),
    )(*inputs)


# ------------------------------------------------------------------
# PISSM glue (plain JAX around the two Pallas kernels)
# ------------------------------------------------------------------
def compute_time_intervals(t):
    intervals = jnp.diff(t, axis=1)
    return jnp.concatenate([intervals[:, :1], intervals], axis=1)


def pissm_forward(packed, mini_batch, control_data, t, sample_key):
    intervals = compute_time_intervals(t)                      # (B, total_seq)
    B, total_seq = intervals.shape
    seq = mini_batch.shape[1]
    step = intervals[:, :seq]                                  # (B, seq)

    # encoder input + time-major repack (layout plumbing only; tiny arrays)
    xin = jnp.concatenate([mini_batch, step[..., None]], axis=-1)
    xin_tm = _to_tm(xin)                                       # (seq*B, Din+1)
    step_tm = _to_tm(step[..., None])                          # (seq*B, 1)

    # pad the encoder contraction dim to a multiple of 8 for clean MXU tiles
    enc_W = packed["enc_W"]
    pad_in = (-xin_tm.shape[1]) % 8
    if pad_in:
        xin_tm = jnp.pad(xin_tm, ((0, 0), (0, pad_in)))
        enc_W = jnp.pad(enc_W, ((0, pad_in), (0, 0)))
    p_post = dict(packed, enc_W=enc_W)

    heads_tm = _posterior_call(xin_tm, step_tm, p_post, seq=seq, batch=B)
    heads = _from_tm(heads_tm, B)                              # (B, seq, 32)
    hw = packed["post_W"].shape[1] // 2
    post_mean = heads[..., :hw]
    post_std = heads[..., hw:]
    eps = jax.random.normal(sample_key, post_std.shape, jnp.float32)
    latent_z = eps * post_std + post_mean                      # reparameterized sample

    control = control_data.reshape(B, total_seq, -1)
    lz_tm = _to_tm(latent_z)
    ctrl_tm = _to_tm(control)
    dt_tm = _to_tm(intervals[..., None])

    # pad the control contraction dim to a multiple of 8
    W_c = packed["W_c"]
    pad_c = (-ctrl_tm.shape[1]) % 8
    if pad_c:
        ctrl_tm = jnp.pad(ctrl_tm, ((0, 0), (0, pad_c)))
        W_c = jnp.pad(W_c, ((0, pad_c), (0, 0)))
    p_dec = dict(packed, W_c=W_c)

    pred_tm, zobs_tm, zgen_tm, prior_tm = _decoder_call(
        lz_tm, ctrl_tm, dt_tm, p_dec, seq=seq, total_seq=total_seq, batch=B)

    predicted_batch = _from_tm(pred_tm, B)
    z_obs = _from_tm(zobs_tm, B)
    z_generate = _from_tm(zgen_tm, B)
    prior = _from_tm(prior_tm, B)
    pw = packed["prior_W"].shape[1] // 2
    prior_mean = prior[..., :pw]
    prior_std = prior[..., pw:]
    return (predicted_batch, z_obs, z_generate,
            (post_mean, post_std), (prior_mean, prior_std))


# ------------------------------------------------------------------
# Parameter construction + packing into the fused layout
# ------------------------------------------------------------------
def init_params(key, input_dim, ssm_input_dim, dim_pc_ssm, dim_control,
                num_x2z_layers):
    D = ssm_input_dim
    P = ssm_input_dim        # S5Block(ssm_input_dim, ssm_input_dim, ...)
    P2 = dim_pc_ssm
    keys = iter(jax.random.split(key, 64))

    def dense(din, dout):
        return jax.random.normal(next(keys), (din, dout), jnp.float32) / jnp.sqrt(din)

    params = {
        "enc_W": dense(input_dim + 1, D),
        "enc_b": jnp.zeros((1, D), jnp.float32),
    }
    layers = []
    for _ in range(num_x2z_layers):
        layers.append(dict(
            an_g=jnp.ones((1, D), jnp.float32),
            an_b=jnp.zeros((1, D), jnp.float32),
            lam_re=-0.5 * jnp.ones((1, P), jnp.float32),
            lam_im=(math.pi * jnp.arange(P, dtype=jnp.float32)).reshape(1, P),
            logstep=jnp.linspace(math.log(1e-3), math.log(1e-1), P,
                                 dtype=jnp.float32).reshape(1, P),
            B_re=dense(D, P), B_im=dense(D, P),
            C_re=dense(P, D), C_im=dense(P, D),
            Dp=jax.random.normal(next(keys), (1, D), jnp.float32),
            fn_g=jnp.ones((1, D), jnp.float32),
            fn_b=jnp.zeros((1, D), jnp.float32),
            Wenc_a=dense(D, D), Wenc_g=dense(D, D), Wdec=dense(D, D),
        ))
    params["x2z"] = layers
    params["post_mean_W"] = dense(D, 16)
    params["post_mean_b"] = jnp.zeros((1, 16), jnp.float32)
    params["post_std_W"] = dense(D, 16)
    params["post_std_b"] = jnp.zeros((1, 16), jnp.float32)
    params["prior_mean_W"] = dense(P2, 16)
    params["prior_mean_b"] = jnp.zeros((1, 16), jnp.float32)
    params["prior_std_W"] = dense(P2, 16)
    params["prior_std_b"] = jnp.zeros((1, 16), jnp.float32)
    # addf_layer exists in the torch module but is never used in forward(); omitted.
    params["dec"] = dict(
        W_obs=dense(16, P2), b_obs=jnp.zeros((1, P2), jnp.float32),
        a_log=jnp.zeros((1, P2), jnp.float32),
        W_c=dense(dim_control, P2),
        W_out=dense(P2, input_dim), b_out=jnp.zeros((1, input_dim), jnp.float32),
    )
    return params


def pack_params(params):
    """Stack per-layer params over a leading layer axis and fuse paired weights."""
    layers = params["x2z"]
    stk = lambda f: jnp.stack([f(lp) for lp in layers], axis=0)
    packed = dict(
        enc_W=params["enc_W"], enc_b=params["enc_b"],
        an_g=stk(lambda lp: lp["an_g"]),
        an_b=stk(lambda lp: lp["an_b"]),
        lam_re=stk(lambda lp: lp["lam_re"]),
        lam_im=stk(lambda lp: lp["lam_im"]),
        logstep=stk(lambda lp: lp["logstep"]),
        B_ri=stk(lambda lp: jnp.concatenate([lp["B_re"], lp["B_im"]], axis=1)),
        C_ri=stk(lambda lp: jnp.concatenate([lp["C_re"], -lp["C_im"]], axis=0)),
        Dp=stk(lambda lp: lp["Dp"]),
        fn_g=stk(lambda lp: lp["fn_g"]),
        fn_b=stk(lambda lp: lp["fn_b"]),
        Wenc=stk(lambda lp: jnp.concatenate([lp["Wenc_a"], lp["Wenc_g"]], axis=1)),
        Wdec=stk(lambda lp: lp["Wdec"]),
        post_W=jnp.concatenate([params["post_mean_W"], params["post_std_W"]], axis=1),
        post_b=jnp.concatenate([params["post_mean_b"], params["post_std_b"]], axis=1),
        prior_W=jnp.concatenate([params["prior_mean_W"], params["prior_std_W"]], axis=1),
        prior_b=jnp.concatenate([params["prior_mean_b"], params["prior_std_b"]], axis=1),
    )
    packed.update(params["dec"])   # W_obs, b_obs, a_log, W_c, W_out, b_out
    return packed


if __name__ == "__main__":
    B, input_dim, seq, total_seq = 2, 6, 8, 12
    ssm_input_dim, dim_pc_ssm, dim_control = 32, 24, 4
    num_x2z_layers = 2

    root = jax.random.PRNGKey(0)
    k_par, k_x, k_c, k_t, k_eps = jax.random.split(root, 5)

    params = init_params(k_par, input_dim, ssm_input_dim, dim_pc_ssm,
                         dim_control, num_x2z_layers)
    packed = pack_params(params)

    mini_batch = jax.random.normal(k_x, (B, seq, input_dim), jnp.float32)
    control_data = jax.random.normal(k_c, (B, total_seq, dim_control), jnp.float32)
    t = jnp.cumsum(jax.random.uniform(k_t, (B, total_seq), jnp.float32,
                                      minval=0.05, maxval=0.15), axis=1)

    fwd = jax.jit(pissm_forward)
    out = fwd(packed, mini_batch, control_data, t, k_eps)
    jax.block_until_ready(out)
    print("KERNEL_OK")
</pallas_src>

<mosaic_0001>
module attributes {stable_mosaic.version = 11 : i64} {
  func.func @_posterior_kernel(%arg0: i32, %arg1: memref<16x8xf32, #tpu.memory_space<vmem>>, %arg2: memref<16x1xf32, #tpu.memory_space<vmem>>, %arg3: memref<8x32xf32, #tpu.memory_space<vmem>>, %arg4: memref<1x32xf32, #tpu.memory_space<vmem>>, %arg5: memref<2x1x32xf32, #tpu.memory_space<vmem>>, %arg6: memref<2x1x32xf32, #tpu.memory_space<vmem>>, %arg7: memref<2x1x32xf32, #tpu.memory_space<vmem>>, %arg8: memref<2x1x32xf32, #tpu.memory_space<vmem>>, %arg9: memref<2x1x32xf32, #tpu.memory_space<vmem>>, %arg10: memref<2x32x64xf32, #tpu.memory_space<vmem>>, %arg11: memref<2x64x32xf32, #tpu.memory_space<vmem>>, %arg12: memref<2x1x32xf32, #tpu.memory_space<vmem>>, %arg13: memref<2x1x32xf32, #tpu.memory_space<vmem>>, %arg14: memref<2x1x32xf32, #tpu.memory_space<vmem>>, %arg15: memref<2x32x64xf32, #tpu.memory_space<vmem>>, %arg16: memref<2x32x32xf32, #tpu.memory_space<vmem>>, %arg17: memref<32x32xf32, #tpu.memory_space<vmem>>, %arg18: memref<1x32xf32, #tpu.memory_space<vmem>>, %arg19: memref<16x32xf32, #tpu.memory_space<vmem>>) attributes {dimension_semantics = [#tpu.dimension_semantics<arbitrary>], iteration_bounds = array<i64: 1>, scalar_prefetch = 0 : i64, scratch_operands = 0 : i64, tpu.core_type = #tpu.core_type<tc>, window_params = [{pipeline_mode = #tpu.pipeline_mode<synchronous>, transform_indices = @transform_0, window_bounds = array<i64: 16, 8>}, {pipeline_mode = #tpu.pipeline_mode<synchronous>, transform_indices = @transform_1, window_bounds = array<i64: 16, 1>}, {pipeline_mode = #tpu.pipeline_mode<synchronous>, transform_indices = @transform_2, window_bounds = array<i64: 8, 32>}, {pipeline_mode = #tpu.pipeline_mode<synchronous>, transform_indices = @transform_3, window_bounds = array<i64: 1, 32>}, {pipeline_mode = #tpu.pipeline_mode<synchronous>, transform_indices = @transform_4, window_bounds = array<i64: 2, 1, 32>}, {pipeline_mode = #tpu.pipeline_mode<synchronous>, transform_indices = @transform_5, window_bounds = array<i64: 2, 1, 32>}, {pipeline_mode = #tpu.pipeline_mode<synchronous>, transform_indices = @transform_6, window_bounds = array<i64: 2, 1, 32>}, {pipeline_mode = #tpu.pipeline_mode<synchronous>, transform_indices = @transform_7, window_bounds = array<i64: 2, 1, 32>}, {pipeline_mode = #tpu.pipeline_mode<synchronous>, transform_indices = @transform_8, window_bounds = array<i64: 2, 1, 32>}, {pipeline_mode = #tpu.pipeline_mode<synchronous>, transform_indices = @transform_9, window_bounds = array<i64: 2, 32, 64>}, {pipeline_mode = #tpu.pipeline_mode<synchronous>, transform_indices = @transform_10, window_bounds = array<i64: 2, 64, 32>}, {pipeline_mode = #tpu.pipeline_mode<synchronous>, transform_indices = @transform_11, window_bounds = array<i64: 2, 1, 32>}, {pipeline_mode = #tpu.pipeline_mode<synchronous>, transform_indices = @transform_12, window_bounds = array<i64: 2, 1, 32>}, {pipeline_mode = #tpu.pipeline_mode<synchronous>, transform_indices = @transform_13, window_bounds = array<i64: 2, 1, 32>}, {pipeline_mode = #tpu.pipeline_mode<synchronous>, transform_indices = @transform_14, window_bounds = array<i64: 2, 32, 64>}, {pipeline_mode = #tpu.pipeline_mode<synchronous>, transform_indices = @transform_15, window_bounds = array<i64: 2, 32, 32>}, {pipeline_mode = #tpu.pipeline_mode<synchronous>, transform_indices = @transform_16, window_bounds = array<i64: 32, 32>}, {pipeline_mode = #tpu.pipeline_mode<synchronous>, transform_indices = @transform_17, window_bounds = array<i64: 1, 32>}, {pipeline_mode = #tpu.pipeline_mode<synchronous>, transform_indices = @transform_18, window_bounds = array<i64: 16, 32>}]} {
    %c0 = arith.constant 0 : index
    %c0_0 = arith.constant 0 : index
    %0 = vector.load %arg1[%c0, %c0_0] : memref<16x8xf32, #tpu.memory_space<vmem>>, vector<16x8xf32>
    %c0_1 = arith.constant 0 : index
    %c0_2 = arith.constant 0 : index
    %1 = vector.load %arg2[%c0_1, %c0_2] : memref<16x1xf32, #tpu.memory_space<vmem>>, vector<16x1xf32>
    %c0_3 = arith.constant 0 : index
    %c0_4 = arith.constant 0 : index
    %2 = vector.load %arg3[%c0_3, %c0_4] : memref<8x32xf32, #tpu.memory_space<vmem>>, vector<8x32xf32>
    %cst = arith.constant dense<0.000000e+00> : vector<16x32xf32>
    %3 = tpu.matmul %0, %2, %cst {dimension_numbers = #tpu.dot_dimension_numbers<[1], [0], [0], [1], [0, 0, 1, 1], [], []>} : vector<16x8xf32>, vector<8x32xf32>, vector<16x32xf32> -> vector<16x32xf32>
    %c0_5 = arith.constant 0 : index
    %c0_6 = arith.constant 0 : index
    %4 = vector.load %arg4[%c0_5, %c0_6] : memref<1x32xf32, #tpu.memory_space<vmem>>, vector<1x32xf32>
    %5 = vector.broadcast %4 : vector<1x32xf32> to vector<16x32xf32>
    %6 = arith.addf %3, %5 : vector<16x32xf32>
    %7 = math.tanh %6 : vector<16x32xf32>
    %c0_7 = arith.constant 0 : index
    %c0_8 = arith.constant 0 : index
    %c0_9 = arith.constant 0 : index
    %8 = vector.load %arg5[%c0_7, %c0_8, %c0_9] : memref<2x1x32xf32, #tpu.memory_space<vmem>>, vector<1x1x32xf32>
    %9 = vector.shape_cast %8 : vector<1x1x32xf32> to vector<1x32xf32>
    %c0_10 = arith.constant 0 : index
    %c0_11 = arith.constant 0 : index
    %c0_12 = arith.constant 0 : index
    %10 = vector.load %arg6[%c0_10, %c0_11, %c0_12] : memref<2x1x32xf32, #tpu.memory_space<vmem>>, vector<1x1x32xf32>
    %11 = vector.shape_cast %10 : vector<1x1x32xf32> to vector<1x32xf32>
    %cst_13 = arith.constant dense<0.000000e+00> : vector<16xf32>
    %12 = vector.multi_reduction <add>, %7, %cst_13 [1] : vector<16x32xf32> to vector<16xf32>
    %13 = vector.shape_cast %12 : vector<16xf32> to vector<16x1xf32>
    %cst_14 = arith.constant 3.200000e+01 : f32
    %14 = vector.broadcast %cst_14 : f32 to vector<16x1xf32>
    %15 = arith.divf %13, %14 : vector<16x1xf32>
    %16 = vector.broadcast %15 : vector<16x1xf32> to vector<16x32xf32>
    %17 = arith.subf %7, %16 : vector<16x32xf32>
    %18 = arith.mulf %17, %17 : vector<16x32xf32>
    %cst_15 = arith.constant dense<0.000000e+00> : vector<16xf32>
    %19 = vector.multi_reduction <add>, %18, %cst_15 [1] : vector<16x32xf32> to vector<16xf32>
    %20 = vector.shape_cast %19 : vector<16xf32> to vector<16x1xf32>
    %cst_16 = arith.constant 3.200000e+01 : f32
    %21 = vector.broadcast %cst_16 : f32 to vector<16x1xf32>
    %22 = arith.divf %20, %21 : vector<16x1xf32>
    %23 = vector.broadcast %15 : vector<16x1xf32> to vector<16x32xf32>
    %24 = arith.subf %7, %23 : vector<16x32xf32>
    %cst_17 = arith.constant 9.99999974E-6 : f32
    %25 = vector.broadcast %cst_17 : f32 to vector<16x1xf32>
    %26 = arith.addf %22, %25 : vector<16x1xf32>
    %27 = math.rsqrt %26 : vector<16x1xf32>
    %28 = vector.broadcast %27 : vector<16x1xf32> to vector<16x32xf32>
    %29 = arith.mulf %24, %28 : vector<16x32xf32>
    %30 = vector.broadcast %9 : vector<1x32xf32> to vector<16x32xf32>
    %31 = arith.mulf %29, %30 : vector<16x32xf32>
    %32 = vector.broadcast %11 : vector<1x32xf32> to vector<16x32xf32>
    %33 = arith.addf %31, %32 : vector<16x32xf32>
    %c0_18 = arith.constant 0 : index
    %c0_19 = arith.constant 0 : index
    %c0_20 = arith.constant 0 : index
    %34 = vector.load %arg10[%c0_18, %c0_19, %c0_20] : memref<2x32x64xf32, #tpu.memory_space<vmem>>, vector<1x32x64xf32>
    %35 = vector.shape_cast %34 : vector<1x32x64xf32> to vector<32x64xf32>
    %cst_21 = arith.constant dense<0.000000e+00> : vector<16x64xf32>
    %36 = tpu.matmul %33, %35, %cst_21 {dimension_numbers = #tpu.dot_dimension_numbers<[1], [0], [0], [1], [0, 0, 1, 1], [], []>} : vector<16x32xf32>, vector<32x64xf32>, vector<16x64xf32> -> vector<16x64xf32>
    %37 = vector.extract_strided_slice %36 {offsets = [0, 0], sizes = [16, 32], strides = [1, 1]} : vector<16x64xf32> to vector<16x32xf32>
    %38 = vector.extract_strided_slice %36 {offsets = [0, 32], sizes = [16, 32], strides = [1, 1]} : vector<16x64xf32> to vector<16x32xf32>
    %c0_22 = arith.constant 0 : index
    %c0_23 = arith.constant 0 : index
    %c0_24 = arith.constant 0 : index
    %39 = vector.load %arg9[%c0_22, %c0_23, %c0_24] : memref<2x1x32xf32, #tpu.memory_space<vmem>>, vector<1x1x32xf32>
    %40 = vector.shape_cast %39 : vector<1x1x32xf32> to vector<1x32xf32>
    %41 = math.exp %40 : vector<1x32xf32>
    %42 = vector.broadcast %1 : vector<16x1xf32> to vector<16x32xf32>
    %43 = vector.broadcast %41 : vector<1x32xf32> to vector<16x32xf32>
    %44 = arith.mulf %42, %43 : vector<16x32xf32>
    %c0_25 = arith.constant 0 : index
    %c0_26 = arith.constant 0 : index
    %c0_27 = arith.constant 0 : index
    %45 = vector.load %arg7[%c0_25, %c0_26, %c0_27] : memref<2x1x32xf32, #tpu.memory_space<vmem>>, vector<1x1x32xf32>
    %46 = vector.shape_cast %45 : vector<1x1x32xf32> to vector<1x32xf32>
    %c0_28 = arith.constant 0 : index
    %c0_29 = arith.constant 0 : index
    %c0_30 = arith.constant 0 : index
    %47 = vector.load %arg8[%c0_28, %c0_29, %c0_30] : memref<2x1x32xf32, #tpu.memory_space<vmem>>, vector<1x1x32xf32>
    %48 = vector.shape_cast %47 : vector<1x1x32xf32> to vector<1x32xf32>
    %49 = vector.broadcast %46 : vector<1x32xf32> to vector<16x32xf32>
    %50 = arith.mulf %49, %44 : vector<16x32xf32>
    %51 = math.exp %50 : vector<16x32xf32>
    %52 = vector.broadcast %48 : vector<1x32xf32> to vector<16x32xf32>
    %53 = arith.mulf %52, %44 : vector<16x32xf32>
    %54 = math.cos %53 : vector<16x32xf32>
    %55 = arith.mulf %51, %54 : vector<16x32xf32>
    %56 = math.sin %53 : vector<16x32xf32>
    %57 = arith.mulf %51, %56 : vector<16x32xf32>
    %58 = arith.mulf %46, %46 : vector<1x32xf32>
    %59 = arith.mulf %48, %48 : vector<1x32xf32>
    %60 = arith.addf %58, %59 : vector<1x32xf32>
    %61 = arith.divf %46, %60 : vector<1x32xf32>
    %cst_31 = arith.constant 0.000000e+00 : f32
    %62 = vector.broadcast %cst_31 : f32 to vector<1x32xf32>
    %63 = arith.subf %62, %48 : vector<1x32xf32>
    %64 = arith.divf %63, %60 : vector<1x32xf32>
    %cst_32 = arith.constant 1.000000e+00 : f32
    %65 = vector.broadcast %cst_32 : f32 to vector<16x32xf32>
    %66 = arith.subf %55, %65 : vector<16x32xf32>
    %67 = vector.broadcast %61 : vector<1x32xf32> to vector<16x32xf32>
    %68 = arith.mulf %66, %67 : vector<16x32xf32>
    %69 = vector.broadcast %64 : vector<1x32xf32> to vector<16x32xf32>
    %70 = arith.mulf %57, %69 : vector<16x32xf32>
    %71 = arith.subf %68, %70 : vector<16x32xf32>
    %72 = vector.broadcast %64 : vector<1x32xf32> to vector<16x32xf32>
    %73 = arith.mulf %66, %72 : vector<16x32xf32>
    %74 = vector.broadcast %61 : vector<1x32xf32> to vector<16x32xf32>
    %75 = arith.mulf %57, %74 : vector<16x32xf32>
    %76 = arith.addf %73, %75 : vector<16x32xf32>
    %77 = arith.mulf %71, %37 : vector<16x32xf32>
    %78 = arith.mulf %76, %38 : vector<16x32xf32>
    %79 = arith.subf %77, %78 : vector<16x32xf32>
    %80 = arith.mulf %71, %38 : vector<16x32xf32>
    %81 = arith.mulf %76, %37 : vector<16x32xf32>
    %82 = arith.addf %80, %81 : vector<16x32xf32>
    %cst_33 = arith.constant 0.000000e+00 : f32
    %83 = vector.broadcast %cst_33 : f32 to vector<2x32xf32>
    %cst_34 = arith.constant 0.000000e+00 : f32
    %84 = vector.broadcast %cst_34 : f32 to vector<2x32xf32>
    %85 = vector.extract_strided_slice %55 {offsets = [0, 0], sizes = [2, 32], strides = [1, 1]} : vector<16x32xf32> to vector<2x32xf32>
    %86 = vector.extract_strided_slice %57 {offsets = [0, 0], sizes = [2, 32], strides = [1, 1]} : vector<16x32xf32> to vector<2x32xf32>
    %87 = arith.mulf %85, %83 : vector<2x32xf32>
    %88 = arith.mulf %86, %84 : vector<2x32xf32>
    %89 = arith.subf %87, %88 : vector<2x32xf32>
    %90 = vector.extract_strided_slice %79 {offsets = [0, 0], sizes = [2, 32], strides = [1, 1]} : vector<16x32xf32> to vector<2x32xf32>
    %91 = arith.addf %89, %90 : vector<2x32xf32>
    %92 = arith.mulf %85, %84 : vector<2x32xf32>
    %93 = arith.mulf %86, %83 : vector<2x32xf32>
    %94 = arith.addf %92, %93 : vector<2x32xf32>
    %95 = vector.extract_strided_slice %82 {offsets = [0, 0], sizes = [2, 32], strides = [1, 1]} : vector<16x32xf32> to vector<2x32xf32>
    %96 = arith.addf %94, %95 : vector<2x32xf32>
    %97 = tpu.concatenate %91, %96 in 1 : vector<2x32xf32>, vector<2x32xf32> -> vector<2x64xf32>
    %98 = vector.extract_strided_slice %55 {offsets = [2, 0], sizes = [2, 32], strides = [1, 1]} : vector<16x32xf32> to vector<2x32xf32>
    %99 = vector.extract_strided_slice %57 {offsets = [2, 0], sizes = [2, 32], strides = [1, 1]} : vector<16x32xf32> to vector<2x32xf32>
    %100 = arith.mulf %98, %91 : vector<2x32xf32>
    %101 = arith.mulf %99, %96 : vector<2x32xf32>
    %102 = arith.subf %100, %101 : vector<2x32xf32>
    %103 = vector.extract_strided_slice %79 {offsets = [2, 0], sizes = [2, 32], strides = [1, 1]} : vector<16x32xf32> to vector<2x32xf32>
    %104 = arith.addf %102, %103 : vector<2x32xf32>
    %105 = arith.mulf %98, %96 : vector<2x32xf32>
    %106 = arith.mulf %99, %91 : vector<2x32xf32>
    %107 = arith.addf %105, %106 : vector<2x32xf32>
    %108 = vector.extract_strided_slice %82 {offsets = [2, 0], sizes = [2, 32], strides = [1, 1]} : vector<16x32xf32> to vector<2x32xf32>
    %109 = arith.addf %107, %108 : vector<2x32xf32>
    %110 = tpu.concatenate %104, %109 in 1 : vector<2x32xf32>, vector<2x32xf32> -> vector<2x64xf32>
    %111 = vector.extract_strided_slice %55 {offsets = [4, 0], sizes = [2, 32], strides = [1, 1]} : vector<16x32xf32> to vector<2x32xf32>
    %112 = vector.extract_strided_slice %57 {offsets = [4, 0], sizes = [2, 32], strides = [1, 1]} : vector<16x32xf32> to vector<2x32xf32>
    %113 = arith.mulf %111, %104 : vector<2x32xf32>
    %114 = arith.mulf %112, %109 : vector<2x32xf32>
    %115 = arith.subf %113, %114 : vector<2x32xf32>
    %116 = vector.extract_strided_slice %79 {offsets = [4, 0], sizes = [2, 32], strides = [1, 1]} : vector<16x32xf32> to vector<2x32xf32>
    %117 = arith.addf %115, %116 : vector<2x32xf32>
    %118 = arith.mulf %111, %109 : vector<2x32xf32>
    %119 = arith.mulf %112, %104 : vector<2x32xf32>
    %120 = arith.addf %118, %119 : vector<2x32xf32>
    %121 = vector.extract_strided_slice %82 {offsets = [4, 0], sizes = [2, 32], strides = [1, 1]} : vector<16x32xf32> to vector<2x32xf32>
    %122 = arith.addf %120, %121 : vector<2x32xf32>
    %123 = tpu.concatenate %117, %122 in 1 : vector<2x32xf32>, vector<2x32xf32> -> vector<2x64xf32>
    %124 = vector.extract_strided_slice %55 {offsets = [6, 0], sizes = [2, 32], strides = [1, 1]} : vector<16x32xf32> to vector<2x32xf32>
    %125 = vector.extract_strided_slice %57 {offsets = [6, 0], sizes = [2, 32], strides = [1, 1]} : vector<16x32xf32> to vector<2x32xf32>
    %126 = arith.mulf %124, %117 : vector<2x32xf32>
    %127 = arith.mulf %125, %122 : vector<2x32xf32>
    %128 = arith.subf %126, %127 : vector<2x32xf32>
    %129 = vector.extract_strided_slice %79 {offsets = [6, 0], sizes = [2, 32], strides = [1, 1]} : vector<16x32xf32> to vector<2x32xf32>
    %130 = arith.addf %128, %129 : vector<2x32xf32>
    %131 = arith.mulf %124, %122 : vector<2x32xf32>
    %132 = arith.mulf %125, %117 : vector<2x32xf32>
    %133 = arith.addf %131, %132 : vector<2x32xf32>
    %134 = vector.extract_strided_slice %82 {offsets = [6, 0], sizes = [2, 32], strides = [1, 1]} : vector<16x32xf32> to vector<2x32xf32>
    %135 = arith.addf %133, %134 : vector<2x32xf32>
    %136 = tpu.concatenate %130, %135 in 1 : vector<2x32xf32>, vector<2x32xf32> -> vector<2x64xf32>
    %137 = vector.extract_strided_slice %55 {offsets = [8, 0], sizes = [2, 32], strides = [1, 1]} : vector<16x32xf32> to vector<2x32xf32>
    %138 = vector.extract_strided_slice %57 {offsets = [8, 0], sizes = [2, 32], strides = [1, 1]} : vector<16x32xf32> to vector<2x32xf32>
    %139 = arith.mulf %137, %130 : vector<2x32xf32>
    %140 = arith.mulf %138, %135 : vector<2x32xf32>
    %141 = arith.subf %139, %140 : vector<2x32xf32>
    %142 = vector.extract_strided_slice %79 {offsets = [8, 0], sizes = [2, 32], strides = [1, 1]} : vector<16x32xf32> to vector<2x32xf32>
    %143 = arith.addf %141, %142 : vector<2x32xf32>
    %144 = arith.mulf %137, %135 : vector<2x32xf32>
    %145 = arith.mulf %138, %130 : vector<2x32xf32>
    %146 = arith.addf %144, %145 : vector<2x32xf32>
    %147 = vector.extract_strided_slice %82 {offsets = [8, 0], sizes = [2, 32], strides = [1, 1]} : vector<16x32xf32> to vector<2x32xf32>
    %148 = arith.addf %146, %147 : vector<2x32xf32>
    %149 = tpu.concatenate %143, %148 in 1 : vector<2x32xf32>, vector<2x32xf32> -> vector<2x64xf32>
    %150 = vector.extract_strided_slice %55 {offsets = [10, 0], sizes = [2, 32], strides = [1, 1]} : vector<16x32xf32> to vector<2x32xf32>
    %151 = vector.extract_strided_slice %57 {offsets = [10, 0], sizes = [2, 32], strides = [1, 1]} : vector<16x32xf32> to vector<2x32xf32>
    %152 = arith.mulf %150, %143 : vector<2x32xf32>
    %153 = arith.mulf %151, %148 : vector<2x32xf32>
    %154 = arith.subf %152, %153 : vector<2x32xf32>
    %155 = vector.extract_strided_slice %79 {offsets = [10, 0], sizes = [2, 32], strides = [1, 1]} : vector<16x32xf32> to vector<2x32xf32>
    %156 = arith.addf %154, %155 : vector<2x32xf32>
    %157 = arith.mulf %150, %148 : vector<2x32xf32>
    %158 = arith.mulf %151, %143 : vector<2x32xf32>
    %159 = arith.addf %157, %158 : vector<2x32xf32>
    %160 = vector.extract_strided_slice %82 {offsets = [10, 0], sizes = [2, 32], strides = [1, 1]} : vector<16x32xf32> to vector<2x32xf32>
    %161 = arith.addf %159, %160 : vector<2x32xf32>
    %162 = tpu.concatenate %156, %161 in 1 : vector<2x32xf32>, vector<2x32xf32> -> vector<2x64xf32>
    %163 = vector.extract_strided_slice %55 {offsets = [12, 0], sizes = [2, 32], strides = [1, 1]} : vector<16x32xf32> to vector<2x32xf32>
    %164 = vector.extract_strided_slice %57 {offsets = [12, 0], sizes = [2, 32], strides = [1, 1]} : vector<16x32xf32> to vector<2x32xf32>
    %165 = arith.mulf %163, %156 : vector<2x32xf32>
    %166 = arith.mulf %164, %161 : vector<2x32xf32>
    %167 = arith.subf %165, %166 : vector<2x32xf32>
    %168 = vector.extract_strided_slice %79 {offsets = [12, 0], sizes = [2, 32], strides = [1, 1]} : vector<16x32xf32> to vector<2x32xf32>
    %169 = arith.addf %167, %168 : vector<2x32xf32>
    %170 = arith.mulf %163, %161 : vector<2x32xf32>
    %171 = arith.mulf %164, %156 : vector<2x32xf32>
    %172 = arith.addf %170, %171 : vector<2x32xf32>
    %173 = vector.extract_strided_slice %82 {offsets = [12, 0], sizes = [2, 32], strides = [1, 1]} : vector<16x32xf32> to vector<2x32xf32>
    %174 = arith.addf %172, %173 : vector<2x32xf32>
    %175 = tpu.concatenate %169, %174 in 1 : vector<2x32xf32>, vector<2x32xf32> -> vector<2x64xf32>
    %176 = vector.extract_strided_slice %55 {offsets = [14, 0], sizes = [2, 32], strides = [1, 1]} : vector<16x32xf32> to vector<2x32xf32>
    %177 = vector.extract_strided_slice %57 {offsets = [14, 0], sizes = [2, 32], strides = [1, 1]} : vector<16x32xf32> to vector<2x32xf32>
    %178 = arith.mulf %176, %169 : vector<2x32xf32>
    %179 = arith.mulf %177, %174 : vector<2x32xf32>
    %180 = arith.subf %178, %179 : vector<2x32xf32>
    %181 = vector.extract_strided_slice %79 {offsets = [14, 0], sizes = [2, 32], strides = [1, 1]} : vector<16x32xf32> to vector<2x32xf32>
    %182 = arith.addf %180, %181 : vector<2x32xf32>
    %183 = arith.mulf %176, %174 : vector<2x32xf32>
    %184 = arith.mulf %177, %169 : vector<2x32xf32>
    %185 = arith.addf %183, %184 : vector<2x32xf32>
    %186 = vector.extract_strided_slice %82 {offsets = [14, 0], sizes = [2, 32], strides = [1, 1]} : vector<16x32xf32> to vector<2x32xf32>
    %187 = arith.addf %185, %186 : vector<2x32xf32>
    %188 = tpu.concatenate %182, %187 in 1 : vector<2x32xf32>, vector<2x32xf32> -> vector<2x64xf32>
    %189 = tpu.concatenate %97, %110, %123, %136, %149, %162, %175, %188 in 0 : vector<2x64xf32>, vector<2x64xf32>, vector<2x64xf32>, vector<2x64xf32>, vector<2x64xf32>, vector<2x64xf32>, vector<2x64xf32>, vector<2x64xf32> -> vector<16x64xf32>
    %c0_35 = arith.constant 0 : index
    %c0_36 = arith.constant 0 : index
    %c0_37 = arith.constant 0 : index
    %190 = vector.load %arg11[%c0_35, %c0_36, %c0_37] : memref<2x64x32xf32, #tpu.memory_space<vmem>>, vector<1x64x32xf32>
    %191 = vector.shape_cast %190 : vector<1x64x32xf32> to vector<64x32xf32>
    %cst_38 = arith.constant dense<0.000000e+00> : vector<16x32xf32>
    %192 = tpu.matmul %189, %191, %cst_38 {dimension_numbers = #tpu.dot_dimension_numbers<[1], [0], [0], [1], [0, 0, 1, 1], [], []>} : vector<16x64xf32>, vector<64x32xf32>, vector<16x32xf32> -> vector<16x32xf32>
    %cst_39 = arith.constant 2.000000e+00 : f32
    %193 = vector.broadcast %cst_39 : f32 to vector<16x32xf32>
    %194 = arith.mulf %193, %192 : vector<16x32xf32>
    %c0_40 = arith.constant 0 : index
    %c0_41 = arith.constant 0 : index
    %c0_42 = arith.constant 0 : index
    %195 = vector.load %arg12[%c0_40, %c0_41, %c0_42] : memref<2x1x32xf32, #tpu.memory_space<vmem>>, vector<1x1x32xf32>
    %196 = vector.shape_cast %195 : vector<1x1x32xf32> to vector<1x32xf32>
    %197 = vector.broadcast %196 : vector<1x32xf32> to vector<16x32xf32>
    %198 = arith.mulf %197, %33 : vector<16x32xf32>
    %199 = arith.addf %194, %198 : vector<16x32xf32>
    %200 = arith.mulf %199, %199 : vector<16x32xf32>
    %201 = arith.mulf %199, %200 : vector<16x32xf32>
    %cst_43 = arith.constant 4.471500e-02 : f32
    %202 = vector.broadcast %cst_43 : f32 to vector<16x32xf32>
    %203 = arith.mulf %202, %201 : vector<16x32xf32>
    %204 = arith.addf %199, %203 : vector<16x32xf32>
    %cst_44 = arith.constant 0.797884583 : f32
    %205 = vector.broadcast %cst_44 : f32 to vector<16x32xf32>
    %206 = arith.mulf %205, %204 : vector<16x32xf32>
    %207 = math.tanh %206 : vector<16x32xf32>
    %cst_45 = arith.constant 1.000000e+00 : f32
    %208 = vector.broadcast %cst_45 : f32 to vector<16x32xf32>
    %209 = arith.addf %208, %207 : vector<16x32xf32>
    %cst_46 = arith.constant 5.000000e-01 : f32
    %210 = vector.broadcast %cst_46 : f32 to vector<16x32xf32>
    %211 = arith.mulf %210, %209 : vector<16x32xf32>
    %212 = arith.mulf %199, %211 : vector<16x32xf32>
    %213 = arith.addf %212, %33 : vector<16x32xf32>
    %c0_47 = arith.constant 0 : index
    %c0_48 = arith.constant 0 : index
    %c0_49 = arith.constant 0 : index
    %214 = vector.load %arg13[%c0_47, %c0_48, %c0_49] : memref<2x1x32xf32, #tpu.memory_space<vmem>>, vector<1x1x32xf32>
    %215 = vector.shape_cast %214 : vector<1x1x32xf32> to vector<1x32xf32>
    %c0_50 = arith.constant 0 : index
    %c0_51 = arith.constant 0 : index
    %c0_52 = arith.constant 0 : index
    %216 = vector.load %arg14[%c0_50, %c0_51, %c0_52] : memref<2x1x32xf32, #tpu.memory_space<vmem>>, vector<1x1x32xf32>
    %217 = vector.shape_cast %216 : vector<1x1x32xf32> to vector<1x32xf32>
    %cst_53 = arith.constant dense<0.000000e+00> : vector<16xf32>
    %218 = vector.multi_reduction <add>, %213, %cst_53 [1] : vector<16x32xf32> to vector<16xf32>
    %219 = vector.shape_cast %218 : vector<16xf32> to vector<16x1xf32>
    %cst_54 = arith.constant 3.200000e+01 : f32
    %220 = vector.broadcast %cst_54 : f32 to vector<16x1xf32>
    %221 = arith.divf %219, %220 : vector<16x1xf32>
    %222 = vector.broadcast %221 : vector<16x1xf32> to vector<16x32xf32>
    %223 = arith.subf %213, %222 : vector<16x32xf32>
    %224 = arith.mulf %223, %223 : vector<16x32xf32>
    %cst_55 = arith.constant dense<0.000000e+00> : vector<16xf32>
    %225 = vector.multi_reduction <add>, %224, %cst_55 [1] : vector<16x32xf32> to vector<16xf32>
    %226 = vector.shape_cast %225 : vector<16xf32> to vector<16x1xf32>
    %cst_56 = arith.constant 3.200000e+01 : f32
    %227 = vector.broadcast %cst_56 : f32 to vector<16x1xf32>
    %228 = arith.divf %226, %227 : vector<16x1xf32>
    %229 = vector.broadcast %221 : vector<16x1xf32> to vector<16x32xf32>
    %230 = arith.subf %213, %229 : vector<16x32xf32>
    %cst_57 = arith.constant 9.99999974E-6 : f32
    %231 = vector.broadcast %cst_57 : f32 to vector<16x1xf32>
    %232 = arith.addf %228, %231 : vector<16x1xf32>
    %233 = math.rsqrt %232 : vector<16x1xf32>
    %234 = vector.broadcast %233 : vector<16x1xf32> to vector<16x32xf32>
    %235 = arith.mulf %230, %234 : vector<16x32xf32>
    %236 = vector.broadcast %215 : vector<1x32xf32> to vector<16x32xf32>
    %237 = arith.mulf %235, %236 : vector<16x32xf32>
    %238 = vector.broadcast %217 : vector<1x32xf32> to vector<16x32xf32>
    %239 = arith.addf %237, %238 : vector<16x32xf32>
    %c0_58 = arith.constant 0 : index
    %c0_59 = arith.constant 0 : index
    %c0_60 = arith.constant 0 : index
    %240 = vector.load %arg15[%c0_58, %c0_59, %c0_60] : memref<2x32x64xf32, #tpu.memory_space<vmem>>, vector<1x32x64xf32>
    %241 = vector.shape_cast %240 : vector<1x32x64xf32> to vector<32x64xf32>
    %cst_61 = arith.constant dense<0.000000e+00> : vector<16x64xf32>
    %242 = tpu.matmul %239, %241, %cst_61 {dimension_numbers = #tpu.dot_dimension_numbers<[1], [0], [0], [1], [0, 0, 1, 1], [], []>} : vector<16x32xf32>, vector<32x64xf32>, vector<16x64xf32> -> vector<16x64xf32>
    %243 = vector.extract_strided_slice %242 {offsets = [0, 0], sizes = [16, 32], strides = [1, 1]} : vector<16x64xf32> to vector<16x32xf32>
    %244 = vector.extract_strided_slice %242 {offsets = [0, 32], sizes = [16, 32], strides = [1, 1]} : vector<16x64xf32> to vector<16x32xf32>
    %245 = arith.mulf %244, %244 : vector<16x32xf32>
    %246 = arith.mulf %244, %245 : vector<16x32xf32>
    %cst_62 = arith.constant 4.471500e-02 : f32
    %247 = vector.broadcast %cst_62 : f32 to vector<16x32xf32>
    %248 = arith.mulf %247, %246 : vector<16x32xf32>
    %249 = arith.addf %244, %248 : vector<16x32xf32>
    %cst_63 = arith.constant 0.797884583 : f32
    %250 = vector.broadcast %cst_63 : f32 to vector<16x32xf32>
    %251 = arith.mulf %250, %249 : vector<16x32xf32>
    %252 = math.tanh %251 : vector<16x32xf32>
    %cst_64 = arith.constant 1.000000e+00 : f32
    %253 = vector.broadcast %cst_64 : f32 to vector<16x32xf32>
    %254 = arith.addf %253, %252 : vector<16x32xf32>
    %cst_65 = arith.constant 5.000000e-01 : f32
    %255 = vector.broadcast %cst_65 : f32 to vector<16x32xf32>
    %256 = arith.mulf %255, %254 : vector<16x32xf32>
    %257 = arith.mulf %244, %256 : vector<16x32xf32>
    %258 = arith.mulf %243, %257 : vector<16x32xf32>
    %c0_66 = arith.constant 0 : index
    %c0_67 = arith.constant 0 : index
    %c0_68 = arith.constant 0 : index
    %259 = vector.load %arg16[%c0_66, %c0_67, %c0_68] : memref<2x32x32xf32, #tpu.memory_space<vmem>>, vector<1x32x32xf32>
    %260 = vector.shape_cast %259 : vector<1x32x32xf32> to vector<32x32xf32>
    %cst_69 = arith.constant dense<0.000000e+00> : vector<16x32xf32>
    %261 = tpu.matmul %258, %260, %cst_69 {dimension_numbers = #tpu.dot_dimension_numbers<[1], [0], [0], [1], [0, 0, 1, 1], [], []>} : vector<16x32xf32>, vector<32x32xf32>, vector<16x32xf32> -> vector<16x32xf32>
    %262 = arith.addf %261, %239 : vector<16x32xf32>
    %c1 = arith.constant 1 : index
    %c0_70 = arith.constant 0 : index
    %c0_71 = arith.constant 0 : index
    %263 = vector.load %arg5[%c1, %c0_70, %c0_71] : memref<2x1x32xf32, #tpu.memory_space<vmem>>, vector<1x1x32xf32>
    %264 = vector.shape_cast %263 : vector<1x1x32xf32> to vector<1x32xf32>
    %c1_72 = arith.constant 1 : index
    %c0_73 = arith.constant 0 : index
    %c0_74 = arith.constant 0 : index
    %265 = vector.load %arg6[%c1_72, %c0_73, %c0_74] : memref<2x1x32xf32, #tpu.memory_space<vmem>>, vector<1x1x32xf32>
    %266 = vector.shape_cast %265 : vector<1x1x32xf32> to vector<1x32xf32>
    %cst_75 = arith.constant dense<0.000000e+00> : vector<16xf32>
    %267 = vector.multi_reduction <add>, %262, %cst_75 [1] : vector<16x32xf32> to vector<16xf32>
    %268 = vector.shape_cast %267 : vector<16xf32> to vector<16x1xf32>
    %cst_76 = arith.constant 3.200000e+01 : f32
    %269 = vector.broadcast %cst_76 : f32 to vector<16x1xf32>
    %270 = arith.divf %268, %269 : vector<16x1xf32>
    %271 = vector.broadcast %270 : vector<16x1xf32> to vector<16x32xf32>
    %272 = arith.subf %262, %271 : vector<16x32xf32>
    %273 = arith.mulf %272, %272 : vector<16x32xf32>
    %cst_77 = arith.constant dense<0.000000e+00> : vector<16xf32>
    %274 = vector.multi_reduction <add>, %273, %cst_77 [1] : vector<16x32xf32> to vector<16xf32>
    %275 = vector.shape_cast %274 : vector<16xf32> to vector<16x1xf32>
    %cst_78 = arith.constant 3.200000e+01 : f32
    %276 = vector.broadcast %cst_78 : f32 to vector<16x1xf32>
    %277 = arith.divf %275, %276 : vector<16x1xf32>
    %278 = vector.broadcast %270 : vector<16x1xf32> to vector<16x32xf32>
    %279 = arith.subf %262, %278 : vector<16x32xf32>
    %cst_79 = arith.constant 9.99999974E-6 : f32
    %280 = vector.broadcast %cst_79 : f32 to vector<16x1xf32>
    %281 = arith.addf %277, %280 : vector<16x1xf32>
    %282 = math.rsqrt %281 : vector<16x1xf32>
    %283 = vector.broadcast %282 : vector<16x1xf32> to vector<16x32xf32>
    %284 = arith.mulf %279, %283 : vector<16x32xf32>
    %285 = vector.broadcast %264 : vector<1x32xf32> to vector<16x32xf32>
    %286 = arith.mulf %284, %285 : vector<16x32xf32>
    %287 = vector.broadcast %266 : vector<1x32xf32> to vector<16x32xf32>
    %288 = arith.addf %286, %287 : vector<16x32xf32>
    %c1_80 = arith.constant 1 : index
    %c0_81 = arith.constant 0 : index
    %c0_82 = arith.constant 0 : index
    %289 = vector.load %arg10[%c1_80, %c0_81, %c0_82] : memref<2x32x64xf32, #tpu.memory_space<vmem>>, vector<1x32x64xf32>
    %290 = vector.shape_cast %289 : vector<1x32x64xf32> to vector<32x64xf32>
    %cst_83 = arith.constant dense<0.000000e+00> : vector<16x64xf32>
    %291 = tpu.matmul %288, %290, %cst_83 {dimension_numbers = #tpu.dot_dimension_numbers<[1], [0], [0], [1], [0, 0, 1, 1], [], []>} : vector<16x32xf32>, vector<32x64xf32>, vector<16x64xf32> -> vector<16x64xf32>
    %292 = vector.extract_strided_slice %291 {offsets = [0, 0], sizes = [16, 32], strides = [1, 1]} : vector<16x64xf32> to vector<16x32xf32>
    %293 = vector.extract_strided_slice %291 {offsets = [0, 32], sizes = [16, 32], strides = [1, 1]} : vector<16x64xf32> to vector<16x32xf32>
    %c1_84 = arith.constant 1 : index
    %c0_85 = arith.constant 0 : index
    %c0_86 = arith.constant 0 : index
    %294 = vector.load %arg9[%c1_84, %c0_85, %c0_86] : memref<2x1x32xf32, #tpu.memory_space<vmem>>, vector<1x1x32xf32>
    %295 = vector.shape_cast %294 : vector<1x1x32xf32> to vector<1x32xf32>
    %296 = math.exp %295 : vector<1x32xf32>
    %297 = vector.broadcast %1 : vector<16x1xf32> to vector<16x32xf32>
    %298 = vector.broadcast %296 : vector<1x32xf32> to vector<16x32xf32>
    %299 = arith.mulf %297, %298 : vector<16x32xf32>
    %c1_87 = arith.constant 1 : index
    %c0_88 = arith.constant 0 : index
    %c0_89 = arith.constant 0 : index
    %300 = vector.load %arg7[%c1_87, %c0_88, %c0_89] : memref<2x1x32xf32, #tpu.memory_space<vmem>>, vector<1x1x32xf32>
    %301 = vector.shape_cast %300 : vector<1x1x32xf32> to vector<1x32xf32>
    %c1_90 = arith.constant 1 : index
    %c0_91 = arith.constant 0 : index
    %c0_92 = arith.constant 0 : index
    %302 = vector.load %arg8[%c1_90, %c0_91, %c0_92] : memref<2x1x32xf32, #tpu.memory_space<vmem>>, vector<1x1x32xf32>
    %303 = vector.shape_cast %302 : vector<1x1x32xf32> to vector<1x32xf32>
    %304 = vector.broadcast %301 : vector<1x32xf32> to vector<16x32xf32>
    %305 = arith.mulf %304, %299 : vector<16x32xf32>
    %306 = math.exp %305 : vector<16x32xf32>
    %307 = vector.broadcast %303 : vector<1x32xf32> to vector<16x32xf32>
    %308 = arith.mulf %307, %299 : vector<16x32xf32>
    %309 = math.cos %308 : vector<16x32xf32>
    %310 = arith.mulf %306, %309 : vector<16x32xf32>
    %311 = math.sin %308 : vector<16x32xf32>
    %312 = arith.mulf %306, %311 : vector<16x32xf32>
    %313 = arith.mulf %301, %301 : vector<1x32xf32>
    %314 = arith.mulf %303, %303 : vector<1x32xf32>
    %315 = arith.addf %313, %314 : vector<1x32xf32>
    %316 = arith.divf %301, %315 : vector<1x32xf32>
    %cst_93 = arith.constant 0.000000e+00 : f32
    %317 = vector.broadcast %cst_93 : f32 to vector<1x32xf32>
    %318 = arith.subf %317, %303 : vector<1x32xf32>
    %319 = arith.divf %318, %315 : vector<1x32xf32>
    %cst_94 = arith.constant 1.000000e+00 : f32
    %320 = vector.broadcast %cst_94 : f32 to vector<16x32xf32>
    %321 = arith.subf %310, %320 : vector<16x32xf32>
    %322 = vector.broadcast %316 : vector<1x32xf32> to vector<16x32xf32>
    %323 = arith.mulf %321, %322 : vector<16x32xf32>
    %324 = vector.broadcast %319 : vector<1x32xf32> to vector<16x32xf32>
    %325 = arith.mulf %312, %324 : vector<16x32xf32>
    %326 = arith.subf %323, %325 : vector<16x32xf32>
    %327 = vector.broadcast %319 : vector<1x32xf32> to vector<16x32xf32>
    %328 = arith.mulf %321, %327 : vector<16x32xf32>
    %329 = vector.broadcast %316 : vector<1x32xf32> to vector<16x32xf32>
    %330 = arith.mulf %312, %329 : vector<16x32xf32>
    %331 = arith.addf %328, %330 : vector<16x32xf32>
    %332 = arith.mulf %326, %292 : vector<16x32xf32>
    %333 = arith.mulf %331, %293 : vector<16x32xf32>
    %334 = arith.subf %332, %333 : vector<16x32xf32>
    %335 = arith.mulf %326, %293 : vector<16x32xf32>
    %336 = arith.mulf %331, %292 : vector<16x32xf32>
    %337 = arith.addf %335, %336 : vector<16x32xf32>
    %cst_95 = arith.constant 0.000000e+00 : f32
    %338 = vector.broadcast %cst_95 : f32 to vector<2x32xf32>
    %cst_96 = arith.constant 0.000000e+00 : f32
    %339 = vector.broadcast %cst_96 : f32 to vector<2x32xf32>
    %340 = vector.extract_strided_slice %310 {offsets = [0, 0], sizes = [2, 32], strides = [1, 1]} : vector<16x32xf32> to vector<2x32xf32>
    %341 = vector.extract_strided_slice %312 {offsets = [0, 0], sizes = [2, 32], strides = [1, 1]} : vector<16x32xf32> to vector<2x32xf32>
    %342 = arith.mulf %340, %338 : vector<2x32xf32>
    %343 = arith.mulf %341, %339 : vector<2x32xf32>
    %344 = arith.subf %342, %343 : vector<2x32xf32>
    %345 = vector.extract_strided_slice %334 {offsets = [0, 0], sizes = [2, 32], strides = [1, 1]} : vector<16x32xf32> to vector<2x32xf32>
    %346 = arith.addf %344, %345 : vector<2x32xf32>
    %347 = arith.mulf %340, %339 : vector<2x32xf32>
    %348 = arith.mulf %341, %338 : vector<2x32xf32>
    %349 = arith.addf %347, %348 : vector<2x32xf32>
    %350 = vector.extract_strided_slice %337 {offsets = [0, 0], sizes = [2, 32], strides = [1, 1]} : vector<16x32xf32> to vector<2x32xf32>
    %351 = arith.addf %349, %350 : vector<2x32xf32>
    %352 = tpu.concatenate %346, %351 in 1 : vector<2x32xf32>, vector<2x32xf32> -> vector<2x64xf32>
    %353 = vector.extract_strided_slice %310 {offsets = [2, 0], sizes = [2, 32], strides = [1, 1]} : vector<16x32xf32> to vector<2x32xf32>
    %354 = vector.extract_strided_slice %312 {offsets = [2, 0], sizes = [2, 32], strides = [1, 1]} : vector<16x32xf32> to vector<2x32xf32>
    %355 = arith.mulf %353, %346 : vector<2x32xf32>
    %356 = arith.mulf %354, %351 : vector<2x32xf32>
    %357 = arith.subf %355, %356 : vector<2x32xf32>
    %358 = vector.extract_strided_slice %334 {offsets = [2, 0], sizes = [2, 32], strides = [1, 1]} : vector<16x32xf32> to vector<2x32xf32>
    %359 = arith.addf %357, %358 : vector<2x32xf32>
    %360 = arith.mulf %353, %351 : vector<2x32xf32>
    %361 = arith.mulf %354, %346 : vector<2x32xf32>
    %362 = arith.addf %360, %361 : vector<2x32xf32>
    %363 = vector.extract_strided_slice %337 {offsets = [2, 0], sizes = [2, 32], strides = [1, 1]} : vector<16x32xf32> to vector<2x32xf32>
    %364 = arith.addf %362, %363 : vector<2x32xf32>
    %365 = tpu.concatenate %359, %364 in 1 : vector<2x32xf32>, vector<2x32xf32> -> vector<2x64xf32>
    %366 = vector.extract_strided_slice %310 {offsets = [4, 0], sizes = [2, 32], strides = [1, 1]} : vector<16x32xf32> to vector<2x32xf32>
    %367 = vector.extract_strided_slice %312 {offsets = [4, 0], sizes = [2, 32], strides = [1, 1]} : vector<16x32xf32> to vector<2x32xf32>
    %368 = arith.mulf %366, %359 : vector<2x32xf32>
    %369 = arith.mulf %367, %364 : vector<2x32xf32>
    %370 = arith.subf %368, %369 : vector<2x32xf32>
    %371 = vector.extract_strided_slice %334 {offsets = [4, 0], sizes = [2, 32], strides = [1, 1]} : vector<16x32xf32> to vector<2x32xf32>
    %372 = arith.addf %370, %371 : vector<2x32xf32>
    %373 = arith.mulf %366, %364 : vector<2x32xf32>
    %374 = arith.mulf %367, %359 : vector<2x32xf32>
    %375 = arith.addf %373, %374 : vector<2x32xf32>
    %376 = vector.extract_strided_slice %337 {offsets = [4, 0], sizes = [2, 32], strides = [1, 1]} : vector<16x32xf32> to vector<2x32xf32>
    %377 = arith.addf %375, %376 : vector<2x32xf32>
    %378 = tpu.concatenate %372, %377 in 1 : vector<2x32xf32>, vector<2x32xf32> -> vector<2x64xf32>
    %379 = vector.extract_strided_slice %310 {offsets = [6, 0], sizes = [2, 32], strides = [1, 1]} : vector<16x32xf32> to vector<2x32xf32>
    %380 = vector.extract_strided_slice %312 {offsets = [6, 0], sizes = [2, 32], strides = [1, 1]} : vector<16x32xf32> to vector<2x32xf32>
    %381 = arith.mulf %379, %372 : vector<2x32xf32>
    %382 = arith.mulf %380, %377 : vector<2x32xf32>
    %383 = arith.subf %381, %382 : vector<2x32xf32>
    %384 = vector.extract_strided_slice %334 {offsets = [6, 0], sizes = [2, 32], strides = [1, 1]} : vector<16x32xf32> to vector<2x32xf32>
    %385 = arith.addf %383, %384 : vector<2x32xf32>
    %386 = arith.mulf %379, %377 : vector<2x32xf32>
    %387 = arith.mulf %380, %372 : vector<2x32xf32>
    %388 = arith.addf %386, %387 : vector<2x32xf32>
    %389 = vector.extract_strided_slice %337 {offsets = [6, 0], sizes = [2, 32], strides = [1, 1]} : vector<16x32xf32> to vector<2x32xf32>
    %390 = arith.addf %388, %389 : vector<2x32xf32>
    %391 = tpu.concatenate %385, %390 in 1 : vector<2x32xf32>, vector<2x32xf32> -> vector<2x64xf32>
    %392 = vector.extract_strided_slice %310 {offsets = [8, 0], sizes = [2, 32], strides = [1, 1]} : vector<16x32xf32> to vector<2x32xf32>
    %393 = vector.extract_strided_slice %312 {offsets = [8, 0], sizes = [2, 32], strides = [1, 1]} : vector<16x32xf32> to vector<2x32xf32>
    %394 = arith.mulf %392, %385 : vector<2x32xf32>
    %395 = arith.mulf %393, %390 : vector<2x32xf32>
    %396 = arith.subf %394, %395 : vector<2x32xf32>
    %397 = vector.extract_strided_slice %334 {offsets = [8, 0], sizes = [2, 32], strides = [1, 1]} : vector<16x32xf32> to vector<2x32xf32>
    %398 = arith.addf %396, %397 : vector<2x32xf32>
    %399 = arith.mulf %392, %390 : vector<2x32xf32>
    %400 = arith.mulf %393, %385 : vector<2x32xf32>
    %401 = arith.addf %399, %400 : vector<2x32xf32>
    %402 = vector.extract_strided_slice %337 {offsets = [8, 0], sizes = [2, 32], strides = [1, 1]} : vector<16x32xf32> to vector<2x32xf32>
    %403 = arith.addf %401, %402 : vector<2x32xf32>
    %404 = tpu.concatenate %398, %403 in 1 : vector<2x32xf32>, vector<2x32xf32> -> vector<2x64xf32>
    %405 = vector.extract_strided_slice %310 {offsets = [10, 0], sizes = [2, 32], strides = [1, 1]} : vector<16x32xf32> to vector<2x32xf32>
    %406 = vector.extract_strided_slice %312 {offsets = [10, 0], sizes = [2, 32], strides = [1, 1]} : vector<16x32xf32> to vector<2x32xf32>
    %407 = arith.mulf %405, %398 : vector<2x32xf32>
    %408 = arith.mulf %406, %403 : vector<2x32xf32>
    %409 = arith.subf %407, %408 : vector<2x32xf32>
    %410 = vector.extract_strided_slice %334 {offsets = [10, 0], sizes = [2, 32], strides = [1, 1]} : vector<16x32xf32> to vector<2x32xf32>
    %411 = arith.addf %409, %410 : vector<2x32xf32>
    %412 = arith.mulf %405, %403 : vector<2x32xf32>
    %413 = arith.mulf %406, %398 : vector<2x32xf32>
    %414 = arith.addf %412, %413 : vector<2x32xf32>
    %415 = vector.extract_strided_slice %337 {offsets = [10, 0], sizes = [2, 32], strides = [1, 1]} : vector<16x32xf32> to vector<2x32xf32>
    %416 = arith.addf %414, %415 : vector<2x32xf32>
    %417 = tpu.concatenate %411, %416 in 1 : vector<2x32xf32>, vector<2x32xf32> -> vector<2x64xf32>
    %418 = vector.extract_strided_slice %310 {offsets = [12, 0], sizes = [2, 32], strides = [1, 1]} : vector<16x32xf32> to vector<2x32xf32>
    %419 = vector.extract_strided_slice %312 {offsets = [12, 0], sizes = [2, 32], strides = [1, 1]} : vector<16x32xf32> to vector<2x32xf32>
    %420 = arith.mulf %418, %411 : vector<2x32xf32>
    %421 = arith.mulf %419, %416 : vector<2x32xf32>
    %422 = arith.subf %420, %421 : vector<2x32xf32>
    %423 = vector.extract_strided_slice %334 {offsets = [12, 0], sizes = [2, 32], strides = [1, 1]} : vector<16x32xf32> to vector<2x32xf32>
    %424 = arith.addf %422, %423 : vector<2x32xf32>
    %425 = arith.mulf %418, %416 : vector<2x32xf32>
    %426 = arith.mulf %419, %411 : vector<2x32xf32>
    %427 = arith.addf %425, %426 : vector<2x32xf32>
    %428 = vector.extract_strided_slice %337 {offsets = [12, 0], sizes = [2, 32], strides = [1, 1]} : vector<16x32xf32> to vector<2x32xf32>
    %429 = arith.addf %427, %428 : vector<2x32xf32>
    %430 = tpu.concatenate %424, %429 in 1 : vector<2x32xf32>, vector<2x32xf32> -> vector<2x64xf32>
    %431 = vector.extract_strided_slice %310 {offsets = [14, 0], sizes = [2, 32], strides = [1, 1]} : vector<16x32xf32> to vector<2x32xf32>
    %432 = vector.extract_strided_slice %312 {offsets = [14, 0], sizes = [2, 32], strides = [1, 1]} : vector<16x32xf32> to vector<2x32xf32>
    %433 = arith.mulf %431, %424 : vector<2x32xf32>
    %434 = arith.mulf %432, %429 : vector<2x32xf32>
    %435 = arith.subf %433, %434 : vector<2x32xf32>
    %436 = vector.extract_strided_slice %334 {offsets = [14, 0], sizes = [2, 32], strides = [1, 1]} : vector<16x32xf32> to vector<2x32xf32>
    %437 = arith.addf %435, %436 : vector<2x32xf32>
    %438 = arith.mulf %431, %429 : vector<2x32xf32>
    %439 = arith.mulf %432, %424 : vector<2x32xf32>
    %440 = arith.addf %438, %439 : vector<2x32xf32>
    %441 = vector.extract_strided_slice %337 {offsets = [14, 0], sizes = [2, 32], strides = [1, 1]} : vector<16x32xf32> to vector<2x32xf32>
    %442 = arith.addf %440, %441 : vector<2x32xf32>
    %443 = tpu.concatenate %437, %442 in 1 : vector<2x32xf32>, vector<2x32xf32> -> vector<2x64xf32>
    %444 = tpu.concatenate %352, %365, %378, %391, %404, %417, %430, %443 in 0 : vector<2x64xf32>, vector<2x64xf32>, vector<2x64xf32>, vector<2x64xf32>, vector<2x64xf32>, vector<2x64xf32>, vector<2x64xf32>, vector<2x64xf32> -> vector<16x64xf32>
    %c1_97 = arith.constant 1 : index
    %c0_98 = arith.constant 0 : index
    %c0_99 = arith.constant 0 : index
    %445 = vector.load %arg11[%c1_97, %c0_98, %c0_99] : memref<2x64x32xf32, #tpu.memory_space<vmem>>, vector<1x64x32xf32>
    %446 = vector.shape_cast %445 : vector<1x64x32xf32> to vector<64x32xf32>
    %cst_100 = arith.constant dense<0.000000e+00> : vector<16x32xf32>
    %447 = tpu.matmul %444, %446, %cst_100 {dimension_numbers = #tpu.dot_dimension_numbers<[1], [0], [0], [1], [0, 0, 1, 1], [], []>} : vector<16x64xf32>, vector<64x32xf32>, vector<16x32xf32> -> vector<16x32xf32>
    %cst_101 = arith.constant 2.000000e+00 : f32
    %448 = vector.broadcast %cst_101 : f32 to vector<16x32xf32>
    %449 = arith.mulf %448, %447 : vector<16x32xf32>
    %c1_102 = arith.constant 1 : index
    %c0_103 = arith.constant 0 : index
    %c0_104 = arith.constant 0 : index
    %450 = vector.load %arg12[%c1_102, %c0_103, %c0_104] : memref<2x1x32xf32, #tpu.memory_space<vmem>>, vector<1x1x32xf32>
    %451 = vector.shape_cast %450 : vector<1x1x32xf32> to vector<1x32xf32>
    %452 = vector.broadcast %451 : vector<1x32xf32> to vector<16x32xf32>
    %453 = arith.mulf %452, %288 : vector<16x32xf32>
    %454 = arith.addf %449, %453 : vector<16x32xf32>
    %455 = arith.mulf %454, %454 : vector<16x32xf32>
    %456 = arith.mulf %454, %455 : vector<16x32xf32>
    %cst_105 = arith.constant 4.471500e-02 : f32
    %457 = vector.broadcast %cst_105 : f32 to vector<16x32xf32>
    %458 = arith.mulf %457, %456 : vector<16x32xf32>
    %459 = arith.addf %454, %458 : vector<16x32xf32>
    %cst_106 = arith.constant 0.797884583 : f32
    %460 = vector.broadcast %cst_106 : f32 to vector<16x32xf32>
    %461 = arith.mulf %460, %459 : vector<16x32xf32>
    %462 = math.tanh %461 : vector<16x32xf32>
    %cst_107 = arith.constant 1.000000e+00 : f32
    %463 = vector.broadcast %cst_107 : f32 to vector<16x32xf32>
    %464 = arith.addf %463, %462 : vector<16x32xf32>
    %cst_108 = arith.constant 5.000000e-01 : f32
    %465 = vector.broadcast %cst_108 : f32 to vector<16x32xf32>
    %466 = arith.mulf %465, %464 : vector<16x32xf32>
    %467 = arith.mulf %454, %466 : vector<16x32xf32>
    %468 = arith.addf %467, %288 : vector<16x32xf32>
    %c1_109 = arith.constant 1 : index
    %c0_110 = arith.constant 0 : index
    %c0_111 = arith.constant 0 : index
    %469 = vector.load %arg13[%c1_109, %c0_110, %c0_111] : memref<2x1x32xf32, #tpu.memory_space<vmem>>, vector<1x1x32xf32>
    %470 = vector.shape_cast %469 : vector<1x1x32xf32> to vector<1x32xf32>
    %c1_112 = arith.constant 1 : index
    %c0_113 = arith.constant 0 : index
    %c0_114 = arith.constant 0 : index
    %471 = vector.load %arg14[%c1_112, %c0_113, %c0_114] : memref<2x1x32xf32, #tpu.memory_space<vmem>>, vector<1x1x32xf32>
    %472 = vector.shape_cast %471 : vector<1x1x32xf32> to vector<1x32xf32>
    %cst_115 = arith.constant dense<0.000000e+00> : vector<16xf32>
    %473 = vector.multi_reduction <add>, %468, %cst_115 [1] : vector<16x32xf32> to vector<16xf32>
    %474 = vector.shape_cast %473 : vector<16xf32> to vector<16x1xf32>
    %cst_116 = arith.constant 3.200000e+01 : f32
    %475 = vector.broadcast %cst_116 : f32 to vector<16x1xf32>
    %476 = arith.divf %474, %475 : vector<16x1xf32>
    %477 = vector.broadcast %476 : vector<16x1xf32> to vector<16x32xf32>
    %478 = arith.subf %468, %477 : vector<16x32xf32>
    %479 = arith.mulf %478, %478 : vector<16x32xf32>
    %cst_117 = arith.constant dense<0.000000e+00> : vector<16xf32>
    %480 = vector.multi_reduction <add>, %479, %cst_117 [1] : vector<16x32xf32> to vector<16xf32>
    %481 = vector.shape_cast %480 : vector<16xf32> to vector<16x1xf32>
    %cst_118 = arith.constant 3.200000e+01 : f32
    %482 = vector.broadcast %cst_118 : f32 to vector<16x1xf32>
    %483 = arith.divf %481, %482 : vector<16x1xf32>
    %484 = vector.broadcast %476 : vector<16x1xf32> to vector<16x32xf32>
    %485 = arith.subf %468, %484 : vector<16x32xf32>
    %cst_119 = arith.constant 9.99999974E-6 : f32
    %486 = vector.broadcast %cst_119 : f32 to vector<16x1xf32>
    %487 = arith.addf %483, %486 : vector<16x1xf32>
    %488 = math.rsqrt %487 : vector<16x1xf32>
    %489 = vector.broadcast %488 : vector<16x1xf32> to vector<16x32xf32>
    %490 = arith.mulf %485, %489 : vector<16x32xf32>
    %491 = vector.broadcast %470 : vector<1x32xf32> to vector<16x32xf32>
    %492 = arith.mulf %490, %491 : vector<16x32xf32>
    %493 = vector.broadcast %472 : vector<1x32xf32> to vector<16x32xf32>
    %494 = arith.addf %492, %493 : vector<16x32xf32>
    %c1_120 = arith.constant 1 : index
    %c0_121 = arith.constant 0 : index
    %c0_122 = arith.constant 0 : index
    %495 = vector.load %arg15[%c1_120, %c0_121, %c0_122] : memref<2x32x64xf32, #tpu.memory_space<vmem>>, vector<1x32x64xf32>
    %496 = vector.shape_cast %495 : vector<1x32x64xf32> to vector<32x64xf32>
    %cst_123 = arith.constant dense<0.000000e+00> : vector<16x64xf32>
    %497 = tpu.matmul %494, %496, %cst_123 {dimension_numbers = #tpu.dot_dimension_numbers<[1], [0], [0], [1], [0, 0, 1, 1], [], []>} : vector<16x32xf32>, vector<32x64xf32>, vector<16x64xf32> -> vector<16x64xf32>
    %498 = vector.extract_strided_slice %497 {offsets = [0, 0], sizes = [16, 32], strides = [1, 1]} : vector<16x64xf32> to vector<16x32xf32>
    %499 = vector.extract_strided_slice %497 {offsets = [0, 32], sizes = [16, 32], strides = [1, 1]} : vector<16x64xf32> to vector<16x32xf32>
    %500 = arith.mulf %499, %499 : vector<16x32xf32>
    %501 = arith.mulf %499, %500 : vector<16x32xf32>
    %cst_124 = arith.constant 4.471500e-02 : f32
    %502 = vector.broadcast %cst_124 : f32 to vector<16x32xf32>
    %503 = arith.mulf %502, %501 : vector<16x32xf32>
    %504 = arith.addf %499, %503 : vector<16x32xf32>
    %cst_125 = arith.constant 0.797884583 : f32
    %505 = vector.broadcast %cst_125 : f32 to vector<16x32xf32>
    %506 = arith.mulf %505, %504 : vector<16x32xf32>
    %507 = math.tanh %506 : vector<16x32xf32>
    %cst_126 = arith.constant 1.000000e+00 : f32
    %508 = vector.broadcast %cst_126 : f32 to vector<16x32xf32>
    %509 = arith.addf %508, %507 : vector<16x32xf32>
    %cst_127 = arith.constant 5.000000e-01 : f32
    %510 = vector.broadcast %cst_127 : f32 to vector<16x32xf32>
    %511 = arith.mulf %510, %509 : vector<16x32xf32>
    %512 = arith.mulf %499, %511 : vector<16x32xf32>
    %513 = arith.mulf %498, %512 : vector<16x32xf32>
    %c1_128 = arith.constant 1 : index
    %c0_129 = arith.constant 0 : index
    %c0_130 = arith.constant 0 : index
    %514 = vector.load %arg16[%c1_128, %c0_129, %c0_130] : memref<2x32x32xf32, #tpu.memory_space<vmem>>, vector<1x32x32xf32>
    %515 = vector.shape_cast %514 : vector<1x32x32xf32> to vector<32x32xf32>
    %cst_131 = arith.constant dense<0.000000e+00> : vector<16x32xf32>
    %516 = tpu.matmul %513, %515, %cst_131 {dimension_numbers = #tpu.dot_dimension_numbers<[1], [0], [0], [1], [0, 0, 1, 1], [], []>} : vector<16x32xf32>, vector<32x32xf32>, vector<16x32xf32> -> vector<16x32xf32>
    %517 = arith.addf %516, %494 : vector<16x32xf32>
    %c0_132 = arith.constant 0 : index
    %c0_133 = arith.constant 0 : index
    %518 = vector.load %arg17[%c0_132, %c0_133] : memref<32x32xf32, #tpu.memory_space<vmem>>, vector<32x32xf32>
    %cst_134 = arith.constant dense<0.000000e+00> : vector<16x32xf32>
    %519 = tpu.matmul %517, %518, %cst_134 {dimension_numbers = #tpu.dot_dimension_numbers<[1], [0], [0], [1], [0, 0, 1, 1], [], []>} : vector<16x32xf32>, vector<32x32xf32>, vector<16x32xf32> -> vector<16x32xf32>
    %c0_135 = arith.constant 0 : index
    %c0_136 = arith.constant 0 : index
    %520 = vector.load %arg18[%c0_135, %c0_136] : memref<1x32xf32, #tpu.memory_space<vmem>>, vector<1x32xf32>
    %521 = vector.broadcast %520 : vector<1x32xf32> to vector<16x32xf32>
    %522 = arith.addf %519, %521 : vector<16x32xf32>
    %c0_137 = arith.constant 0 : index
    %c0_138 = arith.constant 0 : index
    %523 = vector.load %arg19[%c0_137, %c0_138] : memref<16x32xf32, #tpu.memory_space<vmem>>, vector<16x32xf32>
    tpu.vector_store %arg19[%c0_137, %c0_138], %522 {strides = array<i32>} : memref<16x32xf32, #tpu.memory_space<vmem>>, vector<16x32xf32>,
    return
  }
  func.func @transform_0(%arg0: i32) -> (i32, i32) {
    %c0_i32 = arith.constant 0 : i32
    %c0_i32_0 = arith.constant 0 : i32
    %c0_i32_1 = arith.constant 0 : i32
    return %c0_i32, %c0_i32_0 : i32, i32
  }
  func.func @transform_1(%arg0: i32) -> (i32, i32) {
    %c0_i32 = arith.constant 0 : i32
    %c0_i32_0 = arith.constant 0 : i32
    %c0_i32_1 = arith.constant 0 : i32
    return %c0_i32, %c0_i32_0 : i32, i32
  }
  func.func @transform_2(%arg0: i32) -> (i32, i32) {
    %c0_i32 = arith.constant 0 : i32
    %c0_i32_0 = arith.constant 0 : i32
    %c0_i32_1 = arith.constant 0 : i32
    return %c0_i32, %c0_i32_0 : i32, i32
  }
  func.func @transform_3(%arg0: i32) -> (i32, i32) {
    %c0_i32 = arith.constant 0 : i32
    %c0_i32_0 = arith.constant 0 : i32
    %c0_i32_1 = arith.constant 0 : i32
    return %c0_i32, %c0_i32_0 : i32, i32
  }
  func.func @transform_4(%arg0: i32) -> (i32, i32, i32) {
    %c0_i32 = arith.constant 0 : i32
    %c0_i32_0 = arith.constant 0 : i32
    %c0_i32_1 = arith.constant 0 : i32
    %c0_i32_2 = arith.constant 0 : i32
    return %c0_i32, %c0_i32_0, %c0_i32_1 : i32, i32, i32
  }
  func.func @transform_5(%arg0: i32) -> (i32, i32, i32) {
    %c0_i32 = arith.constant 0 : i32
    %c0_i32_0 = arith.constant 0 : i32
    %c0_i32_1 = arith.constant 0 : i32
    %c0_i32_2 = arith.constant 0 : i32
    return %c0_i32, %c0_i32_0, %c0_i32_1 : i32, i32, i32
  }
  func.func @transform_6(%arg0: i32) -> (i32, i32, i32) {
    %c0_i32 = arith.constant 0 : i32
    %c0_i32_0 = arith.constant 0 : i32
    %c0_i32_1 = arith.constant 0 : i32
    %c0_i32_2 = arith.constant 0 : i32
    return %c0_i32, %c0_i32_0, %c0_i32_1 : i32, i32, i32
  }
  func.func @transform_7(%arg0: i32) -> (i32, i32, i32) {
    %c0_i32 = arith.constant 0 : i32
    %c0_i32_0 = arith.constant 0 : i32
    %c0_i32_1 = arith.constant 0 : i32
    %c0_i32_2 = arith.constant 0 : i32
    return %c0_i32, %c0_i32_0, %c0_i32_1 : i32, i32, i32
  }
  func.func @transform_8(%arg0: i32) -> (i32, i32, i32) {
    %c0_i32 = arith.constant 0 : i32
    %c0_i32_0 = arith.constant 0 : i32
    %c0_i32_1 = arith.constant 0 : i32
    %c0_i32_2 = arith.constant 0 : i32
    return %c0_i32, %c0_i32_0, %c0_i32_1 : i32, i32, i32
  }
  func.func @transform_9(%arg0: i32) -> (i32, i32, i32) {
    %c0_i32 = arith.constant 0 : i32
    %c0_i32_0 = arith.constant 0 : i32
    %c0_i32_1 = arith.constant 0 : i32
    %c0_i32_2 = arith.constant 0 : i32
    return %c0_i32, %c0_i32_0, %c0_i32_1 : i32, i32, i32
  }
  func.func @transform_10(%arg0: i32) -> (i32, i32, i32) {
    %c0_i32 = arith.constant 0 : i32
    %c0_i32_0 = arith.constant 0 : i32
    %c0_i32_1 = arith.constant 0 : i32
    %c0_i32_2 = arith.constant 0 : i32
    return %c0_i32, %c0_i32_0, %c0_i32_1 : i32, i32, i32
  }
  func.func @transform_11(%arg0: i32) -> (i32, i32, i32) {
    %c0_i32 = arith.constant 0 : i32
    %c0_i32_0 = arith.constant 0 : i32
    %c0_i32_1 = arith.constant 0 : i32
    %c0_i32_2 = arith.constant 0 : i32
    return %c0_i32, %c0_i32_0, %c0_i32_1 : i32, i32, i32
  }
  func.func @transform_12(%arg0: i32) -> (i32, i32, i32) {
    %c0_i32 = arith.constant 0 : i32
    %c0_i32_0 = arith.constant 0 : i32
    %c0_i32_1 = arith.constant 0 : i32
    %c0_i32_2 = arith.constant 0 : i32
    return %c0_i32, %c0_i32_0, %c0_i32_1 : i32, i32, i32
  }
  func.func @transform_13(%arg0: i32) -> (i32, i32, i32) {
    %c0_i32 = arith.constant 0 : i32
    %c0_i32_0 = arith.constant 0 : i32
    %c0_i32_1 = arith.constant 0 : i32
    %c0_i32_2 = arith.constant 0 : i32
    return %c0_i32, %c0_i32_0, %c0_i32_1 : i32, i32, i32
  }
  func.func @transform_14(%arg0: i32) -> (i32, i32, i32) {
    %c0_i32 = arith.constant 0 : i32
    %c0_i32_0 = arith.constant 0 : i32
    %c0_i32_1 = arith.constant 0 : i32
    %c0_i32_2 = arith.constant 0 : i32
    return %c0_i32, %c0_i32_0, %c0_i32_1 : i32, i32, i32
  }
  func.func @transform_15(%arg0: i32) -> (i32, i32, i32) {
    %c0_i32 = arith.constant 0 : i32
    %c0_i32_0 = arith.constant 0 : i32
    %c0_i32_1 = arith.constant 0 : i32
    %c0_i32_2 = arith.constant 0 : i32
    return %c0_i32, %c0_i32_0, %c0_i32_1 : i32, i32, i32
  }
  func.func @transform_16(%arg0: i32) -> (i32, i32) {
    %c0_i32 = arith.constant 0 : i32
    %c0_i32_0 = arith.constant 0 : i32
    %c0_i32_1 = arith.constant 0 : i32
    return %c0_i32, %c0_i32_0 : i32, i32
  }
  func.func @transform_17(%arg0: i32) -> (i32, i32) {
    %c0_i32 = arith.constant 0 : i32
    %c0_i32_0 = arith.constant 0 : i32
    %c0_i32_1 = arith.constant 0 : i32
    return %c0_i32, %c0_i32_0 : i32, i32
  }
  func.func @transform_18(%arg0: i32) -> (i32, i32) {
    %c0_i32 = arith.constant 0 : i32
    %c0_i32_0 = arith.constant 0 : i32
    %c0_i32_1 = arith.constant 0 : i32
    return %c0_i32, %c0_i32_0 : i32, i32
  }
}

module attributes {stable_mosaic.version = 11 : i64} {
  func.func @_decoder_kernel(%arg0: i32, %arg1: memref<16x16xf32, #tpu.memory_space<vmem>>, %arg2: memref<24x8xf32, #tpu.memory_space<vmem>>, %arg3: memref<24x1xf32, #tpu.memory_space<vmem>>, %arg4: memref<16x24xf32, #tpu.memory_space<vmem>>, %arg5: memref<1x24xf32, #tpu.memory_space<vmem>>, %arg6: memref<1x24xf32, #tpu.memory_space<vmem>>, %arg7: memref<8x24xf32, #tpu.memory_space<vmem>>, %arg8: memref<24x6xf32, #tpu.memory_space<vmem>>, %arg9: memref<1x6xf32, #tpu.memory_space<vmem>>, %arg10: memref<24x32xf32, #tpu.memory_space<vmem>>, %arg11: memref<1x32xf32, #tpu.memory_space<vmem>>, %arg12: memref<24x6xf32, #tpu.memory_space<vmem>>, %arg13: memref<16x24xf32, #tpu.memory_space<vmem>>, %arg14: memref<24x24xf32, #tpu.memory_space<vmem>>, %arg15: memref<24x32xf32, #tpu.memory_space<vmem>>) attributes {dimension_semantics = [#tpu.dimension_semantics<arbitrary>], iteration_bounds = array<i64: 1>, scalar_prefetch = 0 : i64, scratch_operands = 0 : i64, tpu.core_type = #tpu.core_type<tc>, window_params = [{pipeline_mode = #tpu.pipeline_mode<synchronous>, transform_indices = @transform_0, window_bounds = array<i64: 16, 16>}, {pipeline_mode = #tpu.pipeline_mode<synchronous>, transform_indices = @transform_1, window_bounds = array<i64: 24, 8>}, {pipeline_mode = #tpu.pipeline_mode<synchronous>, transform_indices = @transform_2, window_bounds = array<i64: 24, 1>}, {pipeline_mode = #tpu.pipeline_mode<synchronous>, transform_indices = @transform_3, window_bounds = array<i64: 16, 24>}, {pipeline_mode = #tpu.pipeline_mode<synchronous>, transform_indices = @transform_4, window_bounds = array<i64: 1, 24>}, {pipeline_mode = #tpu.pipeline_mode<synchronous>, transform_indices = @transform_5, window_bounds = array<i64: 1, 24>}, {pipeline_mode = #tpu.pipeline_mode<synchronous>, transform_indices = @transform_6, window_bounds = array<i64: 8, 24>}, {pipeline_mode = #tpu.pipeline_mode<synchronous>, transform_indices = @transform_7, window_bounds = array<i64: 24, 6>}, {pipeline_mode = #tpu.pipeline_mode<synchronous>, transform_indices = @transform_8, window_bounds = array<i64: 1, 6>}, {pipeline_mode = #tpu.pipeline_mode<synchronous>, transform_indices = @transform_9, window_bounds = array<i64: 24, 32>}, {pipeline_mode = #tpu.pipeline_mode<synchronous>, transform_indices = @transform_10, window_bounds = array<i64: 1, 32>}, {pipeline_mode = #tpu.pipeline_mode<synchronous>, transform_indices = @transform_11, window_bounds = array<i64: 24, 6>}, {pipeline_mode = #tpu.pipeline_mode<synchronous>, transform_indices = @transform_12, window_bounds = array<i64: 16, 24>}, {pipeline_mode = #tpu.pipeline_mode<synchronous>, transform_indices = @transform_13, window_bounds = array<i64: 24, 24>}, {pipeline_mode = #tpu.pipeline_mode<synchronous>, transform_indices = @transform_14, window_bounds = array<i64: 24, 32>}]} {
    %c0 = arith.constant 0 : index
    %c0_0 = arith.constant 0 : index
    %0 = vector.load %arg1[%c0, %c0_0] : memref<16x16xf32, #tpu.memory_space<vmem>>, vector<16x16xf32>
    %c0_1 = arith.constant 0 : index
    %c0_2 = arith.constant 0 : index
    %1 = vector.load %arg4[%c0_1, %c0_2] : memref<16x24xf32, #tpu.memory_space<vmem>>, vector<16x24xf32>
    %cst = arith.constant dense<0.000000e+00> : vector<16x24xf32>
    %2 = tpu.matmul %0, %1, %cst {dimension_numbers = #tpu.dot_dimension_numbers<[1], [0], [0], [1], [0, 0, 1, 1], [], []>} : vector<16x16xf32>, vector<16x24xf32>, vector<16x24xf32> -> vector<16x24xf32>
    %c0_3 = arith.constant 0 : index
    %c0_4 = arith.constant 0 : index
    %3 = vector.load %arg5[%c0_3, %c0_4] : memref<1x24xf32, #tpu.memory_space<vmem>>, vector<1x24xf32>
    %4 = vector.broadcast %3 : vector<1x24xf32> to vector<16x24xf32>
    %5 = arith.addf %2, %4 : vector<16x24xf32>
    %6 = math.tanh %5 : vector<16x24xf32>
    %c0_5 = arith.constant 0 : index
    %c0_6 = arith.constant 0 : index
    %7 = vector.load %arg13[%c0_5, %c0_6] : memref<16x24xf32, #tpu.memory_space<vmem>>, vector<16x24xf32>
    tpu.vector_store %arg13[%c0_5, %c0_6], %6 {strides = array<i32>} : memref<16x24xf32, #tpu.memory_space<vmem>>, vector<16x24xf32>,
    %8 = vector.extract_strided_slice %6 {offsets = [14, 0], sizes = [2, 24], strides = [1, 1]} : vector<16x24xf32> to vector<2x24xf32>
    %c0_7 = arith.constant 0 : index
    %c0_8 = arith.constant 0 : index
    %9 = vector.load %arg3[%c0_7, %c0_8] : memref<24x1xf32, #tpu.memory_space<vmem>>, vector<24x1xf32>
    %c0_9 = arith.constant 0 : index
    %c0_10 = arith.constant 0 : index
    %10 = vector.load %arg6[%c0_9, %c0_10] : memref<1x24xf32, #tpu.memory_space<vmem>>, vector<1x24xf32>
    %11 = math.exp %10 : vector<1x24xf32>
    %cst_11 = arith.constant 0.000000e+00 : f32
    %12 = vector.broadcast %cst_11 : f32 to vector<1x24xf32>
    %13 = arith.subf %12, %11 : vector<1x24xf32>
    %14 = vector.broadcast %13 : vector<1x24xf32> to vector<24x24xf32>
    %15 = vector.broadcast %9 : vector<24x1xf32> to vector<24x24xf32>
    %16 = arith.mulf %14, %15 : vector<24x24xf32>
    %17 = math.exp %16 : vector<24x24xf32>
    %c0_12 = arith.constant 0 : index
    %c0_13 = arith.constant 0 : index
    %18 = vector.load %arg2[%c0_12, %c0_13] : memref<24x8xf32, #tpu.memory_space<vmem>>, vector<24x8xf32>
    %c0_14 = arith.constant 0 : index
    %c0_15 = arith.constant 0 : index
    %19 = vector.load %arg7[%c0_14, %c0_15] : memref<8x24xf32, #tpu.memory_space<vmem>>, vector<8x24xf32>
    %cst_16 = arith.constant dense<0.000000e+00> : vector<24x24xf32>
    %20 = tpu.matmul %18, %19, %cst_16 {dimension_numbers = #tpu.dot_dimension_numbers<[1], [0], [0], [1], [0, 0, 1, 1], [], []>} : vector<24x8xf32>, vector<8x24xf32>, vector<24x24xf32> -> vector<24x24xf32>
    %21 = vector.broadcast %9 : vector<24x1xf32> to vector<24x24xf32>
    %22 = arith.mulf %21, %20 : vector<24x24xf32>
    %23 = vector.extract_strided_slice %17 {offsets = [0, 0], sizes = [2, 24], strides = [1, 1]} : vector<24x24xf32> to vector<2x24xf32>
    %24 = arith.mulf %23, %8 : vector<2x24xf32>
    %25 = vector.extract_strided_slice %22 {offsets = [0, 0], sizes = [2, 24], strides = [1, 1]} : vector<24x24xf32> to vector<2x24xf32>
    %26 = arith.addf %24, %25 : vector<2x24xf32>
    %27 = vector.extract_strided_slice %17 {offsets = [2, 0], sizes = [2, 24], strides = [1, 1]} : vector<24x24xf32> to vector<2x24xf32>
    %28 = arith.mulf %27, %26 : vector<2x24xf32>
    %29 = vector.extract_strided_slice %22 {offsets = [2, 0], sizes = [2, 24], strides = [1, 1]} : vector<24x24xf32> to vector<2x24xf32>
    %30 = arith.addf %28, %29 : vector<2x24xf32>
    %31 = vector.extract_strided_slice %17 {offsets = [4, 0], sizes = [2, 24], strides = [1, 1]} : vector<24x24xf32> to vector<2x24xf32>
    %32 = arith.mulf %31, %30 : vector<2x24xf32>
    %33 = vector.extract_strided_slice %22 {offsets = [4, 0], sizes = [2, 24], strides = [1, 1]} : vector<24x24xf32> to vector<2x24xf32>
    %34 = arith.addf %32, %33 : vector<2x24xf32>
    %35 = vector.extract_strided_slice %17 {offsets = [6, 0], sizes = [2, 24], strides = [1, 1]} : vector<24x24xf32> to vector<2x24xf32>
    %36 = arith.mulf %35, %34 : vector<2x24xf32>
    %37 = vector.extract_strided_slice %22 {offsets = [6, 0], sizes = [2, 24], strides = [1, 1]} : vector<24x24xf32> to vector<2x24xf32>
    %38 = arith.addf %36, %37 : vector<2x24xf32>
    %39 = vector.extract_strided_slice %17 {offsets = [8, 0], sizes = [2, 24], strides = [1, 1]} : vector<24x24xf32> to vector<2x24xf32>
    %40 = arith.mulf %39, %38 : vector<2x24xf32>
    %41 = vector.extract_strided_slice %22 {offsets = [8, 0], sizes = [2, 24], strides = [1, 1]} : vector<24x24xf32> to vector<2x24xf32>
    %42 = arith.addf %40, %41 : vector<2x24xf32>
    %43 = vector.extract_strided_slice %17 {offsets = [10, 0], sizes = [2, 24], strides = [1, 1]} : vector<24x24xf32> to vector<2x24xf32>
    %44 = arith.mulf %43, %42 : vector<2x24xf32>
    %45 = vector.extract_strided_slice %22 {offsets = [10, 0], sizes = [2, 24], strides = [1, 1]} : vector<24x24xf32> to vector<2x24xf32>
    %46 = arith.addf %44, %45 : vector<2x24xf32>
    %47 = vector.extract_strided_slice %17 {offsets = [12, 0], sizes = [2, 24], strides = [1, 1]} : vector<24x24xf32> to vector<2x24xf32>
    %48 = arith.mulf %47, %46 : vector<2x24xf32>
    %49 = vector.extract_strided_slice %22 {offsets = [12, 0], sizes = [2, 24], strides = [1, 1]} : vector<24x24xf32> to vector<2x24xf32>
    %50 = arith.addf %48, %49 : vector<2x24xf32>
    %51 = vector.extract_strided_slice %17 {offsets = [14, 0], sizes = [2, 24], strides = [1, 1]} : vector<24x24xf32> to vector<2x24xf32>
    %52 = arith.mulf %51, %50 : vector<2x24xf32>
    %53 = vector.extract_strided_slice %22 {offsets = [14, 0], sizes = [2, 24], strides = [1, 1]} : vector<24x24xf32> to vector<2x24xf32>
    %54 = arith.addf %52, %53 : vector<2x24xf32>
    %55 = vector.extract_strided_slice %17 {offsets = [16, 0], sizes = [2, 24], strides = [1, 1]} : vector<24x24xf32> to vector<2x24xf32>
    %56 = arith.mulf %55, %54 : vector<2x24xf32>
    %57 = vector.extract_strided_slice %22 {offsets = [16, 0], sizes = [2, 24], strides = [1, 1]} : vector<24x24xf32> to vector<2x24xf32>
    %58 = arith.addf %56, %57 : vector<2x24xf32>
    %59 = vector.extract_strided_slice %17 {offsets = [18, 0], sizes = [2, 24], strides = [1, 1]} : vector<24x24xf32> to vector<2x24xf32>
    %60 = arith.mulf %59, %58 : vector<2x24xf32>
    %61 = vector.extract_strided_slice %22 {offsets = [18, 0], sizes = [2, 24], strides = [1, 1]} : vector<24x24xf32> to vector<2x24xf32>
    %62 = arith.addf %60, %61 : vector<2x24xf32>
    %63 = vector.extract_strided_slice %17 {offsets = [20, 0], sizes = [2, 24], strides = [1, 1]} : vector<24x24xf32> to vector<2x24xf32>
    %64 = arith.mulf %63, %62 : vector<2x24xf32>
    %65 = vector.extract_strided_slice %22 {offsets = [20, 0], sizes = [2, 24], strides = [1, 1]} : vector<24x24xf32> to vector<2x24xf32>
    %66 = arith.addf %64, %65 : vector<2x24xf32>
    %67 = vector.extract_strided_slice %17 {offsets = [22, 0], sizes = [2, 24], strides = [1, 1]} : vector<24x24xf32> to vector<2x24xf32>
    %68 = arith.mulf %67, %66 : vector<2x24xf32>
    %69 = vector.extract_strided_slice %22 {offsets = [22, 0], sizes = [2, 24], strides = [1, 1]} : vector<24x24xf32> to vector<2x24xf32>
    %70 = arith.addf %68, %69 : vector<2x24xf32>
    %71 = tpu.concatenate %26, %30, %34, %38, %42, %46, %50, %54, %58, %62, %66, %70 in 0 : vector<2x24xf32>, vector<2x24xf32>, vector<2x24xf32>, vector<2x24xf32>, vector<2x24xf32>, vector<2x24xf32>, vector<2x24xf32>, vector<2x24xf32>, vector<2x24xf32>, vector<2x24xf32>, vector<2x24xf32>, vector<2x24xf32> -> vector<24x24xf32>
    %c0_17 = arith.constant 0 : index
    %c0_18 = arith.constant 0 : index
    %72 = vector.load %arg14[%c0_17, %c0_18] : memref<24x24xf32, #tpu.memory_space<vmem>>, vector<24x24xf32>
    tpu.vector_store %arg14[%c0_17, %c0_18], %71 {strides = array<i32>} : memref<24x24xf32, #tpu.memory_space<vmem>>, vector<24x24xf32>,
    %c0_19 = arith.constant 0 : index
    %c0_20 = arith.constant 0 : index
    %73 = vector.load %arg8[%c0_19, %c0_20] : memref<24x6xf32, #tpu.memory_space<vmem>>, vector<24x6xf32>
    %cst_21 = arith.constant dense<0.000000e+00> : vector<24x6xf32>
    %74 = tpu.matmul %71, %73, %cst_21 {dimension_numbers = #tpu.dot_dimension_numbers<[1], [0], [0], [1], [0, 0, 1, 1], [], []>} : vector<24x24xf32>, vector<24x6xf32>, vector<24x6xf32> -> vector<24x6xf32>
    %c0_22 = arith.constant 0 : index
    %c0_23 = arith.constant 0 : index
    %75 = vector.load %arg9[%c0_22, %c0_23] : memref<1x6xf32, #tpu.memory_space<vmem>>, vector<1x6xf32>
    %76 = vector.broadcast %75 : vector<1x6xf32> to vector<24x6xf32>
    %77 = arith.addf %74, %76 : vector<24x6xf32>
    %78 = math.tanh %77 : vector<24x6xf32>
    %c0_24 = arith.constant 0 : index
    %c0_25 = arith.constant 0 : index
    %79 = vector.load %arg12[%c0_24, %c0_25] : memref<24x6xf32, #tpu.memory_space<vmem>>, vector<24x6xf32>
    tpu.vector_store %arg12[%c0_24, %c0_25], %78 {strides = array<i32>} : memref<24x6xf32, #tpu.memory_space<vmem>>, vector<24x6xf32>,
    %c0_26 = arith.constant 0 : index
    %c0_27 = arith.constant 0 : index
    %80 = vector.load %arg10[%c0_26, %c0_27] : memref<24x32xf32, #tpu.memory_space<vmem>>, vector<24x32xf32>
    %cst_28 = arith.constant dense<0.000000e+00> : vector<24x32xf32>
    %81 = tpu.matmul %71, %80, %cst_28 {dimension_numbers = #tpu.dot_dimension_numbers<[1], [0], [0], [1], [0, 0, 1, 1], [], []>} : vector<24x24xf32>, vector<24x32xf32>, vector<24x32xf32> -> vector<24x32xf32>
    %c0_29 = arith.constant 0 : index
    %c0_30 = arith.constant 0 : index
    %82 = vector.load %arg11[%c0_29, %c0_30] : memref<1x32xf32, #tpu.memory_space<vmem>>, vector<1x32xf32>
    %83 = vector.broadcast %82 : vector<1x32xf32> to vector<24x32xf32>
    %84 = arith.addf %81, %83 : vector<24x32xf32>
    %c0_31 = arith.constant 0 : index
    %c0_32 = arith.constant 0 : index
    %85 = vector.load %arg15[%c0_31, %c0_32] : memref<24x32xf32, #tpu.memory_space<vmem>>, vector<24x32xf32>
    tpu.vector_store %arg15[%c0_31, %c0_32], %84 {strides = array<i32>} : memref<24x32xf32, #tpu.memory_space<vmem>>, vector<24x32xf32>,
    return
  }
  func.func @transform_0(%arg0: i32) -> (i32, i32) {
    %c0_i32 = arith.constant 0 : i32
    %c0_i32_0 = arith.constant 0 : i32
    %c0_i32_1 = arith.constant 0 : i32
    return %c0_i32, %c0_i32_0 : i32, i32
  }
  func.func @transform_1(%arg0: i32) -> (i32, i32) {
    %c0_i32 = arith.constant 0 : i32
    %c0_i32_0 = arith.constant 0 : i32
    %c0_i32_1 = arith.constant 0 : i32
    return %c0_i32, %c0_i32_0 : i32, i32
  }
  func.func @transform_2(%arg0: i32) -> (i32, i32) {
    %c0_i32 = arith.constant 0 : i32
    %c0_i32_0 = arith.constant 0 : i32
    %c0_i32_1 = arith.constant 0 : i32
    return %c0_i32, %c0_i32_0 : i32, i32
  }
  func.func @transform_3(%arg0: i32) -> (i32, i32) {
    %c0_i32 = arith.constant 0 : i32
    %c0_i32_0 = arith.constant 0 : i32
    %c0_i32_1 = arith.constant 0 : i32
    return %c0_i32, %c0_i32_0 : i32, i32
  }
  func.func @transform_4(%arg0: i32) -> (i32, i32) {
    %c0_i32 = arith.constant 0 : i32
    %c0_i32_0 = arith.constant 0 : i32
    %c0_i32_1 = arith.constant 0 : i32
    return %c0_i32, %c0_i32_0 : i32, i32
  }
  func.func @transform_5(%arg0: i32) -> (i32, i32) {
    %c0_i32 = arith.constant 0 : i32
    %c0_i32_0 = arith.constant 0 : i32
    %c0_i32_1 = arith.constant 0 : i32
    return %c0_i32, %c0_i32_0 : i32, i32
  }
  func.func @transform_6(%arg0: i32) -> (i32, i32) {
    %c0_i32 = arith.constant 0 : i32
    %c0_i32_0 = arith.constant 0 : i32
    %c0_i32_1 = arith.constant 0 : i32
    return %c0_i32, %c0_i32_0 : i32, i32
  }
  func.func @transform_7(%arg0: i32) -> (i32, i32) {
    %c0_i32 = arith.constant 0 : i32
    %c0_i32_0 = arith.constant 0 : i32
    %c0_i32_1 = arith.constant 0 : i32
    return %c0_i32, %c0_i32_0 : i32, i32
  }
  func.func @transform_8(%arg0: i32) -> (i32, i32) {
    %c0_i32 = arith.constant 0 : i32
    %c0_i32_0 = arith.constant 0 : i32
    %c0_i32_1 = arith.constant 0 : i32
    return %c0_i32, %c0_i32_0 : i32, i32
  }
  func.func @transform_9(%arg0: i32) -> (i32, i32) {
    %c0_i32 = arith.constant 0 : i32
    %c0_i32_0 = arith.constant 0 : i32
    %c0_i32_1 = arith.constant 0 : i32
    return %c0_i32, %c0_i32_0 : i32, i32
  }
  func.func @transform_10(%arg0: i32) -> (i32, i32) {
    %c0_i32 = arith.constant 0 : i32
    %c0_i32_0 = arith.constant 0 : i32
    %c0_i32_1 = arith.constant 0 : i32
    return %c0_i32, %c0_i32_0 : i32, i32
  }
  func.func @transform_11(%arg0: i32) -> (i32, i32) {
    %c0_i32 = arith.constant 0 : i32
    %c0_i32_0 = arith.constant 0 : i32
    %c0_i32_1 = arith.constant 0 : i32
    return %c0_i32, %c0_i32_0 : i32, i32
  }
  func.func @transform_12(%arg0: i32) -> (i32, i32) {
    %c0_i32 = arith.constant 0 : i32
    %c0_i32_0 = arith.constant 0 : i32
    %c0_i32_1 = arith.constant 0 : i32
    return %c0_i32, %c0_i32_0 : i32, i32
  }
  func.func @transform_13(%arg0: i32) -> (i32, i32) {
    %c0_i32 = arith.constant 0 : i32
    %c0_i32_0 = arith.constant 0 : i32
    %c0_i32_1 = arith.constant 0 : i32
    return %c0_i32, %c0_i32_0 : i32, i32
  }
  func.func @transform_14(%arg0: i32) -> (i32, i32) {
    %c0_i32 = arith.constant 0 : i32
    %c0_i32_0 = arith.constant 0 : i32
    %c0_i32_1 = arith.constant 0 : i32
    return %c0_i32, %c0_i32_0 : i32, i32
  }
}

</mosaic_0001>

<llo_original>
// kernel: pissm_forward.3
$region0: #{pissm_forward.3}
  #allocation0 [shape = 'u32[]', space=smem, size = 0x4, offset = 0x4, fixed_abs, tag = 'smem constant byte address 0x4 - core index']
  #allocation1 [shape = 'u32[72,128]{1,0:T(1,128)}', space=vmem, size = 0x9000, scoped, tag = 'internal scratch']
  %s0 = inlined_call_operand.vmem [shape: f32[16,16], index: 0, kind: input, shape index: {}]
  %s1 = inlined_call_operand.vmem [shape: f32[24,8], index: 1, kind: input, shape index: {}]
  %s2 = inlined_call_operand.vmem [shape: f32[24,1], index: 2, kind: input, shape index: {}]
  %s3 = inlined_call_operand.vmem [shape: f32[16,24], index: 3, kind: input, shape index: {}]
  %s4 = inlined_call_operand.vmem [shape: f32[1,24], index: 4, kind: input, shape index: {}]
  %s5 = inlined_call_operand.vmem [shape: f32[1,24], index: 5, kind: input, shape index: {}]
  %s6 = inlined_call_operand.vmem [shape: f32[8,24], index: 6, kind: input, shape index: {}]
  %s7 = inlined_call_operand.vmem [shape: f32[24,6], index: 7, kind: input, shape index: {}]
  %s8 = inlined_call_operand.vmem [shape: f32[1,6], index: 8, kind: input, shape index: {}]
  %s9 = inlined_call_operand.vmem [shape: f32[24,32], index: 9, kind: input, shape index: {}]
  %s10 = inlined_call_operand.vmem [shape: f32[1,32], index: 10, kind: input, shape index: {}]
  %s11 = inlined_call_operand.vmem [shape: f32[24,6], index: 11, kind: output, shape index: {0}]
  %s12 = inlined_call_operand.vmem [shape: f32[16,24], index: 12, kind: output, shape index: {1}]
  %s13 = inlined_call_operand.hbm [shape: f32[24,24], index: 13, kind: output, shape index: {2}]
  %s14 = inlined_call_operand.vmem [shape: f32[24,32], index: 14, kind: output, shape index: {3}]
  %15 = xla_tuple %s11, %s12, %s13, %s14
  %s16 = sld [smem:[#allocation0]]
  $region78: #{pissm_forward.3} parent=0
    _
  %s18 = ssub.s32 1, %s16
  %s19 = scalar_select 0, %s18, %s16
  $region1: #{pissm_forward.3} parent=0
    #allocation2 [shape = 'u8[12288]{0}', space=vmem, size = 0x3000, scoped, tag = 'output window, operand 2, single buffered']
    #allocation3 [shape = 's32[1]{0}', space=sflag, size = 0x4, scoped, tag = 'scoped memory for pissm_forward.3']
    %20 = vsyncpa [#allocation3], 0
    // Predicated region
    $region2: #{pissm_forward.3} parent=1 // pred_check
      _
    $region3: #{pissm_forward.3} parent=1 // pred_check_branch
      %22 = sbr.rel (0) target = $region5
    $region4: #{pissm_forward.3} parent=1 // pred_region
      _
    $region5: #{pissm_forward.3} parent=1 // pred_fallthru
      _
    // Predicated region
    $region6: #{pissm_forward.3} parent=1 // pred_check
      _
    $region7: #{pissm_forward.3} parent=1 // pred_check_branch
      %24 = sbr.rel (0) target = $region9
    $region8: #{pissm_forward.3} parent=1 // pred_region
      _
    $region9: #{pissm_forward.3} parent=1 // pred_fallthru
      _
    // Predicated region
    $region10: #{pissm_forward.3} parent=1 // pred_check
      _
    $region11: #{pissm_forward.3} parent=1 // pred_check_branch
      %26 = sbr.rel (0) target = $region13
    $region12: #{pissm_forward.3} parent=1 // pred_region
      _
    $region13: #{pissm_forward.3} parent=1 // pred_fallthru
      _
    // Predicated region
    $region14: #{pissm_forward.3} parent=1 // pred_check
      _
    $region15: #{pissm_forward.3} parent=1 // pred_check_branch
      %28 = sbr.rel (0) target = $region17
    $region16: #{pissm_forward.3} parent=1 // pred_region
      _
    $region17: #{pissm_forward.3} parent=1 // pred_fallthru
      _
    // Predicated region
    $region18: #{pissm_forward.3} parent=1 // pred_check
      _
    $region19: #{pissm_forward.3} parent=1 // pred_check_branch
      %30 = sbr.rel (0) target = $region21
    $region20: #{pissm_forward.3} parent=1 // pred_region
      _
    $region21: #{pissm_forward.3} parent=1 // pred_fallthru
      _
    // Predicated region
    $region22: #{pissm_forward.3} parent=1 // pred_check
      _
    $region23: #{pissm_forward.3} parent=1 // pred_check_branch
      %32 = sbr.rel (0) target = $region25
    $region24: #{pissm_forward.3} parent=1 // pred_region
      _
    $region25: #{pissm_forward.3} parent=1 // pred_fallthru
      _
    // Predicated region
    $region26: #{pissm_forward.3} parent=1 // pred_check
      _
    $region27: #{pissm_forward.3} parent=1 // pred_check_branch
      %34 = sbr.rel (0) target = $region29
    $region28: #{pissm_forward.3} parent=1 // pred_region
      _
    $region29: #{pissm_forward.3} parent=1 // pred_fallthru
      _
    // Predicated region
    $region30: #{pissm_forward.3} parent=1 // pred_check
      _
    $region31: #{pissm_forward.3} parent=1 // pred_check_branch
      %36 = sbr.rel (0) target = $region33
    $region32: #{pissm_forward.3} parent=1 // pred_region
      _
    $region33: #{pissm_forward.3} parent=1 // pred_fallthru
      _
    // Predicated region
    $region34: #{pissm_forward.3} parent=1 // pred_check
      _
    $region35: #{pissm_forward.3} parent=1 // pred_check_branch
      %38 = sbr.rel (0) target = $region37
    $region36: #{pissm_forward.3} parent=1 // pred_region
      _
    $region37: #{pissm_forward.3} parent=1 // pred_fallthru
      _
    // Predicated region
    $region38: #{pissm_forward.3} parent=1 // pred_check
      _
    $region39: #{pissm_forward.3} parent=1 // pred_check_branch
      %40 = sbr.rel (0) target = $region41
    $region40: #{pissm_forward.3} parent=1 // pred_region
      _
    $region41: #{pissm_forward.3} parent=1 // pred_fallthru
      _
    // Predicated region
    $region42: #{pissm_forward.3} parent=1 // pred_check
      _
    $region43: #{pissm_forward.3} parent=1 // pred_check_branch
      %42 = sbr.rel (0) target = $region45
    $region44: #{pissm_forward.3} parent=1 // pred_region
      _
    $region45: #{pissm_forward.3} parent=1 // pred_fallthru
      _
    %v43 = vld [vmem:[%s0] sm:$0xff]
    %v44 = vld [vmem:[%s0 + $0x8] sm:$0xff]
    %v45 = vld [vmem:[%s3] sm:$0xff]
    %v46 = vld [vmem:[%s3 + $0x8] sm:$0xff]
    %v47 = vld [vmem:[%s4] sm:$0x1]
    %v49 = vperm.slane %v47, 0
    %vm51 = vcmask 130048
    %v53 = vsel %vm51, %v43, 0
    %v56 = vsel %vm51, %v44, 0
    %58 = vmatpush.msra.mxu0 0.0
    %59 = vmatpush.msra.mxu0 0.0
    %60 = vmatpush.msra.mxu0 0.0
    %61 = vmatpush.msra.mxu0 0.0
    %62 = vmatpush.msra.mxu0 0.0
    %63 = vmatpush.msra.mxu0 0.0
    %64 = vmatpush.msra.mxu0 0.0
    %65 = vmatpush.msra.mxu0 0.0
    %66 = vmatpush.msra.mxu0 0.0
    %67 = vmatpush.msra.mxu0 0.0
    %68 = vmatpush.msra.mxu0 0.0
    %69 = vmatpush.msra.mxu0 0.0
    %70 = vmatpush.msra.mxu0 0.0
    %71 = vmatpush.msra.mxu0 0.0
    %72 = vmatpush.msra.mxu0 %v46
    %73 = vmatpush.msra.mxu0 %v45
    %74 = vmatmul.f32.gmra.mxu0 %v53
    %v75 = vpop.f32.mrf.mxu0
    %v76 = vadd.f32 %v49, %v75
    %77 = vmatmul.f32.gmra.mxu0 %v56
    %v78 = vpop.f32.mrf.mxu0
    %v79 = vadd.f32 %v49, %v78
    %80 = vdwg.mxu0
    %v81 = vtanh.pop %v76
    %v82 = vtanh.pop %v79
    %vm83 = vcmask 195584
    %84 = vst.msk [vmem:[%s12] sm:$0xff] %vm83, %v81
    %85 = vst.msk [vmem:[%s12 + $0x8] sm:$0xff] %vm83, %v82
    %v86 = vld [vmem:[%s2] sm:$0xff]
    %v87 = vld [vmem:[%s2 + $0x8] sm:$0xff]
    %v88 = vld [vmem:[%s2 + $0x10] sm:$0xff]
    %v89 = vld [vmem:[%s5] sm:$0x1]
    %v90 = vmul.f32 %v89, 1.442695
    %v91 = vpow.pop %v90
    %v92 = vsub.f32 0.0, %v91
    %v94 = vperm.slane %v92, 0
    %97 = vset.pattern.permute.xlu0 0
    %98 = vperm.xlu0 %97, %v86
    %v99 = vpop.permute.xlu0 %98
    %102 = vset.pattern.permute.xlu0 0
    %103 = vperm.xlu0 %102, %v87
    %v104 = vpop.permute.xlu0 %103
    %107 = vset.pattern.permute.xlu0 0
    %108 = vperm.xlu0 %107, %v88
    %v109 = vpop.permute.xlu0 %108
    %v111 = vmul.f32 %v94, %v99
    %v112 = vmul.f32 %v94, %v104
    %v113 = vmul.f32 %v94, %v109
    %v114 = vmul.f32 %v111, 1.442695
    %v115 = vpow.pop %v114
    %v116 = vmul.f32 %v112, 1.442695
    %v117 = vpow.pop %v116
    %v118 = vmul.f32 %v113, 1.442695
    %v119 = vpow.pop %v118
    %v120 = vld [vmem:[%s1] sm:$0xff]
    %v121 = vld [vmem:[%s1 + $0x8] sm:$0xff]
    %v122 = vld [vmem:[%s1 + $0x10] sm:$0xff]
    %v123 = vld [vmem:[%s6] sm:$0xff]
    %vm124 = vcmask 64512
    %v126 = vsel %vm124, %v120, 0
    %v129 = vsel %vm124, %v121, 0
    %v132 = vsel %vm124, %v122, 0
    %134 = vmatpush.msra.mxu0 0.0
    %135 = vmatpush.msra.mxu0 0.0
    %136 = vmatpush.msra.mxu0 0.0
    %137 = vmatpush.msra.mxu0 0.0
    %138 = vmatpush.msra.mxu0 0.0
    %139 = vmatpush.msra.mxu0 0.0
    %140 = vmatpush.msra.mxu0 0.0
    %141 = vmatpush.msra.mxu0 0.0
    %142 = vmatpush.msra.mxu0 0.0
    %143 = vmatpush.msra.mxu0 0.0
    %144 = vmatpush.msra.mxu0 0.0
    %145 = vmatpush.msra.mxu0 0.0
    %146 = vmatpush.msra.mxu0 0.0
    %147 = vmatpush.msra.mxu0 0.0
    %148 = vmatpush.msra.mxu0 0.0
    %149 = vmatpush.msra.mxu0 %v123
    %150 = vmatmul.f32.gmra.mxu0 %v126
    %v151 = vpop.f32.mrf.mxu0
    %v152 = vadd.f32 0.0, %v151
    %153 = vmatmul.f32.gmra.mxu0 %v129
    %v154 = vpop.f32.mrf.mxu0
    %v155 = vadd.f32 0.0, %v154
    %156 = vmatmul.f32.gmra.mxu0 %v132
    %v157 = vpop.f32.mrf.mxu0
    %v158 = vadd.f32 0.0, %v157
    %159 = vdwg.mxu0
    %v160 = vmul.f32 %v99, %v152
    %v161 = vmul.f32 %v104, %v155
    %v162 = vmul.f32 %v109, %v158
    %v164 = vrot.slane %v82, 6
    %v166 = vmul.f32 %v115, %v164
    %v167 = vadd.f32 %v166, %v160
    %v169 = vrot.slane %v167, 6
    %v171 = vmul.f32 %v115, %v169
    %v172 = vadd.f32 %v171, %v160
    %v174 = vrot.slane %v172, 6
    %v176 = vmul.f32 %v115, %v174
    %v177 = vadd.f32 %v176, %v160
    %v179 = vrot.slane %v177, 6
    %v181 = vmul.f32 %v115, %v179
    %v182 = vadd.f32 %v181, %v160
    %v184 = vrot.slane %v182, 6
    %v186 = vmul.f32 %v117, %v184
    %v187 = vadd.f32 %v186, %v161
    %v189 = vrot.slane %v187, 6
    %v191 = vmul.f32 %v117, %v189
    %v192 = vadd.f32 %v191, %v161
    %v194 = vrot.slane %v192, 6
    %v196 = vmul.f32 %v117, %v194
    %v197 = vadd.f32 %v196, %v161
    %v199 = vrot.slane %v197, 6
    %v201 = vmul.f32 %v117, %v199
    %v202 = vadd.f32 %v201, %v161
    %v204 = vrot.slane %v202, 6
    %v206 = vmul.f32 %v119, %v204
    %v207 = vadd.f32 %v206, %v162
    %v209 = vrot.slane %v207, 6
    %v211 = vmul.f32 %v119, %v209
    %v212 = vadd.f32 %v211, %v162
    %v214 = vrot.slane %v212, 6
    %v216 = vmul.f32 %v119, %v214
    %v217 = vadd.f32 %v216, %v162
    %v219 = vrot.slane %v217, 6
    %v221 = vmul.f32 %v119, %v219
    %v222 = vadd.f32 %v221, %v162
    %vm223 = vcmask 1041408
    %v224 = vsel %vm223, %v167, %v172
    %vm225 = vcmask 1043456
    %v226 = vsel %vm225, %v224, %v177
    %vm227 = vcmask 1045504
    %v228 = vsel %vm227, %v226, %v182
    %v229 = vsel %vm223, %v187, %v192
    %v230 = vsel %vm225, %v229, %v197
    %v231 = vsel %vm227, %v230, %v202
    %v232 = vsel %vm223, %v207, %v212
    %v233 = vsel %vm225, %v232, %v217
    %v234 = vsel %vm227, %v233, %v222
    %235 = vst.msk [vmem:[#allocation2] sm:$0xff] %vm83, %v228
    %236 = vst.msk [vmem:[#allocation2 + $0x8] sm:$0xff] %vm83, %v231
    %237 = vst.msk [vmem:[#allocation2 + $0x10] sm:$0xff] %vm83, %v234
    %v238 = vld [vmem:[%s7] sm:$0xff]
    %v239 = vld [vmem:[%s7 + $0x8] sm:$0xff]
    %v240 = vld [vmem:[%s7 + $0x10] sm:$0xff]
    %v241 = vld [vmem:[%s8] sm:$0x1]
    %v243 = vperm.slane %v241, 0
    %v246 = vsel %vm83, %v228, 0
    %v249 = vsel %vm83, %v231, 0
    %v252 = vsel %vm83, %v234, 0
    %254 = vmatpush.msra.mxu0 0.0
    %255 = vmatpush.msra.mxu0 0.0
    %256 = vmatpush.msra.mxu0 0.0
    %257 = vmatpush.msra.mxu0 0.0
    %258 = vmatpush.msra.mxu0 0.0
    %259 = vmatpush.msra.mxu0 0.0
    %260 = vmatpush.msra.mxu0 0.0
    %261 = vmatpush.msra.mxu0 0.0
    %262 = vmatpush.msra.mxu0 0.0
    %263 = vmatpush.msra.mxu0 0.0
    %264 = vmatpush.msra.mxu0 0.0
    %265 = vmatpush.msra.mxu0 0.0
    %266 = vmatpush.msra.mxu0 0.0
    %267 = vmatpush.msra.mxu0 %v240
    %268 = vmatpush.msra.mxu0 %v239
    %269 = vmatpush.msra.mxu0 %v238
    %270 = vmatmul.f32.gmra.mxu0 %v246
    %v271 = vpop.f32.mrf.mxu0
    %v272 = vadd.f32 %v243, %v271
    %273 = vmatmul.f32.gmra.mxu0 %v249
    %v274 = vpop.f32.mrf.mxu0
    %v275 = vadd.f32 %v243, %v274
    %276 = vmatmul.f32.gmra.mxu0 %v252
    %v277 = vpop.f32.mrf.mxu0
    %v278 = vadd.f32 %v243, %v277
    %279 = vdwg.mxu0
    %v280 = vtanh.pop %v272
    %v281 = vtanh.pop %v275
    %v282 = vtanh.pop %v278
    %vm283 = vcmask 48128
    %284 = vst.msk [vmem:[%s11] sm:$0xff] %vm283, %v280
    %285 = vst.msk [vmem:[%s11 + $0x8] sm:$0xff] %vm283, %v281
    %286 = vst.msk [vmem:[%s11 + $0x10] sm:$0xff] %vm283, %v282
    %v287 = vld [vmem:[%s9] sm:$0xff]
    %v288 = vld [vmem:[%s9 + $0x8] sm:$0xff]
    %v289 = vld [vmem:[%s9 + $0x10] sm:$0xff]
    %v290 = vld [vmem:[%s10] sm:$0x1]
    %v292 = vperm.slane %v290, 0
    %294 = vmatpush.msra.mxu0 0.0
    %295 = vmatpush.msra.mxu0 0.0
    %296 = vmatpush.msra.mxu0 0.0
    %297 = vmatpush.msra.mxu0 0.0
    %298 = vmatpush.msra.mxu0 0.0
    %299 = vmatpush.msra.mxu0 0.0
    %300 = vmatpush.msra.mxu0 0.0
    %301 = vmatpush.msra.mxu0 0.0
    %302 = vmatpush.msra.mxu0 0.0
    %303 = vmatpush.msra.mxu0 0.0
    %304 = vmatpush.msra.mxu0 0.0
    %305 = vmatpush.msra.mxu0 0.0
    %306 = vmatpush.msra.mxu0 0.0
    %307 = vmatpush.msra.mxu0 %v289
    %308 = vmatpush.msra.mxu0 %v288
    %309 = vmatpush.msra.mxu0 %v287
    %310 = vmatmul.f32.gmra.mxu0 %v246
    %v311 = vpop.f32.mrf.mxu0
    %v312 = vadd.f32 %v292, %v311
    %313 = vmatmul.f32.gmra.mxu0 %v249
    %v314 = vpop.f32.mrf.mxu0
    %v315 = vadd.f32 %v292, %v314
    %316 = vmatmul.f32.gmra.mxu0 %v252
    %v317 = vpop.f32.mrf.mxu0
    %v318 = vadd.f32 %v292, %v317
    %319 = vdwg.mxu0
    %vm320 = vcmask 261120
    %321 = vst.msk [vmem:[%s14] sm:$0xff] %vm320, %v312
    %322 = vst.msk [vmem:[%s14 + $0x8] sm:$0xff] %vm320, %v315
    %323 = vst.msk [vmem:[%s14 + $0x10] sm:$0xff] %vm320, %v318
    // Predicated region
    $region46: #{pissm_forward.3} parent=1 // pred_check
      _
    $region47: #{pissm_forward.3} parent=1 // pred_check_branch
      %325 = sbr.rel (0) target = $region49
    $region48: #{pissm_forward.3} parent=1 // pred_region
      _
    $region49: #{pissm_forward.3} parent=1 // pred_fallthru
      _
    // Predicated region
    $region50: #{pissm_forward.3} parent=1 // pred_check
      _
    $region51: #{pissm_forward.3} parent=1 // pred_check_branch
      %327 = sbr.rel (0) target = $region53
    $region52: #{pissm_forward.3} parent=1 // pred_region
      _
    $region53: #{pissm_forward.3} parent=1 // pred_fallthru
      _
    // Predicated region
    $region54: #{pissm_forward.3} parent=1 // pred_check
      _
    $region55: #{pissm_forward.3} parent=1 // pred_check_branch
      %329 = sbr.rel (0) target = $region57
    $region56: #{pissm_forward.3} parent=1 // pred_region
      %331 = vsyncadd [#allocation3], 0
      %s332 = sshll.u32 [#allocation2], 4
      %s333 = int_to_ptr.vmem [resolvable:$true] %s332
      %s334 = sshll.u32 %s13, 4
      %s335 = int_to_ptr.hbm [resolvable:$true] %s334
      %340 = dma.vmem_to_hbm [thread:$0]  %s333, 384, %s335, [#allocation3], 128, 128, 8
    $region57: #{pissm_forward.3} parent=1 // pred_fallthru
      _
    // Predicated region
    $region58: #{pissm_forward.3} parent=1 // pred_check
      _
    $region59: #{pissm_forward.3} parent=1 // pred_check_branch
      %342 = sbr.rel (0) target = $region61
    $region60: #{pissm_forward.3} parent=1 // pred_region
      _
    $region61: #{pissm_forward.3} parent=1 // pred_fallthru
      _
    // Predicated region
    $region62: #{pissm_forward.3} parent=1 // pred_check
      _
    $region63: #{pissm_forward.3} parent=1 // pred_check_branch
      %344 = sbr.rel (0) target = $region65
    $region64: #{pissm_forward.3} parent=1 // pred_region
      _
    $region65: #{pissm_forward.3} parent=1 // pred_fallthru
      _
    // Predicated region
    $region66: #{pissm_forward.3} parent=1 // pred_check
      _
    $region67: #{pissm_forward.3} parent=1 // pred_check_branch
      %346 = sbr.rel (0) target = $region69
    $region68: #{pissm_forward.3} parent=1 // pred_region
      _
    $region69: #{pissm_forward.3} parent=1 // pred_fallthru
      _
    // Predicated region
    $region70: #{pissm_forward.3} parent=1 // pred_check
      _
    $region71: #{pissm_forward.3} parent=1 // pred_check_branch
      %348 = sbr.rel (0) target = $region73
    $region72: #{pissm_forward.3} parent=1 // pred_region
      %350 = dma.done [#allocation3], 384
    $region73: #{pissm_forward.3} parent=1 // pred_fallthru
      _
    // Predicated region
    $region74: #{pissm_forward.3} parent=1 // pred_check
      _
    $region75: #{pissm_forward.3} parent=1 // pred_check_branch
      %352 = sbr.rel (0) target = $region77
    $region76: #{pissm_forward.3} parent=1 // pred_region
      _
    $region77: #{pissm_forward.3} parent=1 // pred_fallthru
      _
    %353 = vsyncpa [#allocation3], 1

// kernel: pissm_forward.2
$region0: #{pissm_forward.2}
  #allocation0 [shape = 'u32[]', space=smem, size = 0x4, offset = 0x4, fixed_abs, tag = 'smem constant byte address 0x4 - core index']
  #allocation1 [shape = 'u32[72,128]{1,0:T(1,128)}', space=vmem, size = 0x9000, scoped, tag = 'internal scratch']
  %s0 = inlined_call_operand.vmem [shape: f32[16,8], index: 0, kind: input, shape index: {}]
  %s1 = inlined_call_operand.vmem [shape: f32[16,1], index: 1, kind: input, shape index: {}]
  %s2 = inlined_call_operand.vmem [shape: f32[8,32], index: 2, kind: input, shape index: {}]
  %s3 = inlined_call_operand.vmem [shape: f32[1,32], index: 3, kind: input, shape index: {}]
  %s4 = inlined_call_operand.vmem [shape: f32[2,1,32], index: 4, kind: input, shape index: {}]
  %s5 = inlined_call_operand.vmem [shape: f32[2,1,32], index: 5, kind: input, shape index: {}]
  %s6 = inlined_call_operand.vmem [shape: f32[2,1,32], index: 6, kind: input, shape index: {}]
  %s7 = inlined_call_operand.vmem [shape: f32[2,1,32], index: 7, kind: input, shape index: {}]
  %s8 = inlined_call_operand.vmem [shape: f32[2,1,32], index: 8, kind: input, shape index: {}]
  %s9 = inlined_call_operand.vmem [shape: f32[2,32,64], index: 9, kind: input, shape index: {}]
  %s10 = inlined_call_operand.vmem [shape: f32[2,64,32], index: 10, kind: input, shape index: {}]
  %s11 = inlined_call_operand.vmem [shape: f32[2,1,32], index: 11, kind: input, shape index: {}]
  %s12 = inlined_call_operand.vmem [shape: f32[2,1,32], index: 12, kind: input, shape index: {}]
  %s13 = inlined_call_operand.vmem [shape: f32[2,1,32], index: 13, kind: input, shape index: {}]
  %s14 = inlined_call_operand.vmem [shape: f32[2,32,64], index: 14, kind: input, shape index: {}]
  %s15 = inlined_call_operand.vmem [shape: f32[2,32,32], index: 15, kind: input, shape index: {}]
  %s16 = inlined_call_operand.vmem [shape: f32[32,32], index: 16, kind: input, shape index: {}]
  %s17 = inlined_call_operand.vmem [shape: f32[1,32], index: 17, kind: input, shape index: {}]
  %s18 = inlined_call_operand.vmem [shape: f32[16,32], index: 18, kind: output, shape index: {}]
  %s19 = sld [smem:[#allocation0]]
  $region82: #{pissm_forward.2} parent=0
    _
  %s21 = ssub.s32 1, %s19
  %s22 = scalar_select 0, %s21, %s19
  // Predicated region
  $region2: #{pissm_forward.2} parent=0 // pred_check
    _
  $region3: #{pissm_forward.2} parent=0 // pred_check_branch
    %24 = sbr.rel (0) target = $region5
  $region4: #{pissm_forward.2} parent=0 // pred_region
    _
  $region5: #{pissm_forward.2} parent=0 // pred_fallthru
    _
  // Predicated region
  $region6: #{pissm_forward.2} parent=0 // pred_check
    _
  $region7: #{pissm_forward.2} parent=0 // pred_check_branch
    %26 = sbr.rel (0) target = $region9
  $region8: #{pissm_forward.2} parent=0 // pred_region
    _
  $region9: #{pissm_forward.2} parent=0 // pred_fallthru
    _
  // Predicated region
  $region10: #{pissm_forward.2} parent=0 // pred_check
    _
  $region11: #{pissm_forward.2} parent=0 // pred_check_branch
    %28 = sbr.rel (0) target = $region13
  $region12: #{pissm_forward.2} parent=0 // pred_region
    _
  $region13: #{pissm_forward.2} parent=0 // pred_fallthru
    _
  // Predicated region
  $region14: #{pissm_forward.2} parent=0 // pred_check
    _
  $region15: #{pissm_forward.2} parent=0 // pred_check_branch
    %30 = sbr.rel (0) target = $region17
  $region16: #{pissm_forward.2} parent=0 // pred_region
    _
  $region17: #{pissm_forward.2} parent=0 // pred_fallthru
    _
  // Predicated region
  $region18: #{pissm_forward.2} parent=0 // pred_check
    _
  $region19: #{pissm_forward.2} parent=0 // pred_check_branch
    %32 = sbr.rel (0) target = $region21
  $region20: #{pissm_forward.2} parent=0 // pred_region
    _
  $region21: #{pissm_forward.2} parent=0 // pred_fallthru
    _
  // Predicated region
  $region22: #{pissm_forward.2} parent=0 // pred_check
    _
  $region23: #{pissm_forward.2} parent=0 // pred_check_branch
    %34 = sbr.rel (0) target = $region25
  $region24: #{pissm_forward.2} parent=0 // pred_region
    _
  $region25: #{pissm_forward.2} parent=0 // pred_fallthru
    _
  // Predicated region
  $region26: #{pissm_forward.2} parent=0 // pred_check
    _
  $region27: #{pissm_forward.2} parent=0 // pred_check_branch
    %36 = sbr.rel (0) target = $region29
  $region28: #{pissm_forward.2} parent=0 // pred_region
    _
  $region29: #{pissm_forward.2} parent=0 // pred_fallthru
    _
  // Predicated region
  $region30: #{pissm_forward.2} parent=0 // pred_check
    _
  $region31: #{pissm_forward.2} parent=0 // pred_check_branch
    %38 = sbr.rel (0) target = $region33
  $region32: #{pissm_forward.2} parent=0 // pred_region
    _
  $region33: #{pissm_forward.2} parent=0 // pred_fallthru
    _
  // Predicated region
  $region34: #{pissm_forward.2} parent=0 // pred_check
    _
  $region35: #{pissm_forward.2} parent=0 // pred_check_branch
    %40 = sbr.rel (0) target = $region37
  $region36: #{pissm_forward.2} parent=0 // pred_region
    _
  $region37: #{pissm_forward.2} parent=0 // pred_fallthru
    _
  // Predicated region
  $region38: #{pissm_forward.2} parent=0 // pred_check
    _
  $region39: #{pissm_forward.2} parent=0 // pred_check_branch
    %42 = sbr.rel (0) target = $region41
  $region40: #{pissm_forward.2} parent=0 // pred_region
    _
  $region41: #{pissm_forward.2} parent=0 // pred_fallthru
    _
  // Predicated region
  $region42: #{pissm_forward.2} parent=0 // pred_check
    _
  $region43: #{pissm_forward.2} parent=0 // pred_check_branch
    %44 = sbr.rel (0) target = $region45
  $region44: #{pissm_forward.2} parent=0 // pred_region
    _
  $region45: #{pissm_forward.2} parent=0 // pred_fallthru
    _
  // Predicated region
  $region46: #{pissm_forward.2} parent=0 // pred_check
    _
  $region47: #{pissm_forward.2} parent=0 // pred_check_branch
    %46 = sbr.rel (0) target = $region49
  $region48: #{pissm_forward.2} parent=0 // pred_region
    _
  $region49: #{pissm_forward.2} parent=0 // pred_fallthru
    _
  // Predicated region
  $region50: #{pissm_forward.2} parent=0 // pred_check
    _
  $region51: #{pissm_forward.2} parent=0 // pred_check_branch
    %48 = sbr.rel (0) target = $region53
  $region52: #{pissm_forward.2} parent=0 // pred_region
    _
  $region53: #{pissm_forward.2} parent=0 // pred_fallthru
    _
  // Predicated region
  $region54: #{pissm_forward.2} parent=0 // pred_check
    _
  $region55: #{pissm_forward.2} parent=0 // pred_check_branch
    %50 = sbr.rel (0) target = $region57
  $region56: #{pissm_forward.2} parent=0 // pred_region
    _
  $region57: #{pissm_forward.2} parent=0 // pred_fallthru
    _
  // Predicated region
  $region58: #{pissm_forward.2} parent=0 // pred_check
    _
  $region59: #{pissm_forward.2} parent=0 // pred_check_branch
    %52 = sbr.rel (0) target = $region61
  $region60: #{pissm_forward.2} parent=0 // pred_region
    _
  $region61: #{pissm_forward.2} parent=0 // pred_fallthru
    _
  // Predicated region
  $region62: #{pissm_forward.2} parent=0 // pred_check
    _
  $region63: #{pissm_forward.2} parent=0 // pred_check_branch
    %54 = sbr.rel (0) target = $region65
  $region64: #{pissm_forward.2} parent=0 // pred_region
    _
  $region65: #{pissm_forward.2} parent=0 // pred_fallthru
    _
  // Predicated region
  $region66: #{pissm_forward.2} parent=0 // pred_check
    _
  $region67: #{pissm_forward.2} parent=0 // pred_check_branch
    %56 = sbr.rel (0) target = $region69
  $region68: #{pissm_forward.2} parent=0 // pred_region
    _
  $region69: #{pissm_forward.2} parent=0 // pred_fallthru
    _
  // Predicated region
  $region70: #{pissm_forward.2} parent=0 // pred_check
    _
  $region71: #{pissm_forward.2} parent=0 // pred_check_branch
    %58 = sbr.rel (0) target = $region73
  $region72: #{pissm_forward.2} parent=0 // pred_region
    _
  $region73: #{pissm_forward.2} parent=0 // pred_fallthru
    _
  %v59 = vld [vmem:[%s0] sm:$0xff]
  %v60 = vld [vmem:[%s0 + $0x8] sm:$0xff]
  %v61 = vld [vmem:[%s1] sm:$0xff]
  %v62 = vld [vmem:[%s1 + $0x8] sm:$0xff]
  %v63 = vld [vmem:[%s2] sm:$0xff]
  %v64 = vld [vmem:[%s3] sm:$0x1]
  %v66 = vperm.slane %v64, 0
  %vm68 = vcmask 64512
  %v70 = vsel %vm68, %v59, 0
  %v73 = vsel %vm68, %v60, 0
  %75 = vmatpush.msra.mxu0 0.0
  %76 = vmatpush.msra.mxu0 0.0
  %77 = vmatpush.msra.mxu0 0.0
  %78 = vmatpush.msra.mxu0 0.0
  %79 = vmatpush.msra.mxu0 0.0
  %80 = vmatpush.msra.mxu0 0.0
  %81 = vmatpush.msra.mxu0 0.0
  %82 = vmatpush.msra.mxu0 0.0
  %83 = vmatpush.msra.mxu0 0.0
  %84 = vmatpush.msra.mxu0 0.0
  %85 = vmatpush.msra.mxu0 0.0
  %86 = vmatpush.msra.mxu0 0.0
  %87 = vmatpush.msra.mxu0 0.0
  %88 = vmatpush.msra.mxu0 0.0
  %89 = vmatpush.msra.mxu0 0.0
  %90 = vmatpush.msra.mxu0 %v63
  %91 = vmatmul.f32.gmra.mxu0 %v70
  %v92 = vpop.f32.mrf.mxu0
  %v93 = vadd.f32 %v66, %v92
  %94 = vmatmul.f32.gmra.mxu0 %v73
  %v95 = vpop.f32.mrf.mxu0
  %v96 = vadd.f32 %v66, %v95
  %97 = vdwg.mxu0
  %v98 = vtanh.pop %v93
  %v99 = vtanh.pop %v96
  %v100 = vld [vmem:[%s4] sm:$0x1]
  %v101 = vld [vmem:[%s5] sm:$0x1]
  %vm102 = vcmask 261120
  %v103 = vsel %vm102, %v98, 0.0
  %104 = vadd.xlane.f32.xlu0 %v103
  %v105 = vpop.xlane.xlu0 %104
  %v106 = vsel %vm102, %v99, 0.0
  %107 = vadd.xlane.f32.xlu0 %v106
  %v108 = vpop.xlane.xlu0 %107
  %v109 = vrcp.pop 32.0
  %v110 = vmul.f32 32.0, %v109
  %v111 = vsub.f32 1.0, %v110
  %v112 = vmul.f32 %v109, %v111
  %v113 = vadd.f32 %v109, %v112
  %vm114 = vweird.f32 %v109
  %v115 = vsel %vm114, %v109, %v113
  %v116 = vmul.f32 %v105, %v115
  %v117 = vmul.f32 %v108, %v115
  %v118 = vsub.f32 %v98, %v116
  %v119 = vsub.f32 %v99, %v117
  %v120 = vmul.f32 %v118, %v118
  %v121 = vmul.f32 %v119, %v119
  %v122 = vsel %vm102, %v120, 0.0
  %123 = vadd.xlane.f32.xlu0 %v122
  %v124 = vpop.xlane.xlu0 %123
  %v125 = vsel %vm102, %v121, 0.0
  %126 = vadd.xlane.f32.xlu0 %v125
  %v127 = vpop.xlane.xlu0 %126
  %v128 = vmul.f32 %v124, %v115
  %v129 = vmul.f32 %v127, %v115
  %v130 = vadd.f32 %v128, 1e-05
  %v131 = vadd.f32 %v129, 1e-05
  %v132 = vrsqrt.pop %v130
  %v133 = vmul.f32 %v132, %v130
  %v134 = vmul.f32 %v133, %v132
  %v135 = vmul.f32 0.5, %v134
  %v136 = vsub.f32 1.5, %v135
  %v137 = vmul.f32 %v132, %v136
  %vm138 = vweird.f32 %v130
  %vm139 = vweird.f32 %v132
  %vm140 = vmor %vm138, %vm139
  %v141 = vsel %vm140, %v132, %v137
  %v142 = vrsqrt.pop %v131
  %v143 = vmul.f32 %v142, %v131
  %v144 = vmul.f32 %v143, %v142
  %v145 = vmul.f32 0.5, %v144
  %v146 = vsub.f32 1.5, %v145
  %v147 = vmul.f32 %v142, %v146
  %vm148 = vweird.f32 %v131
  %vm149 = vweird.f32 %v142
  %vm150 = vmor %vm148, %vm149
  %v151 = vsel %vm150, %v142, %v147
  %v152 = vmul.f32 %v118, %v141
  %v153 = vmul.f32 %v119, %v151
  %v155 = vperm.slane %v100, 0
  %v157 = vmul.f32 %v152, %v155
  %v158 = vmul.f32 %v153, %v155
  %v160 = vperm.slane %v101, 0
  %v162 = vadd.f32 %v157, %v160
  %v163 = vadd.f32 %v158, %v160
  %v164 = vld [vmem:[%s9] sm:$0xff]
  %v165 = vld [vmem:[%s9 + $0x8] sm:$0xff]
  %v166 = vld [vmem:[%s9 + $0x10] sm:$0xff]
  %v167 = vld [vmem:[%s9 + $0x18] sm:$0xff]
  %v169 = vsel %vm102, %v162, 0
  %v172 = vsel %vm102, %v163, 0
  %174 = vmatpush.msra.mxu0 0.0
  %175 = vmatpush.msra.mxu0 0.0
  %176 = vmatpush.msra.mxu0 0.0
  %177 = vmatpush.msra.mxu0 0.0
  %178 = vmatpush.msra.mxu0 0.0
  %179 = vmatpush.msra.mxu0 0.0
  %180 = vmatpush.msra.mxu0 0.0
  %181 = vmatpush.msra.mxu0 0.0
  %182 = vmatpush.msra.mxu0 0.0
  %183 = vmatpush.msra.mxu0 0.0
  %184 = vmatpush.msra.mxu0 0.0
  %185 = vmatpush.msra.mxu0 0.0
  %186 = vmatpush.msra.mxu0 %v167
  %187 = vmatpush.msra.mxu0 %v166
  %188 = vmatpush.msra.mxu0 %v165
  %189 = vmatpush.msra.mxu0 %v164
  %190 = vmatmul.f32.gmra.mxu0 %v169
  %v191 = vpop.f32.mrf.mxu0
  %v192 = vadd.f32 0.0, %v191
  %193 = vmatmul.f32.gmra.mxu0 %v172
  %v194 = vpop.f32.mrf.mxu0
  %v195 = vadd.f32 0.0, %v194
  %196 = vdwg.mxu0
  %v197 = vld [vmem:[%s8] sm:$0x1]
  %v198 = vmul.f32 %v197, 1.442695
  %v199 = vpow.pop %v198
  %201 = vset.pattern.permute.xlu0 0
  %202 = vperm.xlu0 %201, %v61
  %v203 = vpop.permute.xlu0 %202
  %206 = vset.pattern.permute.xlu0 0
  %207 = vperm.xlu0 %206, %v62
  %v208 = vpop.permute.xlu0 %207
  %v211 = vperm.slane %v199, 0
  %v213 = vmul.f32 %v203, %v211
  %v214 = vmul.f32 %v208, %v211
  %v215 = vld [vmem:[%s6] sm:$0x1]
  %v216 = vld [vmem:[%s7] sm:$0x1]
  %v218 = vperm.slane %v215, 0
  %v220 = vmul.f32 %v218, %v213
  %v221 = vmul.f32 %v218, %v214
  %v222 = vmul.f32 %v220, 1.442695
  %v223 = vpow.pop %v222
  %v224 = vmul.f32 %v221, 1.442695
  %v225 = vpow.pop %v224
  %v227 = vperm.slane %v216, 0
  %v229 = vmul.f32 %v227, %v213
  %v230 = vmul.f32 %v227, %v214
  %v231 = vand.u32 2147483647, %v229
  %vm232 = vcmp.le.f32.partialorder %v231, 0.7853982
  %vm233 = vcmp.lt.s32.totalorder %v229, 0
  %v234 = vand.u32 %v229, 2139095040
  %v235 = vshrl.u32 %v234, 23
  %v236 = vsub.s32 %v235, 127
  %v237 = vand.u32 2147483647, %v229
  %v238 = vand.u32 %v237, 8388607
  %v239 = vor.u32 %v238, 8388608
  %v240 = vsub.s32 0, %v239
  %v241 = vadd.s32 %v236, 1
  %vm242 = vcmp.gt.s32.totalorder %v241, 0
  %v243 = vsel %vm242, %v241, 0
  %v244 = vshrl.u32 %v243, 5
  %v245 = vand.u32 %v243, 31
  %v246 = vsub.s32 32, %v245
  %v247 = vshrl.u32 683565275, %v246
  %v248 = vshll.u32 683565275, %v245
  %v249 = vshrl.u32 2475754826, %v246
  %v250 = vor.u32 %v248, %v249
  %v251 = vshll.u32 2475754826, %v245
  %v252 = vshrl.u32 2131351028, %v246
  %v253 = vor.u32 %v251, %v252
  %v254 = vshll.u32 2131351028, %v245
  %v255 = vshrl.u32 2102212464, %v246
  %v256 = vor.u32 %v254, %v255
  %v257 = vshll.u32 2102212464, %v245
  %v258 = vshrl.u32 920167782, %v246
  %v259 = vor.u32 %v257, %v258
  %v260 = vshll.u32 920167782, %v245
  %v261 = vshrl.u32 1326507024, %v246
  %v262 = vor.u32 %v260, %v261
  %vm263 = vcmp.lt.s32.totalorder %v244, 1
  %vm264 = vcmp.lt.s32.totalorder %v244, 2
  %vm265 = vcmp.lt.s32.totalorder %v244, 3
  %vm266 = vcmp.lt.s32.totalorder %v244, 4
  %v267 = vsel %vm263, %v247, %v250
  %v268 = vsel %vm266, %v256, 2102212464
  %v269 = vsel %vm265, %v253, %v268
  %v270 = vsel %vm264, %v267, %v269
  %v271 = vsel %vm263, %v250, %v253
  %v272 = vsel %vm266, %v259, 920167782
  %v273 = vsel %vm265, %v256, %v272
  %v274 = vsel %vm264, %v271, %v273
  %v275 = vsel %vm263, %v253, %v256
  %v276 = vsel %vm266, %v262, 1326507024
  %v277 = vsel %vm265, %v259, %v276
  %v278 = vsel %vm264, %v275, %v277
  %v279 = vshll.u32 %v239, 8
  %v280 = vand.u32 %v279, 65535
  %v281 = vshrl.u32 %v279, 16
  %v282 = vand.u32 %v278, 65535
  %v283 = vshrl.u32 %v278, 16
  %v284 = vmul.u32 %v280, %v282
  %v285 = vmul.u32 %v280, %v283
  %v286 = vmul.u32 %v281, %v282
  %v287 = vmul.u32 %v281, %v283
  %v288 = vshll.u32 %v285, 16
  %v289 = vshrl.u32 %v285, 16
  %v290 = vshll.u32 %v286, 16
  %v291 = vshrl.u32 %v286, 16
  %vm292 = vc.u32 %v284, %v288
  %v293 = vsel %vm292, 1, 0
  %v294 = vadd.s32 %v284, %v288
  %v295 = vadd.s32 %v287, %v293
  %vm296 = vc.u32 %v294, %v290
  %v297 = vsel %vm296, 1, 0
  %v298 = vadd.s32 %v294, %v290
  %v299 = vadd.s32 %v295, %v297
  %v300 = vadd.s32 %v299, %v289
  %v301 = vadd.s32 %v300, %v291
  %v302 = vand.u32 %v279, 65535
  %v303 = vshrl.u32 %v279, 16
  %v304 = vand.u32 %v274, 65535
  %v305 = vshrl.u32 %v274, 16
  %v306 = vmul.u32 %v302, %v304
  %v307 = vmul.u32 %v302, %v305
  %v308 = vmul.u32 %v303, %v304
  %v309 = vmul.u32 %v303, %v305
  %v310 = vshll.u32 %v307, 16
  %v311 = vshrl.u32 %v307, 16
  %v312 = vshll.u32 %v308, 16
  %v313 = vshrl.u32 %v308, 16
  %vm314 = vc.u32 %v306, %v310
  %v315 = vsel %vm314, 1, 0
  %v316 = vadd.s32 %v306, %v310
  %v317 = vadd.s32 %v309, %v315
  %vm318 = vc.u32 %v316, %v312
  %v319 = vsel %vm318, 1, 0
  %v320 = vadd.s32 %v316, %v312
  %v321 = vadd.s32 %v317, %v319
  %v322 = vadd.s32 %v321, %v311
  %v323 = vadd.s32 %v322, %v313
  %v324 = vmul.u32 %v279, %v270
  %v325 = vadd.s32 %v301, %v320
  %vm326 = vc.u32 %v301, %v320
  %v327 = vadd.s32 %v323, 1
  %v328 = vsel %vm326, %v327, %v323
  %v329 = vadd.s32 %v324, %v328
  %v330 = vadd.s32 %v329, 536870912
  %v331 = vshrl.u32 %v330, 30
  %v332 = vshll.u32 %v331, 30
  %v333 = vsub.s32 %v329, %v332
  %vm334 = vcmp.lt.s32.totalorder %v333, 0
  %v335 = vsub.s32 0, %v333
  %v336 = vsel %vm334, %v335, %v333
  %v337 = vclz %v336
  %v338 = vsub.s32 %v337, 2
  %vm339 = vcmp.gt.s32.totalorder 0, %v338
  %v340 = vsel %vm339, 0, %v338
  %v341 = vsub.s32 32, %v340
  %v342 = vshll.u32 %v333, %v340
  %v343 = vshrl.u32 %v325, %v341
  %v344 = vor.u32 %v342, %v343
  %v345 = vsub.s32 4294967266, %v340
  %v346 = vadd.s32 %v345, 127
  %v347 = vshll.u32 %v346, 23
  %v348 = vor.u32 4788187, %v347
  %v349 = vand.u32 2147483647, %v348
  %v351 = vcvt.s32.f32 %v344
  %v352 = vmul.f32 %v351, %v349
  %v353 = vxor.u32 %v352, 2147483648
  %v354 = vsel %vm233, %v353, %v352
  %v355 = vsub.s32 4, %v331
  %v356 = vsel %vm233, %v355, %v331
  %v357 = vsel %vm232, %v229, %v354
  %v358 = vsel %vm232, 0, %v356
  %v359 = vmul.f32 %v357, %v357
  %v360 = vmul.f32 %v359, -0.001358992
  %v361 = vadd.f32 %v360, 0.041655596
  %v362 = vmul.f32 %v359, %v361
  %v363 = vadd.f32 %v362, -0.4999988
  %v364 = vmul.f32 %v359, %v363
  %v365 = vadd.f32 1.0, %v364
  %v366 = vmul.f32 %v357, %v357
  %v367 = vmul.f32 %v366, -0.00019511016
  %v368 = vadd.f32 %v367, 0.008332121
  %v369 = vmul.f32 %v366, %v368
  %v370 = vadd.f32 %v369, -0.16666654
  %v371 = vmul.f32 %v366, %v370
  %v372 = vadd.f32 %v371, 1.0
  %v373 = vmul.f32 %v372, %v357
  %vm374 = vweird.f32 %v229
  %v375 = vand.u32 %v358, 3
  %vm376 = vcmp.lt.s32.totalorder %v375, 2
  %vm377 = vcmp.eq.s32.totalorder %v375, 0
  %v378 = vxor.u32 %v373, 2147483648
  %v379 = vsel %vm377, %v365, %v378
  %vm380 = vcmp.eq.s32.totalorder %v375, 2
  %v381 = vxor.u32 %v365, 2147483648
  %v382 = vsel %vm380, %v381, %v373
  %v383 = vsel %vm376, %v379, %v382
  %v384 = vsel %vm374, nan, %v383
  %v385 = vand.u32 2147483647, %v230
  %vm386 = vcmp.le.f32.partialorder %v385, 0.7853982
  %vm387 = vcmp.lt.s32.totalorder %v230, 0
  %v388 = vand.u32 %v230, 2139095040
  %v389 = vshrl.u32 %v388, 23
  %v390 = vsub.s32 %v389, 127
  %v391 = vand.u32 2147483647, %v230
  %v392 = vand.u32 %v391, 8388607
  %v393 = vor.u32 %v392, 8388608
  %v394 = vsub.s32 0, %v393
  %v395 = vadd.s32 %v390, 1
  %vm396 = vcmp.gt.s32.totalorder %v395, 0
  %v397 = vsel %vm396, %v395, 0
  %v398 = vshrl.u32 %v397, 5
  %v399 = vand.u32 %v397, 31
  %v400 = vsub.s32 32, %v399
  %v401 = vshrl.u32 683565275, %v400
  %v402 = vshll.u32 683565275, %v399
  %v403 = vshrl.u32 2475754826, %v400
  %v404 = vor.u32 %v402, %v403
  %v405 = vshll.u32 2475754826, %v399
  %v406 = vshrl.u32 2131351028, %v400
  %v407 = vor.u32 %v405, %v406
  %v408 = vshll.u32 2131351028, %v399
  %v409 = vshrl.u32 2102212464, %v400
  %v410 = vor.u32 %v408, %v409
  %v411 = vshll.u32 2102212464, %v399
  %v412 = vshrl.u32 920167782, %v400
  %v413 = vor.u32 %v411, %v412
  %v414 = vshll.u32 920167782, %v399
  %v415 = vshrl.u32 1326507024, %v400
  %v416 = vor.u32 %v414, %v415
  %vm417 = vcmp.lt.s32.totalorder %v398, 1
  %vm418 = vcmp.lt.s32.totalorder %v398, 2
  %vm419 = vcmp.lt.s32.totalorder %v398, 3
  %vm420 = vcmp.lt.s32.totalorder %v398, 4
  %v421 = vsel %vm417, %v401, %v404
  %v422 = vsel %vm420, %v410, 2102212464
  %v423 = vsel %vm419, %v407, %v422
  %v424 = vsel %vm418, %v421, %v423
  %v425 = vsel %vm417, %v404, %v407
  %v426 = vsel %vm420, %v413, 920167782
  %v427 = vsel %vm419, %v410, %v426
  %v428 = vsel %vm418, %v425, %v427
  %v429 = vsel %vm417, %v407, %v410
  %v430 = vsel %vm420, %v416, 1326507024
  %v431 = vsel %vm419, %v413, %v430
  %v432 = vsel %vm418, %v429, %v431
  %v433 = vshll.u32 %v393, 8
  %v434 = vand.u32 %v433, 65535
  %v435 = vshrl.u32 %v433, 16
  %v436 = vand.u32 %v432, 65535
  %v437 = vshrl.u32 %v432, 16
  %v438 = vmul.u32 %v434, %v436
  %v439 = vmul.u32 %v434, %v437
  %v440 = vmul.u32 %v435, %v436
  %v441 = vmul.u32 %v435, %v437
  %v442 = vshll.u32 %v439, 16
  %v443 = vshrl.u32 %v439, 16
  %v444 = vshll.u32 %v440, 16
  %v445 = vshrl.u32 %v440, 16
  %vm446 = vc.u32 %v438, %v442
  %v447 = vsel %vm446, 1, 0
  %v448 = vadd.s32 %v438, %v442
  %v449 = vadd.s32 %v441, %v447
  %vm450 = vc.u32 %v448, %v444
  %v451 = vsel %vm450, 1, 0
  %v452 = vadd.s32 %v448, %v444
  %v453 = vadd.s32 %v449, %v451
  %v454 = vadd.s32 %v453, %v443
  %v455 = vadd.s32 %v454, %v445
  %v456 = vand.u32 %v433, 65535
  %v457 = vshrl.u32 %v433, 16
  %v458 = vand.u32 %v428, 65535
  %v459 = vshrl.u32 %v428, 16
  %v460 = vmul.u32 %v456, %v458
  %v461 = vmul.u32 %v456, %v459
  %v462 = vmul.u32 %v457, %v458
  %v463 = vmul.u32 %v457, %v459
  %v464 = vshll.u32 %v461, 16
  %v465 = vshrl.u32 %v461, 16
  %v466 = vshll.u32 %v462, 16
  %v467 = vshrl.u32 %v462, 16
  %vm468 = vc.u32 %v460, %v464
  %v469 = vsel %vm468, 1, 0
  %v470 = vadd.s32 %v460, %v464
  %v471 = vadd.s32 %v463, %v469
  %vm472 = vc.u32 %v470, %v466
  %v473 = vsel %vm472, 1, 0
  %v474 = vadd.s32 %v470, %v466
  %v475 = vadd.s32 %v471, %v473
  %v476 = vadd.s32 %v475, %v465
  %v477 = vadd.s32 %v476, %v467
  %v478 = vmul.u32 %v433, %v424
  %v479 = vadd.s32 %v455, %v474
  %vm480 = vc.u32 %v455, %v474
  %v481 = vadd.s32 %v477, 1
  %v482 = vsel %vm480, %v481, %v477
  %v483 = vadd.s32 %v478, %v482
  %v484 = vadd.s32 %v483, 536870912
  %v485 = vshrl.u32 %v484, 30
  %v486 = vshll.u32 %v485, 30
  %v487 = vsub.s32 %v483, %v486
  %vm488 = vcmp.lt.s32.totalorder %v487, 0
  %v489 = vsub.s32 0, %v487
  %v490 = vsel %vm488, %v489, %v487
  %v491 = vclz %v490
  %v492 = vsub.s32 %v491, 2
  %vm493 = vcmp.gt.s32.totalorder 0, %v492
  %v494 = vsel %vm493, 0, %v492
  %v495 = vsub.s32 32, %v494
  %v496 = vshll.u32 %v487, %v494
  %v497 = vshrl.u32 %v479, %v495
  %v498 = vor.u32 %v496, %v497
  %v499 = vsub.s32 4294967266, %v494
  %v500 = vadd.s32 %v499, 127
  %v501 = vshll.u32 %v500, 23
  %v502 = vor.u32 4788187, %v501
  %v503 = vand.u32 2147483647, %v502
  %v505 = vcvt.s32.f32 %v498
  %v506 = vmul.f32 %v505, %v503
  %v507 = vxor.u32 %v506, 2147483648
  %v508 = vsel %vm387, %v507, %v506
  %v509 = vsub.s32 4, %v485
  %v510 = vsel %vm387, %v509, %v485
  %v511 = vsel %vm386, %v230, %v508
  %v512 = vsel %vm386, 0, %v510
  %v513 = vmul.f32 %v511, %v511
  %v514 = vmul.f32 %v513, -0.001358992
  %v515 = vadd.f32 %v514, 0.041655596
  %v516 = vmul.f32 %v513, %v515
  %v517 = vadd.f32 %v516, -0.4999988
  %v518 = vmul.f32 %v513, %v517
  %v519 = vadd.f32 1.0, %v518
  %v520 = vmul.f32 %v511, %v511
  %v521 = vmul.f32 %v520, -0.00019511016
  %v522 = vadd.f32 %v521, 0.008332121
  %v523 = vmul.f32 %v520, %v522
  %v524 = vadd.f32 %v523, -0.16666654
  %v525 = vmul.f32 %v520, %v524
  %v526 = vadd.f32 %v525, 1.0
  %v527 = vmul.f32 %v526, %v511
  %vm528 = vweird.f32 %v230
  %v529 = vand.u32 %v512, 3
  %vm530 = vcmp.lt.s32.totalorder %v529, 2
  %vm531 = vcmp.eq.s32.totalorder %v529, 0
  %v532 = vxor.u32 %v527, 2147483648
  %v533 = vsel %vm531, %v519, %v532
  %vm534 = vcmp.eq.s32.totalorder %v529, 2
  %v535 = vxor.u32 %v519, 2147483648
  %v536 = vsel %vm534, %v535, %v527
  %v537 = vsel %vm530, %v533, %v536
  %v538 = vsel %vm528, nan, %v537
  %v539 = vmul.f32 %v223, %v384
  %v540 = vmul.f32 %v225, %v538
  %v541 = vand.u32 2147483647, %v229
  %vm542 = vcmp.le.f32.partialorder %v541, 0.7853982
  %vm543 = vcmp.lt.s32.totalorder %v229, 0
  %v544 = vand.u32 %v229, 2139095040
  %v545 = vshrl.u32 %v544, 23
  %v546 = vsub.s32 %v545, 127
  %v547 = vand.u32 2147483647, %v229
  %v548 = vand.u32 %v547, 8388607
  %v549 = vor.u32 %v548, 8388608
  %v550 = vsub.s32 0, %v549
  %v551 = vadd.s32 %v546, 1
  %vm552 = vcmp.gt.s32.totalorder %v551, 0
  %v553 = vsel %vm552, %v551, 0
  %v554 = vshrl.u32 %v553, 5
  %v555 = vand.u32 %v553, 31
  %v556 = vsub.s32 32, %v555
  %v557 = vshrl.u32 683565275, %v556
  %v558 = vshll.u32 683565275, %v555
  %v559 = vshrl.u32 2475754826, %v556
  %v560 = vor.u32 %v558, %v559
  %v561 = vshll.u32 2475754826, %v555
  %v562 = vshrl.u32 2131351028, %v556
  %v563 = vor.u32 %v561, %v562
  %v564 = vshll.u32 2131351028, %v555
  %v565 = vshrl.u32 2102212464, %v556
  %v566 = vor.u32 %v564, %v565
  %v567 = vshll.u32 2102212464, %v555
  %v568 = vshrl.u32 920167782, %v556
  %v569 = vor.u32 %v567, %v568
  %v570 = vshll.u32 920167782, %v555
  %v571 = vshrl.u32 1326507024, %v556
  %v572 = vor.u32 %v570, %v571
  %vm573 = vcmp.lt.s32.totalorder %v554, 1
  %vm574 = vcmp.lt.s32.totalorder %v554, 2
  %vm575 = vcmp.lt.s32.totalorder %v554, 3
  %vm576 = vcmp.lt.s32.totalorder %v554, 4
  %v577 = vsel %vm573, %v557, %v560
  %v578 = vsel %vm576, %v566, 2102212464
  %v579 = vsel %vm575, %v563, %v578
  %v580 = vsel %vm574, %v577, %v579
  %v581 = vsel %vm573, %v560, %v563
  %v582 = vsel %vm576, %v569, 920167782
  %v583 = vsel %vm575, %v566, %v582
  %v584 = vsel %vm574, %v581, %v583
  %v585 = vsel %vm573, %v563, %v566
  %v586 = vsel %vm576, %v572, 1326507024
  %v587 = vsel %vm575, %v569, %v586
  %v588 = vsel %vm574, %v585, %v587
  %v589 = vshll.u32 %v549, 8
  %v590 = vand.u32 %v589, 65535
  %v591 = vshrl.u32 %v589, 16
  %v592 = vand.u32 %v588, 65535
  %v593 = vshrl.u32 %v588, 16
  %v594 = vmul.u32 %v590, %v592
  %v595 = vmul.u32 %v590, %v593
  %v596 = vmul.u32 %v591, %v592
  %v597 = vmul.u32 %v591, %v593
  %v598 = vshll.u32 %v595, 16
  %v599 = vshrl.u32 %v595, 16
  %v600 = vshll.u32 %v596, 16
  %v601 = vshrl.u32 %v596, 16
  %vm602 = vc.u32 %v594, %v598
  %v603 = vsel %vm602, 1, 0
  %v604 = vadd.s32 %v594, %v598
  %v605 = vadd.s32 %v597, %v603
  %vm606 = vc.u32 %v604, %v600
  %v607 = vsel %vm606, 1, 0
  %v608 = vadd.s32 %v604, %v600
  %v609 = vadd.s32 %v605, %v607
  %v610 = vadd.s32 %v609, %v599
  %v611 = vadd.s32 %v610, %v601
  %v612 = vand.u32 %v589, 65535
  %v613 = vshrl.u32 %v589, 16
  %v614 = vand.u32 %v584, 65535
  %v615 = vshrl.u32 %v584, 16
  %v616 = vmul.u32 %v612, %v614
  %v617 = vmul.u32 %v612, %v615
  %v618 = vmul.u32 %v613, %v614
  %v619 = vmul.u32 %v613, %v615
  %v620 = vshll.u32 %v617, 16
  %v621 = vshrl.u32 %v617, 16
  %v622 = vshll.u32 %v618, 16
  %v623 = vshrl.u32 %v618, 16
  %vm624 = vc.u32 %v616, %v620
  %v625 = vsel %vm624, 1, 0
  %v626 = vadd.s32 %v616, %v620
  %v627 = vadd.s32 %v619, %v625
  %vm628 = vc.u32 %v626, %v622
  %v629 = vsel %vm628, 1, 0
  %v630 = vadd.s32 %v626, %v622
  %v631 = vadd.s32 %v627, %v629
  %v632 = vadd.s32 %v631, %v621
  %v633 = vadd.s32 %v632, %v623
  %v634 = vmul.u32 %v589, %v580
  %v635 = vadd.s32 %v611, %v630
  %vm636 = vc.u32 %v611, %v630
  %v637 = vadd.s32 %v633, 1
  %v638 = vsel %vm636, %v637, %v633
  %v639 = vadd.s32 %v634, %v638
  %v640 = vadd.s32 %v639, 536870912
  %v641 = vshrl.u32 %v640, 30
  %v642 = vshll.u32 %v641, 30
  %v643 = vsub.s32 %v639, %v642
  %vm644 = vcmp.lt.s32.totalorder %v643, 0
  %v645 = vsub.s32 0, %v643
  %v646 = vsel %vm644, %v645, %v643
  %v647 = vclz %v646
  %v648 = vsub.s32 %v647, 2
  %vm649 = vcmp.gt.s32.totalorder 0, %v648
  %v650 = vsel %vm649, 0, %v648
  %v651 = vsub.s32 32, %v650
  %v652 = vshll.u32 %v643, %v650
  %v653 = vshrl.u32 %v635, %v651
  %v654 = vor.u32 %v652, %v653
  %v655 = vsub.s32 4294967266, %v650
  %v656 = vadd.s32 %v655, 127
  %v657 = vshll.u32 %v656, 23
  %v658 = vor.u32 4788187, %v657
  %v659 = vand.u32 2147483647, %v658
  %v661 = vcvt.s32.f32 %v654
  %v662 = vmul.f32 %v661, %v659
  %v663 = vxor.u32 %v662, 2147483648
  %v664 = vsel %vm543, %v663, %v662
  %v665 = vsub.s32 4, %v641
  %v666 = vsel %vm543, %v665, %v641
  %v667 = vsel %vm542, %v229, %v664
  %v668 = vsel %vm542, 0, %v666
  %v669 = vmul.f32 %v667, %v667
  %v670 = vmul.f32 %v669, -0.001358992
  %v671 = vadd.f32 %v670, 0.041655596
  %v672 = vmul.f32 %v669, %v671
  %v673 = vadd.f32 %v672, -0.4999988
  %v674 = vmul.f32 %v669, %v673
  %v675 = vadd.f32 1.0, %v674
  %v676 = vmul.f32 %v667, %v667
  %v677 = vmul.f32 %v676, -0.00019511016
  %v678 = vadd.f32 %v677, 0.008332121
  %v679 = vmul.f32 %v676, %v678
  %v680 = vadd.f32 %v679, -0.16666654
  %v681 = vmul.f32 %v676, %v680
  %v682 = vadd.f32 %v681, 1.0
  %v683 = vmul.f32 %v682, %v667
  %vm684 = vweird.f32 %v229
  %v685 = vadd.s32 %v668, 3
  %v686 = vand.u32 %v685, 3
  %vm687 = vcmp.lt.s32.totalorder %v686, 2
  %vm688 = vcmp.eq.s32.totalorder %v686, 0
  %v689 = vxor.u32 %v683, 2147483648
  %v690 = vsel %vm688, %v675, %v689
  %vm691 = vcmp.eq.s32.totalorder %v686, 2
  %v692 = vxor.u32 %v675, 2147483648
  %v693 = vsel %vm691, %v692, %v683
  %v694 = vsel %vm687, %v690, %v693
  %v695 = vsel %vm684, nan, %v694
  %v696 = vand.u32 2147483647, %v230
  %vm697 = vcmp.le.f32.partialorder %v696, 0.7853982
  %vm698 = vcmp.lt.s32.totalorder %v230, 0
  %v699 = vand.u32 %v230, 2139095040
  %v700 = vshrl.u32 %v699, 23
  %v701 = vsub.s32 %v700, 127
  %v702 = vand.u32 2147483647, %v230
  %v703 = vand.u32 %v702, 8388607
  %v704 = vor.u32 %v703, 8388608
  %v705 = vsub.s32 0, %v704
  %v706 = vadd.s32 %v701, 1
  %vm707 = vcmp.gt.s32.totalorder %v706, 0
  %v708 = vsel %vm707, %v706, 0
  %v709 = vshrl.u32 %v708, 5
  %v710 = vand.u32 %v708, 31
  %v711 = vsub.s32 32, %v710
  %v712 = vshrl.u32 683565275, %v711
  %v713 = vshll.u32 683565275, %v710
  %v714 = vshrl.u32 2475754826, %v711
  %v715 = vor.u32 %v713, %v714
  %v716 = vshll.u32 2475754826, %v710
  %v717 = vshrl.u32 2131351028, %v711
  %v718 = vor.u32 %v716, %v717
  %v719 = vshll.u32 2131351028, %v710
  %v720 = vshrl.u32 2102212464, %v711
  %v721 = vor.u32 %v719, %v720
  %v722 = vshll.u32 2102212464, %v710
  %v723 = vshrl.u32 920167782, %v711
  %v724 = vor.u32 %v722, %v723
  %v725 = vshll.u32 920167782, %v710
  %v726 = vshrl.u32 1326507024, %v711
  %v727 = vor.u32 %v725, %v726
  %vm728 = vcmp.lt.s32.totalorder %v709, 1
  %vm729 = vcmp.lt.s32.totalorder %v709, 2
  %vm730 = vcmp.lt.s32.totalorder %v709, 3
  %vm731 = vcmp.lt.s32.totalorder %v709, 4
  %v732 = vsel %vm728, %v712, %v715
  %v733 = vsel %vm731, %v721, 2102212464
  %v734 = vsel %vm730, %v718, %v733
  %v735 = vsel %vm729, %v732, %v734
  %v736 = vsel %vm728, %v715, %v718
  %v737 = vsel %vm731, %v724, 920167782
  %v738 = vsel %vm730, %v721, %v737
  %v739 = vsel %vm729, %v736, %v738
  %v740 = vsel %vm728, %v718, %v721
  %v741 = vsel %vm731, %v727, 1326507024
  %v742 = vsel %vm730, %v724, %v741
  %v743 = vsel %vm729, %v740, %v742
  %v744 = vshll.u32 %v704, 8
  %v745 = vand.u32 %v744, 65535
  %v746 = vshrl.u32 %v744, 16
  %v747 = vand.u32 %v743, 65535
  %v748 = vshrl.u32 %v743, 16
  %v749 = vmul.u32 %v745, %v747
  %v750 = vmul.u32 %v745, %v748
  %v751 = vmul.u32 %v746, %v747
  %v752 = vmul.u32 %v746, %v748
  %v753 = vshll.u32 %v750, 16
  %v754 = vshrl.u32 %v750, 16
  %v755 = vshll.u32 %v751, 16
  %v756 = vshrl.u32 %v751, 16
  %vm757 = vc.u32 %v749, %v753
  %v758 = vsel %vm757, 1, 0
  %v759 = vadd.s32 %v749, %v753
  %v760 = vadd.s32 %v752, %v758
  %vm761 = vc.u32 %v759, %v755
  %v762 = vsel %vm761, 1, 0
  %v763 = vadd.s32 %v759, %v755
  %v764 = vadd.s32 %v760, %v762
  %v765 = vadd.s32 %v764, %v754
  %v766 = vadd.s32 %v765, %v756
  %v767 = vand.u32 %v744, 65535
  %v768 = vshrl.u32 %v744, 16
  %v769 = vand.u32 %v739, 65535
  %v770 = vshrl.u32 %v739, 16
  %v771 = vmul.u32 %v767, %v769
  %v772 = vmul.u32 %v767, %v770
  %v773 = vmul.u32 %v768, %v769
  %v774 = vmul.u32 %v768, %v770
  %v775 = vshll.u32 %v772, 16
  %v776 = vshrl.u32 %v772, 16
  %v777 = vshll.u32 %v773, 16
  %v778 = vshrl.u32 %v773, 16
  %vm779 = vc.u32 %v771, %v775
  %v780 = vsel %vm779, 1, 0
  %v781 = vadd.s32 %v771, %v775
  %v782 = vadd.s32 %v774, %v780
  %vm783 = vc.u32 %v781, %v777
  %v784 = vsel %vm783, 1, 0
  %v785 = vadd.s32 %v781, %v777
  %v786 = vadd.s32 %v782, %v784
  %v787 = vadd.s32 %v786, %v776
  %v788 = vadd.s32 %v787, %v778
  %v789 = vmul.u32 %v744, %v735
  %v790 = vadd.s32 %v766, %v785
  %vm791 = vc.u32 %v766, %v785
  %v792 = vadd.s32 %v788, 1
  %v793 = vsel %vm791, %v792, %v788
  %v794 = vadd.s32 %v789, %v793
  %v795 = vadd.s32 %v794, 536870912
  %v796 = vshrl.u32 %v795, 30
  %v797 = vshll.u32 %v796, 30
  %v798 = vsub.s32 %v794, %v797
  %vm799 = vcmp.lt.s32.totalorder %v798, 0
  %v800 = vsub.s32 0, %v798
  %v801 = vsel %vm799, %v800, %v798
  %v802 = vclz %v801
  %v803 = vsub.s32 %v802, 2
  %vm804 = vcmp.gt.s32.totalorder 0, %v803
  %v805 = vsel %vm804, 0, %v803
  %v806 = vsub.s32 32, %v805
  %v807 = vshll.u32 %v798, %v805
  %v808 = vshrl.u32 %v790, %v806
  %v809 = vor.u32 %v807, %v808
  %v810 = vsub.s32 4294967266, %v805
  %v811 = vadd.s32 %v810, 127
  %v812 = vshll.u32 %v811, 23
  %v813 = vor.u32 4788187, %v812
  %v814 = vand.u32 2147483647, %v813
  %v816 = vcvt.s32.f32 %v809
  %v817 = vmul.f32 %v816, %v814
  %v818 = vxor.u32 %v817, 2147483648
  %v819 = vsel %vm698, %v818, %v817
  %v820 = vsub.s32 4, %v796
  %v821 = vsel %vm698, %v820, %v796
  %v822 = vsel %vm697, %v230, %v819
  %v823 = vsel %vm697, 0, %v821
  %v824 = vmul.f32 %v822, %v822
  %v825 = vmul.f32 %v824, -0.001358992
  %v826 = vadd.f32 %v825, 0.041655596
  %v827 = vmul.f32 %v824, %v826
  %v828 = vadd.f32 %v827, -0.4999988
  %v829 = vmul.f32 %v824, %v828
  %v830 = vadd.f32 1.0, %v829
  %v831 = vmul.f32 %v822, %v822
  %v832 = vmul.f32 %v831, -0.00019511016
  %v833 = vadd.f32 %v832, 0.008332121
  %v834 = vmul.f32 %v831, %v833
  %v835 = vadd.f32 %v834, -0.16666654
  %v836 = vmul.f32 %v831, %v835
  %v837 = vadd.f32 %v836, 1.0
  %v838 = vmul.f32 %v837, %v822
  %vm839 = vweird.f32 %v230
  %v840 = vadd.s32 %v823, 3
  %v841 = vand.u32 %v840, 3
  %vm842 = vcmp.lt.s32.totalorder %v841, 2
  %vm843 = vcmp.eq.s32.totalorder %v841, 0
  %v844 = vxor.u32 %v838, 2147483648
  %v845 = vsel %vm843, %v830, %v844
  %vm846 = vcmp.eq.s32.totalorder %v841, 2
  %v847 = vxor.u32 %v830, 2147483648
  %v848 = vsel %vm846, %v847, %v838
  %v849 = vsel %vm842, %v845, %v848
  %v850 = vsel %vm839, nan, %v849
  %v851 = vmul.f32 %v223, %v695
  %v852 = vmul.f32 %v225, %v850
  %v853 = vmul.f32 %v215, %v215
  %v854 = vmul.f32 %v216, %v216
  %v855 = vadd.f32 %v853, %v854
  %v856 = vrcp.pop %v855
  %v857 = vmul.f32 %v855, %v856
  %v858 = vsub.f32 1.0, %v857
  %v859 = vmul.f32 %v856, %v858
  %v860 = vadd.f32 %v856, %v859
  %vm861 = vweird.f32 %v855
  %vm862 = vweird.f32 %v856
  %vm863 = vmor %vm861, %vm862
  %v864 = vsel %vm863, %v856, %v860
  %v865 = vand.u32 2147483647, %v855
  %vm866 = vcmp.eq.f32.partialorder %v865, 8.507059e+37
  %v867 = vand.u32 %v855, 2147483648
  %v868 = vor.u32 1.1754944e-38, %v867
  %v869 = vsel %vm866, %v868, %v864
  %v870 = vmul.f32 %v215, %v869
  %v871 = vsub.f32 0.0, %v216
  %v872 = vmul.f32 %v871, %v869
  %v873 = vsub.f32 %v539, 1.0
  %v874 = vsub.f32 %v540, 1.0
  %v876 = vperm.slane %v870, 0
  %v878 = vmul.f32 %v873, %v876
  %v879 = vmul.f32 %v874, %v876
  %v881 = vperm.slane %v872, 0
  %v883 = vmul.f32 %v851, %v881
  %v884 = vmul.f32 %v852, %v881
  %v885 = vsub.f32 %v878, %v883
  %v886 = vsub.f32 %v879, %v884
  %v887 = vmul.f32 %v873, %v881
  %v888 = vmul.f32 %v874, %v881
  %v889 = vmul.f32 %v851, %v876
  %v890 = vmul.f32 %v852, %v876
  %v891 = vadd.f32 %v887, %v889
  %v892 = vadd.f32 %v888, %v890
  %v893 = vmul.f32 %v885, %v192
  %v894 = vmul.f32 %v886, %v195
  %897 = vrot.lane.b32.xlu0 %v192, 96
  %v898 = vpop.permute.xlu0 %897
  %899 = vrot.lane.b32.xlu0 %v195, 96
  %v900 = vpop.permute.xlu0 %899
  %v903 = vmul.f32 %v891, %v898
  %v904 = vmul.f32 %v892, %v900
  %v905 = vsub.f32 %v893, %v903
  %v906 = vsub.f32 %v894, %v904
  %v907 = vmul.f32 %v885, %v898
  %v908 = vmul.f32 %v886, %v900
  %v909 = vmul.f32 %v891, %v192
  %v910 = vmul.f32 %v892, %v195
  %v911 = vadd.f32 %v907, %v909
  %v912 = vadd.f32 %v908, %v910
  %v913 = vmul.f32 %v539, 0.0
  %v914 = vmul.f32 %v851, 0.0
  %v915 = vsub.f32 %v913, %v914
  %v916 = vadd.f32 %v915, %v905
  %v917 = vadd.f32 %v913, %v914
  %v918 = vadd.f32 %v917, %v911
  %920 = vrot.lane.b32.xlu0 %v918, 32
  %v921 = vpop.permute.xlu0 %920
  %v923 = vsel %vm102, %v916, %v921
  %v925 = vrot.slane %v916, 6
  %v927 = vmul.f32 %v539, %v925
  %v928 = vrot.slane %v918, 6
  %v930 = vmul.f32 %v851, %v928
  %v931 = vsub.f32 %v927, %v930
  %v932 = vadd.f32 %v931, %v905
  %v933 = vmul.f32 %v539, %v928
  %v934 = vmul.f32 %v851, %v925
  %v935 = vadd.f32 %v933, %v934
  %v936 = vadd.f32 %v935, %v911
  %938 = vrot.lane.b32.xlu0 %v936, 32
  %v939 = vpop.permute.xlu0 %938
  %v941 = vsel %vm102, %v932, %v939
  %v943 = vrot.slane %v932, 6
  %v945 = vmul.f32 %v539, %v943
  %v946 = vrot.slane %v936, 6
  %v948 = vmul.f32 %v851, %v946
  %v949 = vsub.f32 %v945, %v948
  %v950 = vadd.f32 %v949, %v905
  %v951 = vmul.f32 %v539, %v946
  %v952 = vmul.f32 %v851, %v943
  %v953 = vadd.f32 %v951, %v952
  %v954 = vadd.f32 %v953, %v911
  %956 = vrot.lane.b32.xlu0 %v954, 32
  %v957 = vpop.permute.xlu0 %956
  %v959 = vsel %vm102, %v950, %v957
  %v961 = vrot.slane %v950, 6
  %v963 = vmul.f32 %v539, %v961
  %v964 = vrot.slane %v954, 6
  %v966 = vmul.f32 %v851, %v964
  %v967 = vsub.f32 %v963, %v966
  %v968 = vadd.f32 %v967, %v905
  %v969 = vmul.f32 %v539, %v964
  %v970 = vmul.f32 %v851, %v961
  %v971 = vadd.f32 %v969, %v970
  %v972 = vadd.f32 %v971, %v911
  %974 = vrot.lane.b32.xlu0 %v972, 32
  %v975 = vpop.permute.xlu0 %974
  %v977 = vsel %vm102, %v968, %v975
  %v979 = vrot.slane %v968, 6
  %v981 = vmul.f32 %v540, %v979
  %v982 = vrot.slane %v972, 6
  %v984 = vmul.f32 %v852, %v982
  %v985 = vsub.f32 %v981, %v984
  %v986 = vadd.f32 %v985, %v906
  %v987 = vmul.f32 %v540, %v982
  %v988 = vmul.f32 %v852, %v979
  %v989 = vadd.f32 %v987, %v988
  %v990 = vadd.f32 %v989, %v912
  %992 = vrot.lane.b32.xlu0 %v990, 32
  %v993 = vpop.permute.xlu0 %992
  %v995 = vsel %vm102, %v986, %v993
  %v997 = vrot.slane %v986, 6
  %v999 = vmul.f32 %v540, %v997
  %v1000 = vrot.slane %v990, 6
  %v1002 = vmul.f32 %v852, %v1000
  %v1003 = vsub.f32 %v999, %v1002
  %v1004 = vadd.f32 %v1003, %v906
  %v1005 = vmul.f32 %v540, %v1000
  %v1006 = vmul.f32 %v852, %v997
  %v1007 = vadd.f32 %v1005, %v1006
  %v1008 = vadd.f32 %v1007, %v912
  %1010 = vrot.lane.b32.xlu0 %v1008, 32
  %v1011 = vpop.permute.xlu0 %1010
  %v1013 = vsel %vm102, %v1004, %v1011
  %v1015 = vrot.slane %v1004, 6
  %v1017 = vmul.f32 %v540, %v1015
  %v1018 = vrot.slane %v1008, 6
  %v1020 = vmul.f32 %v852, %v1018
  %v1021 = vsub.f32 %v1017, %v1020
  %v1022 = vadd.f32 %v1021, %v906
  %v1023 = vmul.f32 %v540, %v1018
  %v1024 = vmul.f32 %v852, %v1015
  %v1025 = vadd.f32 %v1023, %v1024
  %v1026 = vadd.f32 %v1025, %v912
  %1028 = vrot.lane.b32.xlu0 %v1026, 32
  %v1029 = vpop.permute.xlu0 %1028
  %v1031 = vsel %vm102, %v1022, %v1029
  %v1033 = vrot.slane %v1022, 6
  %v1035 = vmul.f32 %v540, %v1033
  %v1036 = vrot.slane %v1026, 6
  %v1038 = vmul.f32 %v852, %v1036
  %v1039 = vsub.f32 %v1035, %v1038
  %v1040 = vadd.f32 %v1039, %v906
  %v1041 = vmul.f32 %v540, %v1036
  %v1042 = vmul.f32 %v852, %v1033
  %v1043 = vadd.f32 %v1041, %v1042
  %v1044 = vadd.f32 %v1043, %v912
  %1046 = vrot.lane.b32.xlu0 %v1044, 32
  %v1047 = vpop.permute.xlu0 %1046
  %v1049 = vsel %vm102, %v1040, %v1047
  %vm1050 = vcmask 1041408
  %v1051 = vsel %vm1050, %v923, %v941
  %vm1052 = vcmask 1043456
  %v1053 = vsel %vm1052, %v1051, %v959
  %vm1054 = vcmask 1045504
  %v1055 = vsel %vm1054, %v1053, %v977
  %v1056 = vsel %vm1050, %v995, %v1013
  %v1057 = vsel %vm1052, %v1056, %v1031
  %v1058 = vsel %vm1054, %v1057, %v1049
  %v1059 = vld [vmem:[%s10] sm:$0xff]
  %v1060 = vld [vmem:[%s10 + $0x8] sm:$0xff]
  %v1061 = vld [vmem:[%s10 + $0x10] sm:$0xff]
  %v1062 = vld [vmem:[%s10 + $0x18] sm:$0xff]
  %v1063 = vld [vmem:[%s10 + $0x20] sm:$0xff]
  %v1064 = vld [vmem:[%s10 + $0x28] sm:$0xff]
  %v1065 = vld [vmem:[%s10 + $0x30] sm:$0xff]
  %v1066 = vld [vmem:[%s10 + $0x38] sm:$0xff]
  %vm1067 = vcmask 523264
  %v1069 = vsel %vm1067, %v1055, 0
  %v1072 = vsel %vm1067, %v1058, 0
  %1074 = vmatpush.msra.mxu0 0.0
  %1075 = vmatpush.msra.mxu0 0.0
  %1076 = vmatpush.msra.mxu0 0.0
  %1077 = vmatpush.msra.mxu0 0.0
  %1078 = vmatpush.msra.mxu0 0.0
  %1079 = vmatpush.msra.mxu0 0.0
  %1080 = vmatpush.msra.mxu0 0.0
  %1081 = vmatpush.msra.mxu0 0.0
  %1082 = vmatpush.msra.mxu0 %v1066
  %1083 = vmatpush.msra.mxu0 %v1065
  %1084 = vmatpush.msra.mxu0 %v1064
  %1085 = vmatpush.msra.mxu0 %v1063
  %1086 = vmatpush.msra.mxu0 %v1062
  %1087 = vmatpush.msra.mxu0 %v1061
  %1088 = vmatpush.msra.mxu0 %v1060
  %1089 = vmatpush.msra.mxu0 %v1059
  %1090 = vmatmul.f32.gmra.mxu0 %v1069
  %v1091 = vpop.f32.mrf.mxu0
  %v1092 = vadd.f32 0.0, %v1091
  %1093 = vmatmul.f32.gmra.mxu0 %v1072
  %v1094 = vpop.f32.mrf.mxu0
  %v1095 = vadd.f32 0.0, %v1094
  %1096 = vdwg.mxu0
  %v1097 = vmul.f32 %v1092, 2.0
  %v1098 = vmul.f32 %v1095, 2.0
  %v1099 = vld [vmem:[%s11] sm:$0x1]
  %v1101 = vperm.slane %v1099, 0
  %v1103 = vmul.f32 %v1101, %v162
  %v1104 = vmul.f32 %v1101, %v163
  %v1105 = vadd.f32 %v1097, %v1103
  %v1106 = vadd.f32 %v1098, %v1104
  %v1107 = vmul.f32 %v1105, %v1105
  %v1108 = vmul.f32 %v1106, %v1106
  %v1109 = vmul.f32 %v1105, %v1107
  %v1110 = vmul.f32 %v1106, %v1108
  %v1111 = vmul.f32 %v1109, 0.044715
  %v1112 = vmul.f32 %v1110, 0.044715
  %v1113 = vadd.f32 %v1105, %v1111
  %v1114 = vadd.f32 %v1106, %v1112
  %v1115 = vmul.f32 %v1113, 0.7978846
  %v1116 = vmul.f32 %v1114, 0.7978846
  %v1117 = vtanh.pop %v1115
  %v1118 = vtanh.pop %v1116
  %v1119 = vadd.f32 %v1117, 1.0
  %v1120 = vadd.f32 %v1118, 1.0
  %v1121 = vmul.f32 %v1119, 0.5
  %v1122 = vmul.f32 %v1120, 0.5
  %v1123 = vmul.f32 %v1105, %v1121
  %v1124 = vmul.f32 %v1106, %v1122
  %v1125 = vadd.f32 %v1123, %v162
  %v1126 = vadd.f32 %v1124, %v163
  %v1127 = vld [vmem:[%s12] sm:$0x1]
  %v1128 = vld [vmem:[%s13] sm:$0x1]
  %v1129 = vsel %vm102, %v1125, 0.0
  %1130 = vadd.xlane.f32.xlu0 %v1129
  %v1131 = vpop.xlane.xlu0 %1130
  %v1132 = vsel %vm102, %v1126, 0.0
  %1133 = vadd.xlane.f32.xlu0 %v1132
  %v1134 = vpop.xlane.xlu0 %1133
  %v1135 = vmul.f32 %v1131, %v115
  %v1136 = vmul.f32 %v1134, %v115
  %v1137 = vsub.f32 %v1125, %v1135
  %v1138 = vsub.f32 %v1126, %v1136
  %v1139 = vmul.f32 %v1137, %v1137
  %v1140 = vmul.f32 %v1138, %v1138
  %v1141 = vsel %vm102, %v1139, 0.0
  %1142 = vadd.xlane.f32.xlu0 %v1141
  %v1143 = vpop.xlane.xlu0 %1142
  %v1144 = vsel %vm102, %v1140, 0.0
  %1145 = vadd.xlane.f32.xlu0 %v1144
  %v1146 = vpop.xlane.xlu0 %1145
  %v1147 = vmul.f32 %v1143, %v115
  %v1148 = vmul.f32 %v1146, %v115
  %v1149 = vadd.f32 %v1147, 1e-05
  %v1150 = vadd.f32 %v1148, 1e-05
  %v1151 = vrsqrt.pop %v1149
  %v1152 = vmul.f32 %v1151, %v1149
  %v1153 = vmul.f32 %v1152, %v1151
  %v1154 = vmul.f32 0.5, %v1153
  %v1155 = vsub.f32 1.5, %v1154
  %v1156 = vmul.f32 %v1151, %v1155
  %vm1157 = vweird.f32 %v1149
  %vm1158 = vweird.f32 %v1151
  %vm1159 = vmor %vm1157, %vm1158
  %v1160 = vsel %vm1159, %v1151, %v1156
  %v1161 = vrsqrt.pop %v1150
  %v1162 = vmul.f32 %v1161, %v1150
  %v1163 = vmul.f32 %v1162, %v1161
  %v1164 = vmul.f32 0.5, %v1163
  %v1165 = vsub.f32 1.5, %v1164
  %v1166 = vmul.f32 %v1161, %v1165
  %vm1167 = vweird.f32 %v1150
  %vm1168 = vweird.f32 %v1161
  %vm1169 = vmor %vm1167, %vm1168
  %v1170 = vsel %vm1169, %v1161, %v1166
  %v1171 = vmul.f32 %v1137, %v1160
  %v1172 = vmul.f32 %v1138, %v1170
  %v1174 = vperm.slane %v1127, 0
  %v1176 = vmul.f32 %v1171, %v1174
  %v1177 = vmul.f32 %v1172, %v1174
  %v1179 = vperm.slane %v1128, 0
  %v1181 = vadd.f32 %v1176, %v1179
  %v1182 = vadd.f32 %v1177, %v1179
  %v1183 = vld [vmem:[%s14] sm:$0xff]
  %v1184 = vld [vmem:[%s14 + $0x8] sm:$0xff]
  %v1185 = vld [vmem:[%s14 + $0x10] sm:$0xff]
  %v1186 = vld [vmem:[%s14 + $0x18] sm:$0xff]
  %v1188 = vsel %vm102, %v1181, 0
  %v1191 = vsel %vm102, %v1182, 0
  %1193 = vmatpush.msra.mxu0 0.0
  %1194 = vmatpush.msra.mxu0 0.0
  %1195 = vmatpush.msra.mxu0 0.0
  %1196 = vmatpush.msra.mxu0 0.0
  %1197 = vmatpush.msra.mxu0 0.0
  %1198 = vmatpush.msra.mxu0 0.0
  %1199 = vmatpush.msra.mxu0 0.0
  %1200 = vmatpush.msra.mxu0 0.0
  %1201 = vmatpush.msra.mxu0 0.0
  %1202 = vmatpush.msra.mxu0 0.0
  %1203 = vmatpush.msra.mxu0 0.0
  %1204 = vmatpush.msra.mxu0 0.0
  %1205 = vmatpush.msra.mxu0 %v1186
  %1206 = vmatpush.msra.mxu0 %v1185
  %1207 = vmatpush.msra.mxu0 %v1184
  %1208 = vmatpush.msra.mxu0 %v1183
  %1209 = vmatmul.f32.gmra.mxu0 %v1188
  %v1210 = vpop.f32.mrf.mxu0
  %v1211 = vadd.f32 0.0, %v1210
  %1212 = vmatmul.f32.gmra.mxu0 %v1191
  %v1213 = vpop.f32.mrf.mxu0
  %v1214 = vadd.f32 0.0, %v1213
  %1215 = vdwg.mxu0
  %v1216 = vmul.f32 %v1211, %v1211
  %v1217 = vmul.f32 %v1214, %v1214
  %v1218 = vmul.f32 %v1211, %v1216
  %v1219 = vmul.f32 %v1214, %v1217
  %v1220 = vmul.f32 %v1218, 0.044715
  %v1221 = vmul.f32 %v1219, 0.044715
  %v1222 = vadd.f32 %v1211, %v1220
  %v1223 = vadd.f32 %v1214, %v1221
  %v1224 = vmul.f32 %v1222, 0.7978846
  %v1225 = vmul.f32 %v1223, 0.7978846
  %v1226 = vtanh.pop %v1224
  %v1227 = vtanh.pop %v1225
  %v1228 = vadd.f32 %v1226, 1.0
  %v1229 = vadd.f32 %v1227, 1.0
  %v1230 = vmul.f32 %v1228, 0.5
  %v1231 = vmul.f32 %v1229, 0.5
  %v1232 = vmul.f32 %v1211, %v1230
  %v1233 = vmul.f32 %v1214, %v1231
  %1236 = vrot.lane.b32.xlu0 %v1232, 96
  %v1237 = vpop.permute.xlu0 %1236
  %1238 = vrot.lane.b32.xlu0 %v1233, 96
  %v1239 = vpop.permute.xlu0 %1238
  %v1242 = vmul.f32 %v1211, %v1237
  %v1243 = vmul.f32 %v1214, %v1239
  %v1244 = vld [vmem:[%s15] sm:$0xff]
  %v1245 = vld [vmem:[%s15 + $0x8] sm:$0xff]
  %v1246 = vld [vmem:[%s15 + $0x10] sm:$0xff]
  %v1247 = vld [vmem:[%s15 + $0x18] sm:$0xff]
  %v1249 = vsel %vm102, %v1242, 0
  %v1252 = vsel %vm102, %v1243, 0
  %1254 = vmatpush.msra.mxu0 0.0
  %1255 = vmatpush.msra.mxu0 0.0
  %1256 = vmatpush.msra.mxu0 0.0
  %1257 = vmatpush.msra.mxu0 0.0
  %1258 = vmatpush.msra.mxu0 0.0
  %1259 = vmatpush.msra.mxu0 0.0
  %1260 = vmatpush.msra.mxu0 0.0
  %1261 = vmatpush.msra.mxu0 0.0
  %1262 = vmatpush.msra.mxu0 0.0
  %1263 = vmatpush.msra.mxu0 0.0
  %1264 = vmatpush.msra.mxu0 0.0
  %1265 = vmatpush.msra.mxu0 0.0
  %1266 = vmatpush.msra.mxu0 %v1247
  %1267 = vmatpush.msra.mxu0 %v1246
  %1268 = vmatpush.msra.mxu0 %v1245
  %1269 = vmatpush.msra.mxu0 %v1244
  %1270 = vmatmul.f32.gmra.mxu0 %v1249
  %v1271 = vpop.f32.mrf.mxu0
  %v1272 = vadd.f32 %v1181, %v1271
  %1273 = vmatmul.f32.gmra.mxu0 %v1252
  %v1274 = vpop.f32.mrf.mxu0
  %v1275 = vadd.f32 %v1182, %v1274
  %1276 = vdwg.mxu0
  %s1277 = scalar_lea.vmem %s4, 1
  %v1278 = vld [vmem:[%s1277] sm:$0x1]
  %s1279 = scalar_lea.vmem %s5, 1
  %v1280 = vld [vmem:[%s1279] sm:$0x1]
  %v1281 = vsel %vm102, %v1272, 0.0
  %1282 = vadd.xlane.f32.xlu0 %v1281
  %v1283 = vpop.xlane.xlu0 %1282
  %v1284 = vsel %vm102, %v1275, 0.0
  %1285 = vadd.xlane.f32.xlu0 %v1284
  %v1286 = vpop.xlane.xlu0 %1285
  %v1287 = vmul.f32 %v1283, %v115
  %v1288 = vmul.f32 %v1286, %v115
  %v1289 = vsub.f32 %v1272, %v1287
  %v1290 = vsub.f32 %v1275, %v1288
  %v1291 = vmul.f32 %v1289, %v1289
  %v1292 = vmul.f32 %v1290, %v1290
  %v1293 = vsel %vm102, %v1291, 0.0
  %1294 = vadd.xlane.f32.xlu0 %v1293
  %v1295 = vpop.xlane.xlu0 %1294
  %v1296 = vsel %vm102, %v1292, 0.0
  %1297 = vadd.xlane.f32.xlu0 %v1296
  %v1298 = vpop.xlane.xlu0 %1297
  %v1299 = vmul.f32 %v1295, %v115
  %v1300 = vmul.f32 %v1298, %v115
  %v1301 = vadd.f32 %v1299, 1e-05
  %v1302 = vadd.f32 %v1300, 1e-05
  %v1303 = vrsqrt.pop %v1301
  %v1304 = vmul.f32 %v1303, %v1301
  %v1305 = vmul.f32 %v1304, %v1303
  %v1306 = vmul.f32 0.5, %v1305
  %v1307 = vsub.f32 1.5, %v1306
  %v1308 = vmul.f32 %v1303, %v1307
  %vm1309 = vweird.f32 %v1301
  %vm1310 = vweird.f32 %v1303
  %vm1311 = vmor %vm1309, %vm1310
  %v1312 = vsel %vm1311, %v1303, %v1308
  %v1313 = vrsqrt.pop %v1302
  %v1314 = vmul.f32 %v1313, %v1302
  %v1315 = vmul.f32 %v1314, %v1313
  %v1316 = vmul.f32 0.5, %v1315
  %v1317 = vsub.f32 1.5, %v1316
  %v1318 = vmul.f32 %v1313, %v1317
  %vm1319 = vweird.f32 %v1302
  %vm1320 = vweird.f32 %v1313
  %vm1321 = vmor %vm1319, %vm1320
  %v1322 = vsel %vm1321, %v1313, %v1318
  %v1323 = vmul.f32 %v1289, %v1312
  %v1324 = vmul.f32 %v1290, %v1322
  %v1326 = vperm.slane %v1278, 0
  %v1328 = vmul.f32 %v1323, %v1326
  %v1329 = vmul.f32 %v1324, %v1326
  %v1331 = vperm.slane %v1280, 0
  %v1333 = vadd.f32 %v1328, %v1331
  %v1334 = vadd.f32 %v1329, %v1331
  %s1335 = scalar_lea.vmem %s9, 32
  %v1336 = vld [vmem:[%s1335] sm:$0xff]
  %v1337 = vld [vmem:[%s1335 + $0x8] sm:$0xff]
  %v1338 = vld [vmem:[%s1335 + $0x10] sm:$0xff]
  %v1339 = vld [vmem:[%s1335 + $0x18] sm:$0xff]
  %v1341 = vsel %vm102, %v1333, 0
  %v1344 = vsel %vm102, %v1334, 0
  %1346 = vmatpush.msra.mxu0 0.0
  %1347 = vmatpush.msra.mxu0 0.0
  %1348 = vmatpush.msra.mxu0 0.0
  %1349 = vmatpush.msra.mxu0 0.0
  %1350 = vmatpush.msra.mxu0 0.0
  %1351 = vmatpush.msra.mxu0 0.0
  %1352 = vmatpush.msra.mxu0 0.0
  %1353 = vmatpush.msra.mxu0 0.0
  %1354 = vmatpush.msra.mxu0 0.0
  %1355 = vmatpush.msra.mxu0 0.0
  %1356 = vmatpush.msra.mxu0 0.0
  %1357 = vmatpush.msra.mxu0 0.0
  %1358 = vmatpush.msra.mxu0 %v1339
  %1359 = vmatpush.msra.mxu0 %v1338
  %1360 = vmatpush.msra.mxu0 %v1337
  %1361 = vmatpush.msra.mxu0 %v1336
  %1362 = vmatmul.f32.gmra.mxu0 %v1341
  %v1363 = vpop.f32.mrf.mxu0
  %v1364 = vadd.f32 0.0, %v1363
  %1365 = vmatmul.f32.gmra.mxu0 %v1344
  %v1366 = vpop.f32.mrf.mxu0
  %v1367 = vadd.f32 0.0, %v1366
  %1368 = vdwg.mxu0
  %s1369 = scalar_lea.vmem %s8, 1
  %v1370 = vld [vmem:[%s1369] sm:$0x1]
  %v1371 = vmul.f32 %v1370, 1.442695
  %v1372 = vpow.pop %v1371
  %v1374 = vperm.slane %v1372, 0
  %v1376 = vmul.f32 %v203, %v1374
  %v1377 = vmul.f32 %v208, %v1374
  %s1378 = scalar_lea.vmem %s6, 1
  %v1379 = vld [vmem:[%s1378] sm:$0x1]
  %s1380 = scalar_lea.vmem %s7, 1
  %v1381 = vld [vmem:[%s1380] sm:$0x1]
  %v1383 = vperm.slane %v1379, 0
  %v1385 = vmul.f32 %v1383, %v1376
  %v1386 = vmul.f32 %v1383, %v1377
  %v1387 = vmul.f32 %v1385, 1.442695
  %v1388 = vpow.pop %v1387
  %v1389 = vmul.f32 %v1386, 1.442695
  %v1390 = vpow.pop %v1389
  %v1392 = vperm.slane %v1381, 0
  %v1394 = vmul.f32 %v1392, %v1376
  %v1395 = vmul.f32 %v1392, %v1377
  %v1396 = vand.u32 2147483647, %v1394
  %vm1397 = vcmp.le.f32.partialorder %v1396, 0.7853982
  %vm1398 = vcmp.lt.s32.totalorder %v1394, 0
  %v1399 = vand.u32 %v1394, 2139095040
  %v1400 = vshrl.u32 %v1399, 23
  %v1401 = vsub.s32 %v1400, 127
  %v1402 = vand.u32 2147483647, %v1394
  %v1403 = vand.u32 %v1402, 8388607
  %v1404 = vor.u32 %v1403, 8388608
  %v1405 = vsub.s32 0, %v1404
  %v1406 = vadd.s32 %v1401, 1
  %vm1407 = vcmp.gt.s32.totalorder %v1406, 0
  %v1408 = vsel %vm1407, %v1406, 0
  %v1409 = vshrl.u32 %v1408, 5
  %v1410 = vand.u32 %v1408, 31
  %v1411 = vsub.s32 32, %v1410
  %v1412 = vshrl.u32 683565275, %v1411
  %v1413 = vshll.u32 683565275, %v1410
  %v1414 = vshrl.u32 2475754826, %v1411
  %v1415 = vor.u32 %v1413, %v1414
  %v1416 = vshll.u32 2475754826, %v1410
  %v1417 = vshrl.u32 2131351028, %v1411
  %v1418 = vor.u32 %v1416, %v1417
  %v1419 = vshll.u32 2131351028, %v1410
  %v1420 = vshrl.u32 2102212464, %v1411
  %v1421 = vor.u32 %v1419, %v1420
  %v1422 = vshll.u32 2102212464, %v1410
  %v1423 = vshrl.u32 920167782, %v1411
  %v1424 = vor.u32 %v1422, %v1423
  %v1425 = vshll.u32 920167782, %v1410
  %v1426 = vshrl.u32 1326507024, %v1411
  %v1427 = vor.u32 %v1425, %v1426
  %vm1428 = vcmp.lt.s32.totalorder %v1409, 1
  %vm1429 = vcmp.lt.s32.totalorder %v1409, 2
  %vm1430 = vcmp.lt.s32.totalorder %v1409, 3
  %vm1431 = vcmp.lt.s32.totalorder %v1409, 4
  %v1432 = vsel %vm1428, %v1412, %v1415
  %v1433 = vsel %vm1431, %v1421, 2102212464
  %v1434 = vsel %vm1430, %v1418, %v1433
  %v1435 = vsel %vm1429, %v1432, %v1434
  %v1436 = vsel %vm1428, %v1415, %v1418
  %v1437 = vsel %vm1431, %v1424, 920167782
  %v1438 = vsel %vm1430, %v1421, %v1437
  %v1439 = vsel %vm1429, %v1436, %v1438
  %v1440 = vsel %vm1428, %v1418, %v1421
  %v1441 = vsel %vm1431, %v1427, 1326507024
  %v1442 = vsel %vm1430, %v1424, %v1441
  %v1443 = vsel %vm1429, %v1440, %v1442
  %v1444 = vshll.u32 %v1404, 8
  %v1445 = vand.u32 %v1444, 65535
  %v1446 = vshrl.u32 %v1444, 16
  %v1447 = vand.u32 %v1443, 65535
  %v1448 = vshrl.u32 %v1443, 16
  %v1449 = vmul.u32 %v1445, %v1447
  %v1450 = vmul.u32 %v1445, %v1448
  %v1451 = vmul.u32 %v1446, %v1447
  %v1452 = vmul.u32 %v1446, %v1448
  %v1453 = vshll.u32 %v1450, 16
  %v1454 = vshrl.u32 %v1450, 16
  %v1455 = vshll.u32 %v1451, 16
  %v1456 = vshrl.u32 %v1451, 16
  %vm1457 = vc.u32 %v1449, %v1453
  %v1458 = vsel %vm1457, 1, 0
  %v1459 = vadd.s32 %v1449, %v1453
  %v1460 = vadd.s32 %v1452, %v1458
  %vm1461 = vc.u32 %v1459, %v1455
  %v1462 = vsel %vm1461, 1, 0
  %v1463 = vadd.s32 %v1459, %v1455
  %v1464 = vadd.s32 %v1460, %v1462
  %v1465 = vadd.s32 %v1464, %v1454
  %v1466 = vadd.s32 %v1465, %v1456
  %v1467 = vand.u32 %v1444, 65535
  %v1468 = vshrl.u32 %v1444, 16
  %v1469 = vand.u32 %v1439, 65535
  %v1470 = vshrl.u32 %v1439, 16
  %v1471 = vmul.u32 %v1467, %v1469
  %v1472 = vmul.u32 %v1467, %v1470
  %v1473 = vmul.u32 %v1468, %v1469
  %v1474 = vmul.u32 %v1468, %v1470
  %v1475 = vshll.u32 %v1472, 16
  %v1476 = vshrl.u32 %v1472, 16
  %v1477 = vshll.u32 %v1473, 16
  %v1478 = vshrl.u32 %v1473, 16
  %vm1479 = vc.u32 %v1471, %v1475
  %v1480 = vsel %vm1479, 1, 0
  %v1481 = vadd.s32 %v1471, %v1475
  %v1482 = vadd.s32 %v1474, %v1480
  %vm1483 = vc.u32 %v1481, %v1477
  %v1484 = vsel %vm1483, 1, 0
  %v1485 = vadd.s32 %v1481, %v1477
  %v1486 = vadd.s32 %v1482, %v1484
  %v1487 = vadd.s32 %v1486, %v1476
  %v1488 = vadd.s32 %v1487, %v1478
  %v1489 = vmul.u32 %v1444, %v1435
  %v1490 = vadd.s32 %v1466, %v1485
  %vm1491 = vc.u32 %v1466, %v1485
  %v1492 = vadd.s32 %v1488, 1
  %v1493 = vsel %vm1491, %v1492, %v1488
  %v1494 = vadd.s32 %v1489, %v1493
  %v1495 = vadd.s32 %v1494, 536870912
  %v1496 = vshrl.u32 %v1495, 30
  %v1497 = vshll.u32 %v1496, 30
  %v1498 = vsub.s32 %v1494, %v1497
  %vm1499 = vcmp.lt.s32.totalorder %v1498, 0
  %v1500 = vsub.s32 0, %v1498
  %v1501 = vsel %vm1499, %v1500, %v1498
  %v1502 = vclz %v1501
  %v1503 = vsub.s32 %v1502, 2
  %vm1504 = vcmp.gt.s32.totalorder 0, %v1503
  %v1505 = vsel %vm1504, 0, %v1503
  %v1506 = vsub.s32 32, %v1505
  %v1507 = vshll.u32 %v1498, %v1505
  %v1508 = vshrl.u32 %v1490, %v1506
  %v1509 = vor.u32 %v1507, %v1508
  %v1510 = vsub.s32 4294967266, %v1505
  %v1511 = vadd.s32 %v1510, 127
  %v1512 = vshll.u32 %v1511, 23
  %v1513 = vor.u32 4788187, %v1512
  %v1514 = vand.u32 2147483647, %v1513
  %v1516 = vcvt.s32.f32 %v1509
  %v1517 = vmul.f32 %v1516, %v1514
  %v1518 = vxor.u32 %v1517, 2147483648
  %v1519 = vsel %vm1398, %v1518, %v1517
  %v1520 = vsub.s32 4, %v1496
  %v1521 = vsel %vm1398, %v1520, %v1496
  %v1522 = vsel %vm1397, %v1394, %v1519
  %v1523 = vsel %vm1397, 0, %v1521
  %v1524 = vmul.f32 %v1522, %v1522
  %v1525 = vmul.f32 %v1524, -0.001358992
  %v1526 = vadd.f32 %v1525, 0.041655596
  %v1527 = vmul.f32 %v1524, %v1526
  %v1528 = vadd.f32 %v1527, -0.4999988
  %v1529 = vmul.f32 %v1524, %v1528
  %v1530 = vadd.f32 1.0, %v1529
  %v1531 = vmul.f32 %v1522, %v1522
  %v1532 = vmul.f32 %v1531, -0.00019511016
  %v1533 = vadd.f32 %v1532, 0.008332121
  %v1534 = vmul.f32 %v1531, %v1533
  %v1535 = vadd.f32 %v1534, -0.16666654
  %v1536 = vmul.f32 %v1531, %v1535
  %v1537 = vadd.f32 %v1536, 1.0
  %v1538 = vmul.f32 %v1537, %v1522
  %vm1539 = vweird.f32 %v1394
  %v1540 = vand.u32 %v1523, 3
  %vm1541 = vcmp.lt.s32.totalorder %v1540, 2
  %vm1542 = vcmp.eq.s32.totalorder %v1540, 0
  %v1543 = vxor.u32 %v1538, 2147483648
  %v1544 = vsel %vm1542, %v1530, %v1543
  %vm1545 = vcmp.eq.s32.totalorder %v1540, 2
  %v1546 = vxor.u32 %v1530, 2147483648
  %v1547 = vsel %vm1545, %v1546, %v1538
  %v1548 = vsel %vm1541, %v1544, %v1547
  %v1549 = vsel %vm1539, nan, %v1548
  %v1550 = vand.u32 2147483647, %v1395
  %vm1551 = vcmp.le.f32.partialorder %v1550, 0.7853982
  %vm1552 = vcmp.lt.s32.totalorder %v1395, 0
  %v1553 = vand.u32 %v1395, 2139095040
  %v1554 = vshrl.u32 %v1553, 23
  %v1555 = vsub.s32 %v1554, 127
  %v1556 = vand.u32 2147483647, %v1395
  %v1557 = vand.u32 %v1556, 8388607
  %v1558 = vor.u32 %v1557, 8388608
  %v1559 = vsub.s32 0, %v1558
  %v1560 = vadd.s32 %v1555, 1
  %vm1561 = vcmp.gt.s32.totalorder %v1560, 0
  %v1562 = vsel %vm1561, %v1560, 0
  %v1563 = vshrl.u32 %v1562, 5
  %v1564 = vand.u32 %v1562, 31
  %v1565 = vsub.s32 32, %v1564
  %v1566 = vshrl.u32 683565275, %v1565
  %v1567 = vshll.u32 683565275, %v1564
  %v1568 = vshrl.u32 2475754826, %v1565
  %v1569 = vor.u32 %v1567, %v1568
  %v1570 = vshll.u32 2475754826, %v1564
  %v1571 = vshrl.u32 2131351028, %v1565
  %v1572 = vor.u32 %v1570, %v1571
  %v1573 = vshll.u32 2131351028, %v1564
  %v1574 = vshrl.u32 2102212464, %v1565
  %v1575 = vor.u32 %v1573, %v1574
  %v1576 = vshll.u32 2102212464, %v1564
  %v1577 = vshrl.u32 920167782, %v1565
  %v1578 = vor.u32 %v1576, %v1577
  %v1579 = vshll.u32 920167782, %v1564
  %v1580 = vshrl.u32 1326507024, %v1565
  %v1581 = vor.u32 %v1579, %v1580
  %vm1582 = vcmp.lt.s32.totalorder %v1563, 1
  %vm1583 = vcmp.lt.s32.totalorder %v1563, 2
  %vm1584 = vcmp.lt.s32.totalorder %v1563, 3
  %vm1585 = vcmp.lt.s32.totalorder %v1563, 4
  %v1586 = vsel %vm1582, %v1566, %v1569
  %v1587 = vsel %vm1585, %v1575, 2102212464
  %v1588 = vsel %vm1584, %v1572, %v1587
  %v1589 = vsel %vm1583, %v1586, %v1588
  %v1590 = vsel %vm1582, %v1569, %v1572
  %v1591 = vsel %vm1585, %v1578, 920167782
  %v1592 = vsel %vm1584, %v1575, %v1591
  %v1593 = vsel %vm1583, %v1590, %v1592
  %v1594 = vsel %vm1582, %v1572, %v1575
  %v1595 = vsel %vm1585, %v1581, 1326507024
  %v1596 = vsel %vm1584, %v1578, %v1595
  %v1597 = vsel %vm1583, %v1594, %v1596
  %v1598 = vshll.u32 %v1558, 8
  %v1599 = vand.u32 %v1598, 65535
  %v1600 = vshrl.u32 %v1598, 16
  %v1601 = vand.u32 %v1597, 65535
  %v1602 = vshrl.u32 %v1597, 16
  %v1603 = vmul.u32 %v1599, %v1601
  %v1604 = vmul.u32 %v1599, %v1602
  %v1605 = vmul.u32 %v1600, %v1601
  %v1606 = vmul.u32 %v1600, %v1602
  %v1607 = vshll.u32 %v1604, 16
  %v1608 = vshrl.u32 %v1604, 16
  %v1609 = vshll.u32 %v1605, 16
  %v1610 = vshrl.u32 %v1605, 16
  %vm1611 = vc.u32 %v1603, %v1607
  %v1612 = vsel %vm1611, 1, 0
  %v1613 = vadd.s32 %v1603, %v1607
  %v1614 = vadd.s32 %v1606, %v1612
  %vm1615 = vc.u32 %v1613, %v1609
  %v1616 = vsel %vm1615, 1, 0
  %v1617 = vadd.s32 %v1613, %v1609
  %v1618 = vadd.s32 %v1614, %v1616
  %v1619 = vadd.s32 %v1618, %v1608
  %v1620 = vadd.s32 %v1619, %v1610
  %v1621 = vand.u32 %v1598, 65535
  %v1622 = vshrl.u32 %v1598, 16
  %v1623 = vand.u32 %v1593, 65535
  %v1624 = vshrl.u32 %v1593, 16
  %v1625 = vmul.u32 %v1621, %v1623
  %v1626 = vmul.u32 %v1621, %v1624
  %v1627 = vmul.u32 %v1622, %v1623
  %v1628 = vmul.u32 %v1622, %v1624
  %v1629 = vshll.u32 %v1626, 16
  %v1630 = vshrl.u32 %v1626, 16
  %v1631 = vshll.u32 %v1627, 16
  %v1632 = vshrl.u32 %v1627, 16
  %vm1633 = vc.u32 %v1625, %v1629
  %v1634 = vsel %vm1633, 1, 0
  %v1635 = vadd.s32 %v1625, %v1629
  %v1636 = vadd.s32 %v1628, %v1634
  %vm1637 = vc.u32 %v1635, %v1631
  %v1638 = vsel %vm1637, 1, 0
  %v1639 = vadd.s32 %v1635, %v1631
  %v1640 = vadd.s32 %v1636, %v1638
  %v1641 = vadd.s32 %v1640, %v1630
  %v1642 = vadd.s32 %v1641, %v1632
  %v1643 = vmul.u32 %v1598, %v1589
  %v1644 = vadd.s32 %v1620, %v1639
  %vm1645 = vc.u32 %v1620, %v1639
  %v1646 = vadd.s32 %v1642, 1
  %v1647 = vsel %vm1645, %v1646, %v1642
  %v1648 = vadd.s32 %v1643, %v1647
  %v1649 = vadd.s32 %v1648, 536870912
  %v1650 = vshrl.u32 %v1649, 30
  %v1651 = vshll.u32 %v1650, 30
  %v1652 = vsub.s32 %v1648, %v1651
  %vm1653 = vcmp.lt.s32.totalorder %v1652, 0
  %v1654 = vsub.s32 0, %v1652
  %v1655 = vsel %vm1653, %v1654, %v1652
  %v1656 = vclz %v1655
  %v1657 = vsub.s32 %v1656, 2
  %vm1658 = vcmp.gt.s32.totalorder 0, %v1657
  %v1659 = vsel %vm1658, 0, %v1657
  %v1660 = vsub.s32 32, %v1659
  %v1661 = vshll.u32 %v1652, %v1659
  %v1662 = vshrl.u32 %v1644, %v1660
  %v1663 = vor.u32 %v1661, %v1662
  %v1664 = vsub.s32 4294967266, %v1659
  %v1665 = vadd.s32 %v1664, 127
  %v1666 = vshll.u32 %v1665, 23
  %v1667 = vor.u32 4788187, %v1666
  %v1668 = vand.u32 2147483647, %v1667
  %v1670 = vcvt.s32.f32 %v1663
  %v1671 = vmul.f32 %v1670, %v1668
  %v1672 = vxor.u32 %v1671, 2147483648
  %v1673 = vsel %vm1552, %v1672, %v1671
  %v1674 = vsub.s32 4, %v1650
  %v1675 = vsel %vm1552, %v1674, %v1650
  %v1676 = vsel %vm1551, %v1395, %v1673
  %v1677 = vsel %vm1551, 0, %v1675
  %v1678 = vmul.f32 %v1676, %v1676
  %v1679 = vmul.f32 %v1678, -0.001358992
  %v1680 = vadd.f32 %v1679, 0.041655596
  %v1681 = vmul.f32 %v1678, %v1680
  %v1682 = vadd.f32 %v1681, -0.4999988
  %v1683 = vmul.f32 %v1678, %v1682
  %v1684 = vadd.f32 1.0, %v1683
  %v1685 = vmul.f32 %v1676, %v1676
  %v1686 = vmul.f32 %v1685, -0.00019511016
  %v1687 = vadd.f32 %v1686, 0.008332121
  %v1688 = vmul.f32 %v1685, %v1687
  %v1689 = vadd.f32 %v1688, -0.16666654
  %v1690 = vmul.f32 %v1685, %v1689
  %v1691 = vadd.f32 %v1690, 1.0
  %v1692 = vmul.f32 %v1691, %v1676
  %vm1693 = vweird.f32 %v1395
  %v1694 = vand.u32 %v1677, 3
  %vm1695 = vcmp.lt.s32.totalorder %v1694, 2
  %vm1696 = vcmp.eq.s32.totalorder %v1694, 0
  %v1697 = vxor.u32 %v1692, 2147483648
  %v1698 = vsel %vm1696, %v1684, %v1697
  %vm1699 = vcmp.eq.s32.totalorder %v1694, 2
  %v1700 = vxor.u32 %v1684, 2147483648
  %v1701 = vsel %vm1699, %v1700, %v1692
  %v1702 = vsel %vm1695, %v1698, %v1701
  %v1703 = vsel %vm1693, nan, %v1702
  %v1704 = vmul.f32 %v1388, %v1549
  %v1705 = vmul.f32 %v1390, %v1703
  %v1706 = vand.u32 2147483647, %v1394
  %vm1707 = vcmp.le.f32.partialorder %v1706, 0.7853982
  %vm1708 = vcmp.lt.s32.totalorder %v1394, 0
  %v1709 = vand.u32 %v1394, 2139095040
  %v1710 = vshrl.u32 %v1709, 23
  %v1711 = vsub.s32 %v1710, 127
  %v1712 = vand.u32 2147483647, %v1394
  %v1713 = vand.u32 %v1712, 8388607
  %v1714 = vor.u32 %v1713, 8388608
  %v1715 = vsub.s32 0, %v1714
  %v1716 = vadd.s32 %v1711, 1
  %vm1717 = vcmp.gt.s32.totalorder %v1716, 0
  %v1718 = vsel %vm1717, %v1716, 0
  %v1719 = vshrl.u32 %v1718, 5
  %v1720 = vand.u32 %v1718, 31
  %v1721 = vsub.s32 32, %v1720
  %v1722 = vshrl.u32 683565275, %v1721
  %v1723 = vshll.u32 683565275, %v1720
  %v1724 = vshrl.u32 2475754826, %v1721
  %v1725 = vor.u32 %v1723, %v1724
  %v1726 = vshll.u32 2475754826, %v1720
  %v1727 = vshrl.u32 2131351028, %v1721
  %v1728 = vor.u32 %v1726, %v1727
  %v1729 = vshll.u32 2131351028, %v1720
  %v1730 = vshrl.u32 2102212464, %v1721
  %v1731 = vor.u32 %v1729, %v1730
  %v1732 = vshll.u32 2102212464, %v1720
  %v1733 = vshrl.u32 920167782, %v1721
  %v1734 = vor.u32 %v1732, %v1733
  %v1735 = vshll.u32 920167782, %v1720
  %v1736 = vshrl.u32 1326507024, %v1721
  %v1737 = vor.u32 %v1735, %v1736
  %vm1738 = vcmp.lt.s32.totalorder %v1719, 1
  %vm1739 = vcmp.lt.s32.totalorder %v1719, 2
  %vm1740 = vcmp.lt.s32.totalorder %v1719, 3
  %vm1741 = vcmp.lt.s32.totalorder %v1719, 4
  %v1742 = vsel %vm1738, %v1722, %v1725
  %v1743 = vsel %vm1741, %v1731, 2102212464
  %v1744 = vsel %vm1740, %v1728, %v1743
  %v1745 = vsel %vm1739, %v1742, %v1744
  %v1746 = vsel %vm1738, %v1725, %v1728
  %v1747 = vsel %vm1741, %v1734, 920167782
  %v1748 = vsel %vm1740, %v1731, %v1747
  %v1749 = vsel %vm1739, %v1746, %v1748
  %v1750 = vsel %vm1738, %v1728, %v1731
  %v1751 = vsel %vm1741, %v1737, 1326507024
  %v1752 = vsel %vm1740, %v1734, %v1751
  %v1753 = vsel %vm1739, %v1750, %v1752
  %v1754 = vshll.u32 %v1714, 8
  %v1755 = vand.u32 %v1754, 65535
  %v1756 = vshrl.u32 %v1754, 16
  %v1757 = vand.u32 %v1753, 65535
  %v1758 = vshrl.u32 %v1753, 16
  %v1759 = vmul.u32 %v1755, %v1757
  %v1760 = vmul.u32 %v1755, %v1758
  %v1761 = vmul.u32 %v1756, %v1757
  %v1762 = vmul.u32 %v1756, %v1758
  %v1763 = vshll.u32 %v1760, 16
  %v1764 = vshrl.u32 %v1760, 16
  %v1765 = vshll.u32 %v1761, 16
  %v1766 = vshrl.u32 %v1761, 16
  %vm1767 = vc.u32 %v1759, %v1763
  %v1768 = vsel %vm1767, 1, 0
  %v1769 = vadd.s32 %v1759, %v1763
  %v1770 = vadd.s32 %v1762, %v1768
  %vm1771 = vc.u32 %v1769, %v1765
  %v1772 = vsel %vm1771, 1, 0
  %v1773 = vadd.s32 %v1769, %v1765
  %v1774 = vadd.s32 %v1770, %v1772
  %v1775 = vadd.s32 %v1774, %v1764
  %v1776 = vadd.s32 %v1775, %v1766
  %v1777 = vand.u32 %v1754, 65535
  %v1778 = vshrl.u32 %v1754, 16
  %v1779 = vand.u32 %v1749, 65535
  %v1780 = vshrl.u32 %v1749, 16
  %v1781 = vmul.u32 %v1777, %v1779
  %v1782 = vmul.u32 %v1777, %v1780
  %v1783 = vmul.u32 %v1778, %v1779
  %v1784 = vmul.u32 %v1778, %v1780
  %v1785 = vshll.u32 %v1782, 16
  %v1786 = vshrl.u32 %v1782, 16
  %v1787 = vshll.u32 %v1783, 16
  %v1788 = vshrl.u32 %v1783, 16
  %vm1789 = vc.u32 %v1781, %v1785
  %v1790 = vsel %vm1789, 1, 0
  %v1791 = vadd.s32 %v1781, %v1785
  %v1792 = vadd.s32 %v1784, %v1790
  %vm1793 = vc.u32 %v1791, %v1787
  %v1794 = vsel %vm1793, 1, 0
  %v1795 = vadd.s32 %v1791, %v1787
  %v1796 = vadd.s32 %v1792, %v1794
  %v1797 = vadd.s32 %v1796, %v1786
  %v1798 = vadd.s32 %v1797, %v1788
  %v1799 = vmul.u32 %v1754, %v1745
  %v1800 = vadd.s32 %v1776, %v1795
  %vm1801 = vc.u32 %v1776, %v1795
  %v1802 = vadd.s32 %v1798, 1
  %v1803 = vsel %vm1801, %v1802, %v1798
  %v1804 = vadd.s32 %v1799, %v1803
  %v1805 = vadd.s32 %v1804, 536870912
  %v1806 = vshrl.u32 %v1805, 30
  %v1807 = vshll.u32 %v1806, 30
  %v1808 = vsub.s32 %v1804, %v1807
  %vm1809 = vcmp.lt.s32.totalorder %v1808, 0
  %v1810 = vsub.s32 0, %v1808
  %v1811 = vsel %vm1809, %v1810, %v1808
  %v1812 = vclz %v1811
  %v1813 = vsub.s32 %v1812, 2
  %vm1814 = vcmp.gt.s32.totalorder 0, %v1813
  %v1815 = vsel %vm1814, 0, %v1813
  %v1816 = vsub.s32 32, %v1815
  %v1817 = vshll.u32 %v1808, %v1815
  %v1818 = vshrl.u32 %v1800, %v1816
  %v1819 = vor.u32 %v1817, %v1818
  %v1820 = vsub.s32 4294967266, %v1815
  %v1821 = vadd.s32 %v1820, 127
  %v1822 = vshll.u32 %v1821, 23
  %v1823 = vor.u32 4788187, %v1822
  %v1824 = vand.u32 2147483647, %v1823
  %v1826 = vcvt.s32.f32 %v1819
  %v1827 = vmul.f32 %v1826, %v1824
  %v1828 = vxor.u32 %v1827, 2147483648
  %v1829 = vsel %vm1708, %v1828, %v1827
  %v1830 = vsub.s32 4, %v1806
  %v1831 = vsel %vm1708, %v1830, %v1806
  %v1832 = vsel %vm1707, %v1394, %v1829
  %v1833 = vsel %vm1707, 0, %v1831
  %v1834 = vmul.f32 %v1832, %v1832
  %v1835 = vmul.f32 %v1834, -0.001358992
  %v1836 = vadd.f32 %v1835, 0.041655596
  %v1837 = vmul.f32 %v1834, %v1836
  %v1838 = vadd.f32 %v1837, -0.4999988
  %v1839 = vmul.f32 %v1834, %v1838
  %v1840 = vadd.f32 1.0, %v1839
  %v1841 = vmul.f32 %v1832, %v1832
  %v1842 = vmul.f32 %v1841, -0.00019511016
  %v1843 = vadd.f32 %v1842, 0.008332121
  %v1844 = vmul.f32 %v1841, %v1843
  %v1845 = vadd.f32 %v1844, -0.16666654
  %v1846 = vmul.f32 %v1841, %v1845
  %v1847 = vadd.f32 %v1846, 1.0
  %v1848 = vmul.f32 %v1847, %v1832
  %vm1849 = vweird.f32 %v1394
  %v1850 = vadd.s32 %v1833, 3
  %v1851 = vand.u32 %v1850, 3
  %vm1852 = vcmp.lt.s32.totalorder %v1851, 2
  %vm1853 = vcmp.eq.s32.totalorder %v1851, 0
  %v1854 = vxor.u32 %v1848, 2147483648
  %v1855 = vsel %vm1853, %v1840, %v1854
  %vm1856 = vcmp.eq.s32.totalorder %v1851, 2
  %v1857 = vxor.u32 %v1840, 2147483648
  %v1858 = vsel %vm1856, %v1857, %v1848
  %v1859 = vsel %vm1852, %v1855, %v1858
  %v1860 = vsel %vm1849, nan, %v1859
  %v1861 = vand.u32 2147483647, %v1395
  %vm1862 = vcmp.le.f32.partialorder %v1861, 0.7853982
  %vm1863 = vcmp.lt.s32.totalorder %v1395, 0
  %v1864 = vand.u32 %v1395, 2139095040
  %v1865 = vshrl.u32 %v1864, 23
  %v1866 = vsub.s32 %v1865, 127
  %v1867 = vand.u32 2147483647, %v1395
  %v1868 = vand.u32 %v1867, 8388607
  %v1869 = vor.u32 %v1868, 8388608
  %v1870 = vsub.s32 0, %v1869
  %v1871 = vadd.s32 %v1866, 1
  %vm1872 = vcmp.gt.s32.totalorder %v1871, 0
  %v1873 = vsel %vm1872, %v1871, 0
  %v1874 = vshrl.u32 %v1873, 5
  %v1875 = vand.u32 %v1873, 31
  %v1876 = vsub.s32 32, %v1875
  %v1877 = vshrl.u32 683565275, %v1876
  %v1878 = vshll.u32 683565275, %v1875
  %v1879 = vshrl.u32 2475754826, %v1876
  %v1880 = vor.u32 %v1878, %v1879
  %v1881 = vshll.u32 2475754826, %v1875
  %v1882 = vshrl.u32 2131351028, %v1876
  %v1883 = vor.u32 %v1881, %v1882
  %v1884 = vshll.u32 2131351028, %v1875
  %v1885 = vshrl.u32 2102212464, %v1876
  %v1886 = vor.u32 %v1884, %v1885
  %v1887 = vshll.u32 2102212464, %v1875
  %v1888 = vshrl.u32 920167782, %v1876
  %v1889 = vor.u32 %v1887, %v1888
  %v1890 = vshll.u32 920167782, %v1875
  %v1891 = vshrl.u32 1326507024, %v1876
  %v1892 = vor.u32 %v1890, %v1891
  %vm1893 = vcmp.lt.s32.totalorder %v1874, 1
  %vm1894 = vcmp.lt.s32.totalorder %v1874, 2
  %vm1895 = vcmp.lt.s32.totalorder %v1874, 3
  %vm1896 = vcmp.lt.s32.totalorder %v1874, 4
  %v1897 = vsel %vm1893, %v1877, %v1880
  %v1898 = vsel %vm1896, %v1886, 2102212464
  %v1899 = vsel %vm1895, %v1883, %v1898
  %v1900 = vsel %vm1894, %v1897, %v1899
  %v1901 = vsel %vm1893, %v1880, %v1883
  %v1902 = vsel %vm1896, %v1889, 920167782
  %v1903 = vsel %vm1895, %v1886, %v1902
  %v1904 = vsel %vm1894, %v1901, %v1903
  %v1905 = vsel %vm1893, %v1883, %v1886
  %v1906 = vsel %vm1896, %v1892, 1326507024
  %v1907 = vsel %vm1895, %v1889, %v1906
  %v1908 = vsel %vm1894, %v1905, %v1907
  %v1909 = vshll.u32 %v1869, 8
  %v1910 = vand.u32 %v1909, 65535
  %v1911 = vshrl.u32 %v1909, 16
  %v1912 = vand.u32 %v1908, 65535
  %v1913 = vshrl.u32 %v1908, 16
  %v1914 = vmul.u32 %v1910, %v1912
  %v1915 = vmul.u32 %v1910, %v1913
  %v1916 = vmul.u32 %v1911, %v1912
  %v1917 = vmul.u32 %v1911, %v1913
  %v1918 = vshll.u32 %v1915, 16
  %v1919 = vshrl.u32 %v1915, 16
  %v1920 = vshll.u32 %v1916, 16
  %v1921 = vshrl.u32 %v1916, 16
  %vm1922 = vc.u32 %v1914, %v1918
  %v1923 = vsel %vm1922, 1, 0
  %v1924 = vadd.s32 %v1914, %v1918
  %v1925 = vadd.s32 %v1917, %v1923
  %vm1926 = vc.u32 %v1924, %v1920
  %v1927 = vsel %vm1926, 1, 0
  %v1928 = vadd.s32 %v1924, %v1920
  %v1929 = vadd.s32 %v1925, %v1927
  %v1930 = vadd.s32 %v1929, %v1919
  %v1931 = vadd.s32 %v1930, %v1921
  %v1932 = vand.u32 %v1909, 65535
  %v1933 = vshrl.u32 %v1909, 16
  %v1934 = vand.u32 %v1904, 65535
  %v1935 = vshrl.u32 %v1904, 16
  %v1936 = vmul.u32 %v1932, %v1934
  %v1937 = vmul.u32 %v1932, %v1935
  %v1938 = vmul.u32 %v1933, %v1934
  %v1939 = vmul.u32 %v1933, %v1935
  %v1940 = vshll.u32 %v1937, 16
  %v1941 = vshrl.u32 %v1937, 16
  %v1942 = vshll.u32 %v1938, 16
  %v1943 = vshrl.u32 %v1938, 16
  %vm1944 = vc.u32 %v1936, %v1940
  %v1945 = vsel %vm1944, 1, 0
  %v1946 = vadd.s32 %v1936, %v1940
  %v1947 = vadd.s32 %v1939, %v1945
  %vm1948 = vc.u32 %v1946, %v1942
  %v1949 = vsel %vm1948, 1, 0
  %v1950 = vadd.s32 %v1946, %v1942
  %v1951 = vadd.s32 %v1947, %v1949
  %v1952 = vadd.s32 %v1951, %v1941
  %v1953 = vadd.s32 %v1952, %v1943
  %v1954 = vmul.u32 %v1909, %v1900
  %v1955 = vadd.s32 %v1931, %v1950
  %vm1956 = vc.u32 %v1931, %v1950
  %v1957 = vadd.s32 %v1953, 1
  %v1958 = vsel %vm1956, %v1957, %v1953
  %v1959 = vadd.s32 %v1954, %v1958
  %v1960 = vadd.s32 %v1959, 536870912
  %v1961 = vshrl.u32 %v1960, 30
  %v1962 = vshll.u32 %v1961, 30
  %v1963 = vsub.s32 %v1959, %v1962
  %vm1964 = vcmp.lt.s32.totalorder %v1963, 0
  %v1965 = vsub.s32 0, %v1963
  %v1966 = vsel %vm1964, %v1965, %v1963
  %v1967 = vclz %v1966
  %v1968 = vsub.s32 %v1967, 2
  %vm1969 = vcmp.gt.s32.totalorder 0, %v1968
  %v1970 = vsel %vm1969, 0, %v1968
  %v1971 = vsub.s32 32, %v1970
  %v1972 = vshll.u32 %v1963, %v1970
  %v1973 = vshrl.u32 %v1955, %v1971
  %v1974 = vor.u32 %v1972, %v1973
  %v1975 = vsub.s32 4294967266, %v1970
  %v1976 = vadd.s32 %v1975, 127
  %v1977 = vshll.u32 %v1976, 23
  %v1978 = vor.u32 4788187, %v1977
  %v1979 = vand.u32 2147483647, %v1978
  %v1981 = vcvt.s32.f32 %v1974
  %v1982 = vmul.f32 %v1981, %v1979
  %v1983 = vxor.u32 %v1982, 2147483648
  %v1984 = vsel %vm1863, %v1983, %v1982
  %v1985 = vsub.s32 4, %v1961
  %v1986 = vsel %vm1863, %v1985, %v1961
  %v1987 = vsel %vm1862, %v1395, %v1984
  %v1988 = vsel %vm1862, 0, %v1986
  %v1989 = vmul.f32 %v1987, %v1987
  %v1990 = vmul.f32 %v1989, -0.001358992
  %v1991 = vadd.f32 %v1990, 0.041655596
  %v1992 = vmul.f32 %v1989, %v1991
  %v1993 = vadd.f32 %v1992, -0.4999988
  %v1994 = vmul.f32 %v1989, %v1993
  %v1995 = vadd.f32 1.0, %v1994
  %v1996 = vmul.f32 %v1987, %v1987
  %v1997 = vmul.f32 %v1996, -0.00019511016
  %v1998 = vadd.f32 %v1997, 0.008332121
  %v1999 = vmul.f32 %v1996, %v1998
  %v2000 = vadd.f32 %v1999, -0.16666654
  %v2001 = vmul.f32 %v1996, %v2000
  %v2002 = vadd.f32 %v2001, 1.0
  %v2003 = vmul.f32 %v2002, %v1987
  %vm2004 = vweird.f32 %v1395
  %v2005 = vadd.s32 %v1988, 3
  %v2006 = vand.u32 %v2005, 3
  %vm2007 = vcmp.lt.s32.totalorder %v2006, 2
  %vm2008 = vcmp.eq.s32.totalorder %v2006, 0
  %v2009 = vxor.u32 %v2003, 2147483648
  %v2010 = vsel %vm2008, %v1995, %v2009
  %vm2011 = vcmp.eq.s32.totalorder %v2006, 2
  %v2012 = vxor.u32 %v1995, 2147483648
  %v2013 = vsel %vm2011, %v2012, %v2003
  %v2014 = vsel %vm2007, %v2010, %v2013
  %v2015 = vsel %vm2004, nan, %v2014
  %v2016 = vmul.f32 %v1388, %v1860
  %v2017 = vmul.f32 %v1390, %v2015
  %v2018 = vmul.f32 %v1379, %v1379
  %v2019 = vmul.f32 %v1381, %v1381
  %v2020 = vadd.f32 %v2018, %v2019
  %v2021 = vrcp.pop %v2020
  %v2022 = vmul.f32 %v2020, %v2021
  %v2023 = vsub.f32 1.0, %v2022
  %v2024 = vmul.f32 %v2021, %v2023
  %v2025 = vadd.f32 %v2021, %v2024
  %vm2026 = vweird.f32 %v2020
  %vm2027 = vweird.f32 %v2021
  %vm2028 = vmor %vm2026, %vm2027
  %v2029 = vsel %vm2028, %v2021, %v2025
  %v2030 = vand.u32 2147483647, %v2020
  %vm2031 = vcmp.eq.f32.partialorder %v2030, 8.507059e+37
  %v2032 = vand.u32 %v2020, 2147483648
  %v2033 = vor.u32 1.1754944e-38, %v2032
  %v2034 = vsel %vm2031, %v2033, %v2029
  %v2035 = vmul.f32 %v1379, %v2034
  %v2036 = vsub.f32 0.0, %v1381
  %v2037 = vmul.f32 %v2036, %v2034
  %v2038 = vsub.f32 %v1704, 1.0
  %v2039 = vsub.f32 %v1705, 1.0
  %v2041 = vperm.slane %v2035, 0
  %v2043 = vmul.f32 %v2038, %v2041
  %v2044 = vmul.f32 %v2039, %v2041
  %v2046 = vperm.slane %v2037, 0
  %v2048 = vmul.f32 %v2016, %v2046
  %v2049 = vmul.f32 %v2017, %v2046
  %v2050 = vsub.f32 %v2043, %v2048
  %v2051 = vsub.f32 %v2044, %v2049
  %v2052 = vmul.f32 %v2038, %v2046
  %v2053 = vmul.f32 %v2039, %v2046
  %v2054 = vmul.f32 %v2016, %v2041
  %v2055 = vmul.f32 %v2017, %v2041
  %v2056 = vadd.f32 %v2052, %v2054
  %v2057 = vadd.f32 %v2053, %v2055
  %v2058 = vmul.f32 %v2050, %v1364
  %v2059 = vmul.f32 %v2051, %v1367
  %2062 = vrot.lane.b32.xlu0 %v1364, 96
  %v2063 = vpop.permute.xlu0 %2062
  %2064 = vrot.lane.b32.xlu0 %v1367, 96
  %v2065 = vpop.permute.xlu0 %2064
  %v2068 = vmul.f32 %v2056, %v2063
  %v2069 = vmul.f32 %v2057, %v2065
  %v2070 = vsub.f32 %v2058, %v2068
  %v2071 = vsub.f32 %v2059, %v2069
  %v2072 = vmul.f32 %v2050, %v2063
  %v2073 = vmul.f32 %v2051, %v2065
  %v2074 = vmul.f32 %v2056, %v1364
  %v2075 = vmul.f32 %v2057, %v1367
  %v2076 = vadd.f32 %v2072, %v2074
  %v2077 = vadd.f32 %v2073, %v2075
  %v2078 = vmul.f32 %v1704, 0.0
  %v2079 = vmul.f32 %v2016, 0.0
  %v2080 = vsub.f32 %v2078, %v2079
  %v2081 = vadd.f32 %v2080, %v2070
  %v2082 = vadd.f32 %v2078, %v2079
  %v2083 = vadd.f32 %v2082, %v2076
  %2085 = vrot.lane.b32.xlu0 %v2083, 32
  %v2086 = vpop.permute.xlu0 %2085
  %v2088 = vsel %vm102, %v2081, %v2086
  %v2090 = vrot.slane %v2081, 6
  %v2092 = vmul.f32 %v1704, %v2090
  %v2093 = vrot.slane %v2083, 6
  %v2095 = vmul.f32 %v2016, %v2093
  %v2096 = vsub.f32 %v2092, %v2095
  %v2097 = vadd.f32 %v2096, %v2070
  %v2098 = vmul.f32 %v1704, %v2093
  %v2099 = vmul.f32 %v2016, %v2090
  %v2100 = vadd.f32 %v2098, %v2099
  %v2101 = vadd.f32 %v2100, %v2076
  %2103 = vrot.lane.b32.xlu0 %v2101, 32
  %v2104 = vpop.permute.xlu0 %2103
  %v2106 = vsel %vm102, %v2097, %v2104
  %v2108 = vrot.slane %v2097, 6
  %v2110 = vmul.f32 %v1704, %v2108
  %v2111 = vrot.slane %v2101, 6
  %v2113 = vmul.f32 %v2016, %v2111
  %v2114 = vsub.f32 %v2110, %v2113
  %v2115 = vadd.f32 %v2114, %v2070
  %v2116 = vmul.f32 %v1704, %v2111
  %v2117 = vmul.f32 %v2016, %v2108
  %v2118 = vadd.f32 %v2116, %v2117
  %v2119 = vadd.f32 %v2118, %v2076
  %2121 = vrot.lane.b32.xlu0 %v2119, 32
  %v2122 = vpop.permute.xlu0 %2121
  %v2124 = vsel %vm102, %v2115, %v2122
  %v2126 = vrot.slane %v2115, 6
  %v2128 = vmul.f32 %v1704, %v2126
  %v2129 = vrot.slane %v2119, 6
  %v2131 = vmul.f32 %v2016, %v2129
  %v2132 = vsub.f32 %v2128, %v2131
  %v2133 = vadd.f32 %v2132, %v2070
  %v2134 = vmul.f32 %v1704, %v2129
  %v2135 = vmul.f32 %v2016, %v2126
  %v2136 = vadd.f32 %v2134, %v2135
  %v2137 = vadd.f32 %v2136, %v2076
  %2139 = vrot.lane.b32.xlu0 %v2137, 32
  %v2140 = vpop.permute.xlu0 %2139
  %v2142 = vsel %vm102, %v2133, %v2140
  %v2144 = vrot.slane %v2133, 6
  %v2146 = vmul.f32 %v1705, %v2144
  %v2147 = vrot.slane %v2137, 6
  %v2149 = vmul.f32 %v2017, %v2147
  %v2150 = vsub.f32 %v2146, %v2149
  %v2151 = vadd.f32 %v2150, %v2071
  %v2152 = vmul.f32 %v1705, %v2147
  %v2153 = vmul.f32 %v2017, %v2144
  %v2154 = vadd.f32 %v2152, %v2153
  %v2155 = vadd.f32 %v2154, %v2077
  %2157 = vrot.lane.b32.xlu0 %v2155, 32
  %v2158 = vpop.permute.xlu0 %2157
  %v2160 = vsel %vm102, %v2151, %v2158
  %v2162 = vrot.slane %v2151, 6
  %v2164 = vmul.f32 %v1705, %v2162
  %v2165 = vrot.slane %v2155, 6
  %v2167 = vmul.f32 %v2017, %v2165
  %v2168 = vsub.f32 %v2164, %v2167
  %v2169 = vadd.f32 %v2168, %v2071
  %v2170 = vmul.f32 %v1705, %v2165
  %v2171 = vmul.f32 %v2017, %v2162
  %v2172 = vadd.f32 %v2170, %v2171
  %v2173 = vadd.f32 %v2172, %v2077
  %2175 = vrot.lane.b32.xlu0 %v2173, 32
  %v2176 = vpop.permute.xlu0 %2175
  %v2178 = vsel %vm102, %v2169, %v2176
  %v2180 = vrot.slane %v2169, 6
  %v2182 = vmul.f32 %v1705, %v2180
  %v2183 = vrot.slane %v2173, 6
  %v2185 = vmul.f32 %v2017, %v2183
  %v2186 = vsub.f32 %v2182, %v2185
  %v2187 = vadd.f32 %v2186, %v2071
  %v2188 = vmul.f32 %v1705, %v2183
  %v2189 = vmul.f32 %v2017, %v2180
  %v2190 = vadd.f32 %v2188, %v2189
  %v2191 = vadd.f32 %v2190, %v2077
  %2193 = vrot.lane.b32.xlu0 %v2191, 32
  %v2194 = vpop.permute.xlu0 %2193
  %v2196 = vsel %vm102, %v2187, %v2194
  %v2198 = vrot.slane %v2187, 6
  %v2200 = vmul.f32 %v1705, %v2198
  %v2201 = vrot.slane %v2191, 6
  %v2203 = vmul.f32 %v2017, %v2201
  %v2204 = vsub.f32 %v2200, %v2203
  %v2205 = vadd.f32 %v2204, %v2071
  %v2206 = vmul.f32 %v1705, %v2201
  %v2207 = vmul.f32 %v2017, %v2198
  %v2208 = vadd.f32 %v2206, %v2207
  %v2209 = vadd.f32 %v2208, %v2077
  %2211 = vrot.lane.b32.xlu0 %v2209, 32
  %v2212 = vpop.permute.xlu0 %2211
  %v2214 = vsel %vm102, %v2205, %v2212
  %v2215 = vsel %vm1050, %v2088, %v2106
  %v2216 = vsel %vm1052, %v2215, %v2124
  %v2217 = vsel %vm1054, %v2216, %v2142
  %v2218 = vsel %vm1050, %v2160, %v2178
  %v2219 = vsel %vm1052, %v2218, %v2196
  %v2220 = vsel %vm1054, %v2219, %v2214
  %s2221 = scalar_lea.vmem %s10, 64
  %v2222 = vld [vmem:[%s2221] sm:$0xff]
  %v2223 = vld [vmem:[%s2221 + $0x8] sm:$0xff]
  %v2224 = vld [vmem:[%s2221 + $0x10] sm:$0xff]
  %v2225 = vld [vmem:[%s2221 + $0x18] sm:$0xff]
  %v2226 = vld [vmem:[%s2221 + $0x20] sm:$0xff]
  %v2227 = vld [vmem:[%s2221 + $0x28] sm:$0xff]
  %v2228 = vld [vmem:[%s2221 + $0x30] sm:$0xff]
  %v2229 = vld [vmem:[%s2221 + $0x38] sm:$0xff]
  %v2231 = vsel %vm1067, %v2217, 0
  %v2234 = vsel %vm1067, %v2220, 0
  %2236 = vmatpush.msra.mxu0 0.0
  %2237 = vmatpush.msra.mxu0 0.0
  %2238 = vmatpush.msra.mxu0 0.0
  %2239 = vmatpush.msra.mxu0 0.0
  %2240 = vmatpush.msra.mxu0 0.0
  %2241 = vmatpush.msra.mxu0 0.0
  %2242 = vmatpush.msra.mxu0 0.0
  %2243 = vmatpush.msra.mxu0 0.0
  %2244 = vmatpush.msra.mxu0 %v2229
  %2245 = vmatpush.msra.mxu0 %v2228
  %2246 = vmatpush.msra.mxu0 %v2227
  %2247 = vmatpush.msra.mxu0 %v2226
  %2248 = vmatpush.msra.mxu0 %v2225
  %2249 = vmatpush.msra.mxu0 %v2224
  %2250 = vmatpush.msra.mxu0 %v2223
  %2251 = vmatpush.msra.mxu0 %v2222
  %2252 = vmatmul.f32.gmra.mxu0 %v2231
  %v2253 = vpop.f32.mrf.mxu0
  %v2254 = vadd.f32 0.0, %v2253
  %2255 = vmatmul.f32.gmra.mxu0 %v2234
  %v2256 = vpop.f32.mrf.mxu0
  %v2257 = vadd.f32 0.0, %v2256
  %2258 = vdwg.mxu0
  %v2259 = vmul.f32 %v2254, 2.0
  %v2260 = vmul.f32 %v2257, 2.0
  %s2261 = scalar_lea.vmem %s11, 1
  %v2262 = vld [vmem:[%s2261] sm:$0x1]
  %v2264 = vperm.slane %v2262, 0
  %v2266 = vmul.f32 %v2264, %v1333
  %v2267 = vmul.f32 %v2264, %v1334
  %v2268 = vadd.f32 %v2259, %v2266
  %v2269 = vadd.f32 %v2260, %v2267
  %v2270 = vmul.f32 %v2268, %v2268
  %v2271 = vmul.f32 %v2269, %v2269
  %v2272 = vmul.f32 %v2268, %v2270
  %v2273 = vmul.f32 %v2269, %v2271
  %v2274 = vmul.f32 %v2272, 0.044715
  %v2275 = vmul.f32 %v2273, 0.044715
  %v2276 = vadd.f32 %v2268, %v2274
  %v2277 = vadd.f32 %v2269, %v2275
  %v2278 = vmul.f32 %v2276, 0.7978846
  %v2279 = vmul.f32 %v2277, 0.7978846
  %v2280 = vtanh.pop %v2278
  %v2281 = vtanh.pop %v2279
  %v2282 = vadd.f32 %v2280, 1.0
  %v2283 = vadd.f32 %v2281, 1.0
  %v2284 = vmul.f32 %v2282, 0.5
  %v2285 = vmul.f32 %v2283, 0.5
  %v2286 = vmul.f32 %v2268, %v2284
  %v2287 = vmul.f32 %v2269, %v2285
  %v2288 = vadd.f32 %v2286, %v1333
  %v2289 = vadd.f32 %v2287, %v1334
  %s2290 = scalar_lea.vmem %s12, 1
  %v2291 = vld [vmem:[%s2290] sm:$0x1]
  %s2292 = scalar_lea.vmem %s13, 1
  %v2293 = vld [vmem:[%s2292] sm:$0x1]
  %v2294 = vsel %vm102, %v2288, 0.0
  %2295 = vadd.xlane.f32.xlu0 %v2294
  %v2296 = vpop.xlane.xlu0 %2295
  %v2297 = vsel %vm102, %v2289, 0.0
  %2298 = vadd.xlane.f32.xlu0 %v2297
  %v2299 = vpop.xlane.xlu0 %2298
  %v2300 = vmul.f32 %v2296, %v115
  %v2301 = vmul.f32 %v2299, %v115
  %v2302 = vsub.f32 %v2288, %v2300
  %v2303 = vsub.f32 %v2289, %v2301
  %v2304 = vmul.f32 %v2302, %v2302
  %v2305 = vmul.f32 %v2303, %v2303
  %v2306 = vsel %vm102, %v2304, 0.0
  %2307 = vadd.xlane.f32.xlu0 %v2306
  %v2308 = vpop.xlane.xlu0 %2307
  %v2309 = vsel %vm102, %v2305, 0.0
  %2310 = vadd.xlane.f32.xlu0 %v2309
  %v2311 = vpop.xlane.xlu0 %2310
  %v2312 = vmul.f32 %v2308, %v115
  %v2313 = vmul.f32 %v2311, %v115
  %v2314 = vadd.f32 %v2312, 1e-05
  %v2315 = vadd.f32 %v2313, 1e-05
  %v2316 = vrsqrt.pop %v2314
  %v2317 = vmul.f32 %v2316, %v2314
  %v2318 = vmul.f32 %v2317, %v2316
  %v2319 = vmul.f32 0.5, %v2318
  %v2320 = vsub.f32 1.5, %v2319
  %v2321 = vmul.f32 %v2316, %v2320
  %vm2322 = vweird.f32 %v2314
  %vm2323 = vweird.f32 %v2316
  %vm2324 = vmor %vm2322, %vm2323
  %v2325 = vsel %vm2324, %v2316, %v2321
  %v2326 = vrsqrt.pop %v2315
  %v2327 = vmul.f32 %v2326, %v2315
  %v2328 = vmul.f32 %v2327, %v2326
  %v2329 = vmul.f32 0.5, %v2328
  %v2330 = vsub.f32 1.5, %v2329
  %v2331 = vmul.f32 %v2326, %v2330
  %vm2332 = vweird.f32 %v2315
  %vm2333 = vweird.f32 %v2326
  %vm2334 = vmor %vm2332, %vm2333
  %v2335 = vsel %vm2334, %v2326, %v2331
  %v2336 = vmul.f32 %v2302, %v2325
  %v2337 = vmul.f32 %v2303, %v2335
  %v2339 = vperm.slane %v2291, 0
  %v2341 = vmul.f32 %v2336, %v2339
  %v2342 = vmul.f32 %v2337, %v2339
  %v2344 = vperm.slane %v2293, 0
  %v2346 = vadd.f32 %v2341, %v2344
  %v2347 = vadd.f32 %v2342, %v2344
  %s2348 = scalar_lea.vmem %s14, 32
  %v2349 = vld [vmem:[%s2348] sm:$0xff]
  %v2350 = vld [vmem:[%s2348 + $0x8] sm:$0xff]
  %v2351 = vld [vmem:[%s2348 + $0x10] sm:$0xff]
  %v2352 = vld [vmem:[%s2348 + $0x18] sm:$0xff]
  %v2354 = vsel %vm102, %v2346, 0
  %v2357 = vsel %vm102, %v2347, 0
  %2359 = vmatpush.msra.mxu0 0.0
  %2360 = vmatpush.msra.mxu0 0.0
  %2361 = vmatpush.msra.mxu0 0.0
  %2362 = vmatpush.msra.mxu0 0.0
  %2363 = vmatpush.msra.mxu0 0.0
  %2364 = vmatpush.msra.mxu0 0.0
  %2365 = vmatpush.msra.mxu0 0.0
  %2366 = vmatpush.msra.mxu0 0.0
  %2367 = vmatpush.msra.mxu0 0.0
  %2368 = vmatpush.msra.mxu0 0.0
  %2369 = vmatpush.msra.mxu0 0.0
  %2370 = vmatpush.msra.mxu0 0.0
  %2371 = vmatpush.msra.mxu0 %v2352
  %2372 = vmatpush.msra.mxu0 %v2351
  %2373 = vmatpush.msra.mxu0 %v2350
  %2374 = vmatpush.msra.mxu0 %v2349
  %2375 = vmatmul.f32.gmra.mxu0 %v2354
  %v2376 = vpop.f32.mrf.mxu0
  %v2377 = vadd.f32 0.0, %v2376
  %2378 = vmatmul.f32.gmra.mxu0 %v2357
  %v2379 = vpop.f32.mrf.mxu0
  %v2380 = vadd.f32 0.0, %v2379
  %2381 = vdwg.mxu0
  %v2382 = vmul.f32 %v2377, %v2377
  %v2383 = vmul.f32 %v2380, %v2380
  %v2384 = vmul.f32 %v2377, %v2382
  %v2385 = vmul.f32 %v2380, %v2383
  %v2386 = vmul.f32 %v2384, 0.044715
  %v2387 = vmul.f32 %v2385, 0.044715
  %v2388 = vadd.f32 %v2377, %v2386
  %v2389 = vadd.f32 %v2380, %v2387
  %v2390 = vmul.f32 %v2388, 0.7978846
  %v2391 = vmul.f32 %v2389, 0.7978846
  %v2392 = vtanh.pop %v2390
  %v2393 = vtanh.pop %v2391
  %v2394 = vadd.f32 %v2392, 1.0
  %v2395 = vadd.f32 %v2393, 1.0
  %v2396 = vmul.f32 %v2394, 0.5
  %v2397 = vmul.f32 %v2395, 0.5
  %v2398 = vmul.f32 %v2377, %v2396
  %v2399 = vmul.f32 %v2380, %v2397
  %2402 = vrot.lane.b32.xlu0 %v2398, 96
  %v2403 = vpop.permute.xlu0 %2402
  %2404 = vrot.lane.b32.xlu0 %v2399, 96
  %v2405 = vpop.permute.xlu0 %2404
  %v2408 = vmul.f32 %v2377, %v2403
  %v2409 = vmul.f32 %v2380, %v2405
  %s2410 = scalar_lea.vmem %s15, 32
  %v2411 = vld [vmem:[%s2410] sm:$0xff]
  %v2412 = vld [vmem:[%s2410 + $0x8] sm:$0xff]
  %v2413 = vld [vmem:[%s2410 + $0x10] sm:$0xff]
  %v2414 = vld [vmem:[%s2410 + $0x18] sm:$0xff]
  %v2416 = vsel %vm102, %v2408, 0
  %v2419 = vsel %vm102, %v2409, 0
  %2421 = vmatpush.msra.mxu0 0.0
  %2422 = vmatpush.msra.mxu0 0.0
  %2423 = vmatpush.msra.mxu0 0.0
  %2424 = vmatpush.msra.mxu0 0.0
  %2425 = vmatpush.msra.mxu0 0.0
  %2426 = vmatpush.msra.mxu0 0.0
  %2427 = vmatpush.msra.mxu0 0.0
  %2428 = vmatpush.msra.mxu0 0.0
  %2429 = vmatpush.msra.mxu0 0.0
  %2430 = vmatpush.msra.mxu0 0.0
  %2431 = vmatpush.msra.mxu0 0.0
  %2432 = vmatpush.msra.mxu0 0.0
  %2433 = vmatpush.msra.mxu0 %v2414
  %2434 = vmatpush.msra.mxu0 %v2413
  %2435 = vmatpush.msra.mxu0 %v2412
  %2436 = vmatpush.msra.mxu0 %v2411
  %2437 = vmatmul.f32.gmra.mxu0 %v2416
  %v2438 = vpop.f32.mrf.mxu0
  %v2439 = vadd.f32 %v2346, %v2438
  %2440 = vmatmul.f32.gmra.mxu0 %v2419
  %v2441 = vpop.f32.mrf.mxu0
  %v2442 = vadd.f32 %v2347, %v2441
  %2443 = vdwg.mxu0
  %v2444 = vld [vmem:[%s16] sm:$0xff]
  %v2445 = vld [vmem:[%s16 + $0x8] sm:$0xff]
  %v2446 = vld [vmem:[%s16 + $0x10] sm:$0xff]
  %v2447 = vld [vmem:[%s16 + $0x18] sm:$0xff]
  %v2448 = vld [vmem:[%s17] sm:$0x1]
  %v2450 = vperm.slane %v2448, 0
  %v2453 = vsel %vm102, %v2439, 0
  %v2456 = vsel %vm102, %v2442, 0
  %2458 = vmatpush.msra.mxu0 0.0
  %2459 = vmatpush.msra.mxu0 0.0
  %2460 = vmatpush.msra.mxu0 0.0
  %2461 = vmatpush.msra.mxu0 0.0
  %2462 = vmatpush.msra.mxu0 0.0
  %2463 = vmatpush.msra.mxu0 0.0
  %2464 = vmatpush.msra.mxu0 0.0
  %2465 = vmatpush.msra.mxu0 0.0
  %2466 = vmatpush.msra.mxu0 0.0
  %2467 = vmatpush.msra.mxu0 0.0
  %2468 = vmatpush.msra.mxu0 0.0
  %2469 = vmatpush.msra.mxu0 0.0
  %2470 = vmatpush.msra.mxu0 %v2447
  %2471 = vmatpush.msra.mxu0 %v2446
  %2472 = vmatpush.msra.mxu0 %v2445
  %2473 = vmatpush.msra.mxu0 %v2444
  %2474 = vmatmul.f32.gmra.mxu0 %v2453
  %v2475 = vpop.f32.mrf.mxu0
  %v2476 = vadd.f32 %v2450, %v2475
  %2477 = vmatmul.f32.gmra.mxu0 %v2456
  %v2478 = vpop.f32.mrf.mxu0
  %v2479 = vadd.f32 %v2450, %v2478
  %2480 = vdwg.mxu0
  %2481 = vst.msk [vmem:[%s18] sm:$0xff] %vm102, %v2476
  %2482 = vst.msk [vmem:[%s18 + $0x8] sm:$0xff] %vm102, %v2479
  // Predicated region
  $region74: #{pissm_forward.2} parent=0 // pred_check
    _
  $region75: #{pissm_forward.2} parent=0 // pred_check_branch
    %2484 = sbr.rel (0) target = $region77
  $region76: #{pissm_forward.2} parent=0 // pred_region
    _
  $region77: #{pissm_forward.2} parent=0 // pred_fallthru
    _
  // Predicated region
  $region78: #{pissm_forward.2} parent=0 // pred_check
    _
  $region79: #{pissm_forward.2} parent=0 // pred_check_branch
    %2486 = sbr.rel (0) target = $region81
  $region80: #{pissm_forward.2} parent=0 // pred_region
    _
  $region81: #{pissm_forward.2} parent=0 // pred_fallthru
    _

</llo_original>
